<compile_context>
chip_gen: v7x
topology: tpu7x:2x2x1
jax: 0.10.0
libtpu: 0.0.40
codegen_flags: <defaults>
</compile_context>

<pallas_src>
import math

import jax
import jax.numpy as jnp
from jax.experimental import pallas as pl
from jax.experimental.pallas import tpu as pltpu  # noqa: F401  (not needed at these sizes)

# ---- small synthetic BERT config ----
BATCH = 2
SEQ = 8
HIDDEN = 32          # opt.bert_dim
NUM_HEADS = 2
HEAD_DIM = HIDDEN // NUM_HEADS
INTER = 64
NUM_LAYERS = 2
VOCAB = 50
NUM_SEG = 2
MAX_POS = 16
CLASS_DIM = 3        # opt.class_dim
LN_EPS = 1e-12
ATTN_SCALE = 1.0 / math.sqrt(HEAD_DIM)


# ---------------- in-kernel helpers ----------------
def _layer_norm(x, g, b):
    mu = jnp.mean(x, axis=-1, keepdims=True)
    var = jnp.mean((x - mu) ** 2, axis=-1, keepdims=True)
    return (x - mu) * jax.lax.rsqrt(var + LN_EPS) * g + b


def _gelu(x):
    # tanh approximation of GELU (BERT-style)
    c = math.sqrt(2.0 / math.pi)
    return 0.5 * x * (1.0 + jnp.tanh(c * (x + 0.044715 * x * x * x)))


# ---------------- fused Pallas kernel ----------------
def bert_sa_kernel(emb_ref, eg_ref, eb_ref,
                   wqkv_ref, bqkv_ref, wo_ref, bo_ref, ln1g_ref, ln1b_ref,
                   w1_ref, b1_ref, w2_ref, b2_ref, ln2g_ref, ln2b_ref,
                   poolw_ref, poolb_ref, densew_ref, denseb_ref,
                   o_ref):
    # (B*S, H) activation stays resident in VMEM/vregs for the whole forward.
    x = _layer_norm(emb_ref[...].astype(jnp.float32), eg_ref[...], eb_ref[...])

    for l in range(NUM_LAYERS):              # static unroll (NUM_LAYERS == 2)
        # Fused QKV projection: one (B*S, H) x (H, 3H) MXU push, then lane slices.
        qkv = jnp.dot(x, wqkv_ref[l], preferred_element_type=jnp.float32) + bqkv_ref[l]
        q = qkv[:, 0 * HIDDEN:1 * HIDDEN].reshape(BATCH, SEQ, HIDDEN)
        k = qkv[:, 1 * HIDDEN:2 * HIDDEN].reshape(BATCH, SEQ, HIDDEN)
        v = qkv[:, 2 * HIDDEN:3 * HIDDEN].reshape(BATCH, SEQ, HIDDEN)

        wo_l = wo_ref[l]                     # (H, H)
        attn = jnp.zeros((BATCH * SEQ, HIDDEN), jnp.float32)
        for h in range(NUM_HEADS):           # static unroll (NUM_HEADS == 2)
            sl = slice(h * HEAD_DIM, (h + 1) * HEAD_DIM)
            qh, kh, vh = q[:, :, sl], k[:, :, sl], v[:, :, sl]      # (B, S, HD)
            # Batched over B; contracts dim d of both operands -> no explicit transpose.
            s = jnp.einsum('bqd,bkd->bqk', qh, kh,
                           preferred_element_type=jnp.float32) * ATTN_SCALE
            s = s - jnp.max(s, axis=-1, keepdims=True)
            p = jnp.exp(s)
            p = p * pl.reciprocal(jnp.sum(p, axis=-1, keepdims=True), approx=True)
            ctx = jnp.einsum('bqk,bkd->bqd', p, vh,
                             preferred_element_type=jnp.float32)    # (B, S, HD)
            # Fold the head-concat into the output projection:
            #   concat_h(ctx_h) @ Wo == sum_h ctx_h @ Wo[h*HD:(h+1)*HD, :]
            attn = attn + jnp.dot(ctx.reshape(BATCH * SEQ, HEAD_DIM), wo_l[sl, :],
                                  preferred_element_type=jnp.float32)
        attn = attn + bo_ref[l]

        h1 = _layer_norm(x + attn, ln1g_ref[l], ln1b_ref[l])
        f = _gelu(jnp.dot(h1, w1_ref[l], preferred_element_type=jnp.float32) + b1_ref[l])
        f = jnp.dot(f, w2_ref[l], preferred_element_type=jnp.float32) + b2_ref[l]
        x = _layer_norm(h1 + f, ln2g_ref[l], ln2b_ref[l])

    # BERT pooler on the [CLS] token (row b*S of the flattened activation).
    cls = jnp.concatenate([x[b * SEQ:b * SEQ + 1, :] for b in range(BATCH)], axis=0)  # (B, H)
    pooled = jnp.tanh(jnp.dot(cls, poolw_ref[...],
                              preferred_element_type=jnp.float32) + poolb_ref[...])
    # nn.Dropout is identity at inference time (eval mode).
    logits = jnp.dot(pooled, densew_ref[...],
                     preferred_element_type=jnp.float32) + denseb_ref[...]
    o_ref[...] = logits.astype(o_ref.dtype)


# ---------------- parameter init & forward (glue) ----------------
def init_params(key):
    def nrm(k, shape, scale=0.02):
        return scale * jax.random.normal(k, shape, jnp.float32)

    keys = iter(jax.random.split(key, 16))
    return {
        "word_emb": nrm(next(keys), (VOCAB, HIDDEN)),
        "pos_emb": nrm(next(keys), (MAX_POS, HIDDEN)),
        "seg_emb": nrm(next(keys), (NUM_SEG, HIDDEN)),
        "emb_ln_g": jnp.ones((1, HIDDEN), jnp.float32),
        "emb_ln_b": jnp.zeros((1, HIDDEN), jnp.float32),
        # per-layer weights stacked on a leading NUM_LAYERS axis (fused QKV weight)
        "wqkv": nrm(next(keys), (NUM_LAYERS, HIDDEN, 3 * HIDDEN)),
        "bqkv": jnp.zeros((NUM_LAYERS, 1, 3 * HIDDEN), jnp.float32),
        "wo": nrm(next(keys), (NUM_LAYERS, HIDDEN, HIDDEN)),
        "bo": jnp.zeros((NUM_LAYERS, 1, HIDDEN), jnp.float32),
        "ln1_g": jnp.ones((NUM_LAYERS, 1, HIDDEN), jnp.float32),
        "ln1_b": jnp.zeros((NUM_LAYERS, 1, HIDDEN), jnp.float32),
        "w1": nrm(next(keys), (NUM_LAYERS, HIDDEN, INTER)),
        "b1": jnp.zeros((NUM_LAYERS, 1, INTER), jnp.float32),
        "w2": nrm(next(keys), (NUM_LAYERS, INTER, HIDDEN)),
        "b2": jnp.zeros((NUM_LAYERS, 1, HIDDEN), jnp.float32),
        "ln2_g": jnp.ones((NUM_LAYERS, 1, HIDDEN), jnp.float32),
        "ln2_b": jnp.zeros((NUM_LAYERS, 1, HIDDEN), jnp.float32),
        "pool_w": nrm(next(keys), (HIDDEN, HIDDEN)),
        "pool_b": jnp.zeros((1, HIDDEN), jnp.float32),
        # classifier (self.dense: Linear(bert_dim, class_dim)); stored (in, out)
        "dense_w": nrm(next(keys), (HIDDEN, CLASS_DIM)),
        "dense_b": jnp.zeros((1, CLASS_DIM), jnp.float32),
    }


def bert_sa_forward(params, text_bert_indices, bert_segments_ids):
    B, S = text_bert_indices.shape
    # embedding lookups are gathers -> plain-JAX glue outside the fused kernel
    emb = (jnp.take(params["word_emb"], text_bert_indices, axis=0)
           + jnp.take(params["seg_emb"], bert_segments_ids, axis=0)
           + params["pos_emb"][:S][None, :, :])
    emb_flat = emb.reshape(B * S, HIDDEN)

    # Single fused kernel: no grid, whole arrays as VMEM-resident blocks.
    return pl.pallas_call(
        bert_sa_kernel,
        out_shape=jax.ShapeDtypeStruct((B, CLASS_DIM), jnp.float32),
    )(emb_flat, params["emb_ln_g"], params["emb_ln_b"],
      params["wqkv"], params["bqkv"], params["wo"], params["bo"],
      params["ln1_g"], params["ln1_b"], params["w1"], params["b1"],
      params["w2"], params["b2"], params["ln2_g"], params["ln2_b"],
      params["pool_w"], params["pool_b"], params["dense_w"], params["dense_b"])


if __name__ == "__main__":
    key = jax.random.PRNGKey(0)
    kp, kt = jax.random.split(key)
    params = init_params(kp)

    text_bert_indices = jax.random.randint(kt, (BATCH, SEQ), 0, VOCAB, dtype=jnp.int32)
    bert_segments_ids = jnp.concatenate(
        [jnp.zeros((BATCH, SEQ // 2), jnp.int32),
         jnp.ones((BATCH, SEQ // 2), jnp.int32)], axis=1)

    logits = jax.jit(bert_sa_forward)(params, text_bert_indices, bert_segments_ids)
    logits = jax.block_until_ready(logits)
    assert logits.shape == (BATCH, CLASS_DIM) and logits.dtype == jnp.float32
    assert bool(jnp.all(jnp.isfinite(logits)))
    print("KERNEL_OK")
</pallas_src>

<mosaic_0001>
module attributes {stable_mosaic.version = 11 : i64} {
  func.func @bert_sa_kernel(%arg0: memref<16x32xf32, #tpu.memory_space<vmem>>, %arg1: memref<1x32xf32, #tpu.memory_space<vmem>>, %arg2: memref<1x32xf32, #tpu.memory_space<vmem>>, %arg3: memref<2x32x96xf32, #tpu.memory_space<vmem>>, %arg4: memref<2x1x96xf32, #tpu.memory_space<vmem>>, %arg5: memref<2x32x32xf32, #tpu.memory_space<vmem>>, %arg6: memref<2x1x32xf32, #tpu.memory_space<vmem>>, %arg7: memref<2x1x32xf32, #tpu.memory_space<vmem>>, %arg8: memref<2x1x32xf32, #tpu.memory_space<vmem>>, %arg9: memref<2x32x64xf32, #tpu.memory_space<vmem>>, %arg10: memref<2x1x64xf32, #tpu.memory_space<vmem>>, %arg11: memref<2x64x32xf32, #tpu.memory_space<vmem>>, %arg12: memref<2x1x32xf32, #tpu.memory_space<vmem>>, %arg13: memref<2x1x32xf32, #tpu.memory_space<vmem>>, %arg14: memref<2x1x32xf32, #tpu.memory_space<vmem>>, %arg15: memref<32x32xf32, #tpu.memory_space<vmem>>, %arg16: memref<1x32xf32, #tpu.memory_space<vmem>>, %arg17: memref<32x3xf32, #tpu.memory_space<vmem>>, %arg18: memref<1x3xf32, #tpu.memory_space<vmem>>, %arg19: memref<2x3xf32, #tpu.memory_space<vmem>>) attributes {dimension_semantics = [], scalar_prefetch = 0 : i64, scratch_operands = 0 : i64, tpu.core_type = #tpu.core_type<tc>} {
    %c0 = arith.constant 0 : index
    %c0_0 = arith.constant 0 : index
    %0 = vector.load %arg0[%c0, %c0_0] : memref<16x32xf32, #tpu.memory_space<vmem>>, vector<16x32xf32>
    %c0_1 = arith.constant 0 : index
    %c0_2 = arith.constant 0 : index
    %1 = vector.load %arg1[%c0_1, %c0_2] : memref<1x32xf32, #tpu.memory_space<vmem>>, vector<1x32xf32>
    %c0_3 = arith.constant 0 : index
    %c0_4 = arith.constant 0 : index
    %2 = vector.load %arg2[%c0_3, %c0_4] : memref<1x32xf32, #tpu.memory_space<vmem>>, vector<1x32xf32>
    %cst = arith.constant dense<0.000000e+00> : vector<16xf32>
    %3 = vector.multi_reduction <add>, %0, %cst [1] : vector<16x32xf32> to vector<16xf32>
    %4 = vector.shape_cast %3 : vector<16xf32> to vector<16x1xf32>
    %cst_5 = arith.constant 3.200000e+01 : f32
    %5 = vector.broadcast %cst_5 : f32 to vector<16x1xf32>
    %6 = arith.divf %4, %5 : vector<16x1xf32>
    %7 = vector.broadcast %6 : vector<16x1xf32> to vector<16x32xf32>
    %8 = arith.subf %0, %7 : vector<16x32xf32>
    %9 = arith.mulf %8, %8 : vector<16x32xf32>
    %cst_6 = arith.constant dense<0.000000e+00> : vector<16xf32>
    %10 = vector.multi_reduction <add>, %9, %cst_6 [1] : vector<16x32xf32> to vector<16xf32>
    %11 = vector.shape_cast %10 : vector<16xf32> to vector<16x1xf32>
    %cst_7 = arith.constant 3.200000e+01 : f32
    %12 = vector.broadcast %cst_7 : f32 to vector<16x1xf32>
    %13 = arith.divf %11, %12 : vector<16x1xf32>
    %14 = vector.broadcast %6 : vector<16x1xf32> to vector<16x32xf32>
    %15 = arith.subf %0, %14 : vector<16x32xf32>
    %cst_8 = arith.constant 9.99999996E-13 : f32
    %16 = vector.broadcast %cst_8 : f32 to vector<16x1xf32>
    %17 = arith.addf %13, %16 : vector<16x1xf32>
    %18 = math.rsqrt %17 : vector<16x1xf32>
    %19 = vector.broadcast %18 : vector<16x1xf32> to vector<16x32xf32>
    %20 = arith.mulf %15, %19 : vector<16x32xf32>
    %21 = vector.broadcast %1 : vector<1x32xf32> to vector<16x32xf32>
    %22 = arith.mulf %20, %21 : vector<16x32xf32>
    %23 = vector.broadcast %2 : vector<1x32xf32> to vector<16x32xf32>
    %24 = arith.addf %22, %23 : vector<16x32xf32>
    %c0_9 = arith.constant 0 : index
    %c0_10 = arith.constant 0 : index
    %c0_11 = arith.constant 0 : index
    %25 = vector.load %arg3[%c0_9, %c0_10, %c0_11] : memref<2x32x96xf32, #tpu.memory_space<vmem>>, vector<1x32x96xf32>
    %26 = vector.shape_cast %25 : vector<1x32x96xf32> to vector<32x96xf32>
    %cst_12 = arith.constant dense<0.000000e+00> : vector<16x96xf32>
    %27 = tpu.matmul %24, %26, %cst_12 {dimension_numbers = #tpu.dot_dimension_numbers<[1], [0], [0], [1], [0, 0, 1, 1], [], []>} : vector<16x32xf32>, vector<32x96xf32>, vector<16x96xf32> -> vector<16x96xf32>
    %c0_13 = arith.constant 0 : index
    %c0_14 = arith.constant 0 : index
    %c0_15 = arith.constant 0 : index
    %28 = vector.load %arg4[%c0_13, %c0_14, %c0_15] : memref<2x1x96xf32, #tpu.memory_space<vmem>>, vector<1x1x96xf32>
    %29 = vector.shape_cast %28 : vector<1x1x96xf32> to vector<1x96xf32>
    %30 = vector.broadcast %29 : vector<1x96xf32> to vector<16x96xf32>
    %31 = arith.addf %27, %30 : vector<16x96xf32>
    %32 = vector.extract_strided_slice %31 {offsets = [0, 0], sizes = [16, 32], strides = [1, 1]} : vector<16x96xf32> to vector<16x32xf32>
    %33 = vector.shape_cast %32 : vector<16x32xf32> to vector<2x8x32xf32>
    %34 = vector.extract_strided_slice %31 {offsets = [0, 32], sizes = [16, 32], strides = [1, 1]} : vector<16x96xf32> to vector<16x32xf32>
    %35 = vector.shape_cast %34 : vector<16x32xf32> to vector<2x8x32xf32>
    %36 = vector.extract_strided_slice %31 {offsets = [0, 64], sizes = [16, 32], strides = [1, 1]} : vector<16x96xf32> to vector<16x32xf32>
    %37 = vector.shape_cast %36 : vector<16x32xf32> to vector<2x8x32xf32>
    %c0_16 = arith.constant 0 : index
    %c0_17 = arith.constant 0 : index
    %c0_18 = arith.constant 0 : index
    %38 = vector.load %arg5[%c0_16, %c0_17, %c0_18] : memref<2x32x32xf32, #tpu.memory_space<vmem>>, vector<1x32x32xf32>
    %39 = vector.shape_cast %38 : vector<1x32x32xf32> to vector<32x32xf32>
    %cst_19 = arith.constant 0.000000e+00 : f32
    %40 = vector.broadcast %cst_19 : f32 to vector<16x32xf32>
    %41 = vector.extract_strided_slice %33 {offsets = [0, 0, 0], sizes = [2, 8, 16], strides = [1, 1, 1]} : vector<2x8x32xf32> to vector<2x8x16xf32>
    %42 = vector.extract_strided_slice %35 {offsets = [0, 0, 0], sizes = [2, 8, 16], strides = [1, 1, 1]} : vector<2x8x32xf32> to vector<2x8x16xf32>
    %43 = vector.extract_strided_slice %37 {offsets = [0, 0, 0], sizes = [2, 8, 16], strides = [1, 1, 1]} : vector<2x8x32xf32> to vector<2x8x16xf32>
    "tpu.trace_start"() <{level = 10 : i32, message = "bqd,bkd->bqk"}> : () -> ()
    %cst_20 = arith.constant dense<0.000000e+00> : vector<2x8x8xf32>
    %44 = tpu.matmul %41, %42, %cst_20 {dimension_numbers = #tpu.dot_dimension_numbers<[2], [2], [1], [1], [0, 0, 0, 1, 1, 1], [0], [0]>} : vector<2x8x16xf32>, vector<2x8x16xf32>, vector<2x8x8xf32> -> vector<2x8x8xf32>
    "tpu.trace_stop"() : () -> ()
    %cst_21 = arith.constant 2.500000e-01 : f32
    %45 = vector.broadcast %cst_21 : f32 to vector<2x8x8xf32>
    %46 = arith.mulf %44, %45 : vector<2x8x8xf32>
    %cst_22 = arith.constant dense<0xFF800000> : vector<2x8xf32>
    %47 = vector.multi_reduction <maximumf>, %46, %cst_22 [2] : vector<2x8x8xf32> to vector<2x8xf32>
    %48 = vector.shape_cast %47 : vector<2x8xf32> to vector<2x8x1xf32>
    %49 = vector.broadcast %48 : vector<2x8x1xf32> to vector<2x8x8xf32>
    %50 = arith.subf %46, %49 : vector<2x8x8xf32>
    %51 = math.exp %50 : vector<2x8x8xf32>
    %cst_23 = arith.constant dense<0.000000e+00> : vector<2x8xf32>
    %52 = vector.multi_reduction <add>, %51, %cst_23 [2] : vector<2x8x8xf32> to vector<2x8xf32>
    %53 = vector.shape_cast %52 : vector<2x8xf32> to vector<2x8x1xf32>
    %54 = tpu.reciprocal %53 {approx = true} : vector<2x8x1xf32> -> vector<2x8x1xf32>
    %55 = vector.broadcast %54 : vector<2x8x1xf32> to vector<2x8x8xf32>
    %56 = arith.mulf %51, %55 : vector<2x8x8xf32>
    "tpu.trace_start"() <{level = 10 : i32, message = "bqk,bkd->bqd"}> : () -> ()
    %cst_24 = arith.constant dense<0.000000e+00> : vector<2x8x16xf32>
    %57 = tpu.matmul %56, %43, %cst_24 {dimension_numbers = #tpu.dot_dimension_numbers<[2], [1], [1], [2], [0, 0, 0, 1, 1, 2], [0], [0]>} : vector<2x8x8xf32>, vector<2x8x16xf32>, vector<2x8x16xf32> -> vector<2x8x16xf32>
    "tpu.trace_stop"() : () -> ()
    %58 = vector.shape_cast %57 : vector<2x8x16xf32> to vector<16x16xf32>
    %59 = vector.extract_strided_slice %39 {offsets = [0, 0], sizes = [16, 32], strides = [1, 1]} : vector<32x32xf32> to vector<16x32xf32>
    %cst_25 = arith.constant dense<0.000000e+00> : vector<16x32xf32>
    %60 = tpu.matmul %58, %59, %cst_25 {dimension_numbers = #tpu.dot_dimension_numbers<[1], [0], [0], [1], [0, 0, 1, 1], [], []>} : vector<16x16xf32>, vector<16x32xf32>, vector<16x32xf32> -> vector<16x32xf32>
    %61 = arith.addf %40, %60 : vector<16x32xf32>
    %62 = vector.extract_strided_slice %33 {offsets = [0, 0, 16], sizes = [2, 8, 16], strides = [1, 1, 1]} : vector<2x8x32xf32> to vector<2x8x16xf32>
    %63 = vector.extract_strided_slice %35 {offsets = [0, 0, 16], sizes = [2, 8, 16], strides = [1, 1, 1]} : vector<2x8x32xf32> to vector<2x8x16xf32>
    %64 = vector.extract_strided_slice %37 {offsets = [0, 0, 16], sizes = [2, 8, 16], strides = [1, 1, 1]} : vector<2x8x32xf32> to vector<2x8x16xf32>
    "tpu.trace_start"() <{level = 10 : i32, message = "bqd,bkd->bqk"}> : () -> ()
    %cst_26 = arith.constant dense<0.000000e+00> : vector<2x8x8xf32>
    %65 = tpu.matmul %62, %63, %cst_26 {dimension_numbers = #tpu.dot_dimension_numbers<[2], [2], [1], [1], [0, 0, 0, 1, 1, 1], [0], [0]>} : vector<2x8x16xf32>, vector<2x8x16xf32>, vector<2x8x8xf32> -> vector<2x8x8xf32>
    "tpu.trace_stop"() : () -> ()
    %cst_27 = arith.constant 2.500000e-01 : f32
    %66 = vector.broadcast %cst_27 : f32 to vector<2x8x8xf32>
    %67 = arith.mulf %65, %66 : vector<2x8x8xf32>
    %cst_28 = arith.constant dense<0xFF800000> : vector<2x8xf32>
    %68 = vector.multi_reduction <maximumf>, %67, %cst_28 [2] : vector<2x8x8xf32> to vector<2x8xf32>
    %69 = vector.shape_cast %68 : vector<2x8xf32> to vector<2x8x1xf32>
    %70 = vector.broadcast %69 : vector<2x8x1xf32> to vector<2x8x8xf32>
    %71 = arith.subf %67, %70 : vector<2x8x8xf32>
    %72 = math.exp %71 : vector<2x8x8xf32>
    %cst_29 = arith.constant dense<0.000000e+00> : vector<2x8xf32>
    %73 = vector.multi_reduction <add>, %72, %cst_29 [2] : vector<2x8x8xf32> to vector<2x8xf32>
    %74 = vector.shape_cast %73 : vector<2x8xf32> to vector<2x8x1xf32>
    %75 = tpu.reciprocal %74 {approx = true} : vector<2x8x1xf32> -> vector<2x8x1xf32>
    %76 = vector.broadcast %75 : vector<2x8x1xf32> to vector<2x8x8xf32>
    %77 = arith.mulf %72, %76 : vector<2x8x8xf32>
    "tpu.trace_start"() <{level = 10 : i32, message = "bqk,bkd->bqd"}> : () -> ()
    %cst_30 = arith.constant dense<0.000000e+00> : vector<2x8x16xf32>
    %78 = tpu.matmul %77, %64, %cst_30 {dimension_numbers = #tpu.dot_dimension_numbers<[2], [1], [1], [2], [0, 0, 0, 1, 1, 2], [0], [0]>} : vector<2x8x8xf32>, vector<2x8x16xf32>, vector<2x8x16xf32> -> vector<2x8x16xf32>
    "tpu.trace_stop"() : () -> ()
    %79 = vector.shape_cast %78 : vector<2x8x16xf32> to vector<16x16xf32>
    %80 = vector.extract_strided_slice %39 {offsets = [16, 0], sizes = [16, 32], strides = [1, 1]} : vector<32x32xf32> to vector<16x32xf32>
    %cst_31 = arith.constant dense<0.000000e+00> : vector<16x32xf32>
    %81 = tpu.matmul %79, %80, %cst_31 {dimension_numbers = #tpu.dot_dimension_numbers<[1], [0], [0], [1], [0, 0, 1, 1], [], []>} : vector<16x16xf32>, vector<16x32xf32>, vector<16x32xf32> -> vector<16x32xf32>
    %82 = arith.addf %61, %81 : vector<16x32xf32>
    %c0_32 = arith.constant 0 : index
    %c0_33 = arith.constant 0 : index
    %c0_34 = arith.constant 0 : index
    %83 = vector.load %arg6[%c0_32, %c0_33, %c0_34] : memref<2x1x32xf32, #tpu.memory_space<vmem>>, vector<1x1x32xf32>
    %84 = vector.shape_cast %83 : vector<1x1x32xf32> to vector<1x32xf32>
    %85 = vector.broadcast %84 : vector<1x32xf32> to vector<16x32xf32>
    %86 = arith.addf %82, %85 : vector<16x32xf32>
    %87 = arith.addf %24, %86 : vector<16x32xf32>
    %c0_35 = arith.constant 0 : index
    %c0_36 = arith.constant 0 : index
    %c0_37 = arith.constant 0 : index
    %88 = vector.load %arg7[%c0_35, %c0_36, %c0_37] : memref<2x1x32xf32, #tpu.memory_space<vmem>>, vector<1x1x32xf32>
    %89 = vector.shape_cast %88 : vector<1x1x32xf32> to vector<1x32xf32>
    %c0_38 = arith.constant 0 : index
    %c0_39 = arith.constant 0 : index
    %c0_40 = arith.constant 0 : index
    %90 = vector.load %arg8[%c0_38, %c0_39, %c0_40] : memref<2x1x32xf32, #tpu.memory_space<vmem>>, vector<1x1x32xf32>
    %91 = vector.shape_cast %90 : vector<1x1x32xf32> to vector<1x32xf32>
    %cst_41 = arith.constant dense<0.000000e+00> : vector<16xf32>
    %92 = vector.multi_reduction <add>, %87, %cst_41 [1] : vector<16x32xf32> to vector<16xf32>
    %93 = vector.shape_cast %92 : vector<16xf32> to vector<16x1xf32>
    %cst_42 = arith.constant 3.200000e+01 : f32
    %94 = vector.broadcast %cst_42 : f32 to vector<16x1xf32>
    %95 = arith.divf %93, %94 : vector<16x1xf32>
    %96 = vector.broadcast %95 : vector<16x1xf32> to vector<16x32xf32>
    %97 = arith.subf %87, %96 : vector<16x32xf32>
    %98 = arith.mulf %97, %97 : vector<16x32xf32>
    %cst_43 = arith.constant dense<0.000000e+00> : vector<16xf32>
    %99 = vector.multi_reduction <add>, %98, %cst_43 [1] : vector<16x32xf32> to vector<16xf32>
    %100 = vector.shape_cast %99 : vector<16xf32> to vector<16x1xf32>
    %cst_44 = arith.constant 3.200000e+01 : f32
    %101 = vector.broadcast %cst_44 : f32 to vector<16x1xf32>
    %102 = arith.divf %100, %101 : vector<16x1xf32>
    %103 = vector.broadcast %95 : vector<16x1xf32> to vector<16x32xf32>
    %104 = arith.subf %87, %103 : vector<16x32xf32>
    %cst_45 = arith.constant 9.99999996E-13 : f32
    %105 = vector.broadcast %cst_45 : f32 to vector<16x1xf32>
    %106 = arith.addf %102, %105 : vector<16x1xf32>
    %107 = math.rsqrt %106 : vector<16x1xf32>
    %108 = vector.broadcast %107 : vector<16x1xf32> to vector<16x32xf32>
    %109 = arith.mulf %104, %108 : vector<16x32xf32>
    %110 = vector.broadcast %89 : vector<1x32xf32> to vector<16x32xf32>
    %111 = arith.mulf %109, %110 : vector<16x32xf32>
    %112 = vector.broadcast %91 : vector<1x32xf32> to vector<16x32xf32>
    %113 = arith.addf %111, %112 : vector<16x32xf32>
    %c0_46 = arith.constant 0 : index
    %c0_47 = arith.constant 0 : index
    %c0_48 = arith.constant 0 : index
    %114 = vector.load %arg9[%c0_46, %c0_47, %c0_48] : memref<2x32x64xf32, #tpu.memory_space<vmem>>, vector<1x32x64xf32>
    %115 = vector.shape_cast %114 : vector<1x32x64xf32> to vector<32x64xf32>
    %cst_49 = arith.constant dense<0.000000e+00> : vector<16x64xf32>
    %116 = tpu.matmul %113, %115, %cst_49 {dimension_numbers = #tpu.dot_dimension_numbers<[1], [0], [0], [1], [0, 0, 1, 1], [], []>} : vector<16x32xf32>, vector<32x64xf32>, vector<16x64xf32> -> vector<16x64xf32>
    %c0_50 = arith.constant 0 : index
    %c0_51 = arith.constant 0 : index
    %c0_52 = arith.constant 0 : index
    %117 = vector.load %arg10[%c0_50, %c0_51, %c0_52] : memref<2x1x64xf32, #tpu.memory_space<vmem>>, vector<1x1x64xf32>
    %118 = vector.shape_cast %117 : vector<1x1x64xf32> to vector<1x64xf32>
    %119 = vector.broadcast %118 : vector<1x64xf32> to vector<16x64xf32>
    %120 = arith.addf %116, %119 : vector<16x64xf32>
    %cst_53 = arith.constant 5.000000e-01 : f32
    %121 = vector.broadcast %cst_53 : f32 to vector<16x64xf32>
    %122 = arith.mulf %121, %120 : vector<16x64xf32>
    %cst_54 = arith.constant 4.471500e-02 : f32
    %123 = vector.broadcast %cst_54 : f32 to vector<16x64xf32>
    %124 = arith.mulf %123, %120 : vector<16x64xf32>
    %125 = arith.mulf %124, %120 : vector<16x64xf32>
    %126 = arith.mulf %125, %120 : vector<16x64xf32>
    %127 = arith.addf %120, %126 : vector<16x64xf32>
    %cst_55 = arith.constant 0.797884583 : f32
    %128 = vector.broadcast %cst_55 : f32 to vector<16x64xf32>
    %129 = arith.mulf %128, %127 : vector<16x64xf32>
    %130 = math.tanh %129 : vector<16x64xf32>
    %cst_56 = arith.constant 1.000000e+00 : f32
    %131 = vector.broadcast %cst_56 : f32 to vector<16x64xf32>
    %132 = arith.addf %131, %130 : vector<16x64xf32>
    %133 = arith.mulf %122, %132 : vector<16x64xf32>
    %c0_57 = arith.constant 0 : index
    %c0_58 = arith.constant 0 : index
    %c0_59 = arith.constant 0 : index
    %134 = vector.load %arg11[%c0_57, %c0_58, %c0_59] : memref<2x64x32xf32, #tpu.memory_space<vmem>>, vector<1x64x32xf32>
    %135 = vector.shape_cast %134 : vector<1x64x32xf32> to vector<64x32xf32>
    %cst_60 = arith.constant dense<0.000000e+00> : vector<16x32xf32>
    %136 = tpu.matmul %133, %135, %cst_60 {dimension_numbers = #tpu.dot_dimension_numbers<[1], [0], [0], [1], [0, 0, 1, 1], [], []>} : vector<16x64xf32>, vector<64x32xf32>, vector<16x32xf32> -> vector<16x32xf32>
    %c0_61 = arith.constant 0 : index
    %c0_62 = arith.constant 0 : index
    %c0_63 = arith.constant 0 : index
    %137 = vector.load %arg12[%c0_61, %c0_62, %c0_63] : memref<2x1x32xf32, #tpu.memory_space<vmem>>, vector<1x1x32xf32>
    %138 = vector.shape_cast %137 : vector<1x1x32xf32> to vector<1x32xf32>
    %139 = vector.broadcast %138 : vector<1x32xf32> to vector<16x32xf32>
    %140 = arith.addf %136, %139 : vector<16x32xf32>
    %141 = arith.addf %113, %140 : vector<16x32xf32>
    %c0_64 = arith.constant 0 : index
    %c0_65 = arith.constant 0 : index
    %c0_66 = arith.constant 0 : index
    %142 = vector.load %arg13[%c0_64, %c0_65, %c0_66] : memref<2x1x32xf32, #tpu.memory_space<vmem>>, vector<1x1x32xf32>
    %143 = vector.shape_cast %142 : vector<1x1x32xf32> to vector<1x32xf32>
    %c0_67 = arith.constant 0 : index
    %c0_68 = arith.constant 0 : index
    %c0_69 = arith.constant 0 : index
    %144 = vector.load %arg14[%c0_67, %c0_68, %c0_69] : memref<2x1x32xf32, #tpu.memory_space<vmem>>, vector<1x1x32xf32>
    %145 = vector.shape_cast %144 : vector<1x1x32xf32> to vector<1x32xf32>
    %cst_70 = arith.constant dense<0.000000e+00> : vector<16xf32>
    %146 = vector.multi_reduction <add>, %141, %cst_70 [1] : vector<16x32xf32> to vector<16xf32>
    %147 = vector.shape_cast %146 : vector<16xf32> to vector<16x1xf32>
    %cst_71 = arith.constant 3.200000e+01 : f32
    %148 = vector.broadcast %cst_71 : f32 to vector<16x1xf32>
    %149 = arith.divf %147, %148 : vector<16x1xf32>
    %150 = vector.broadcast %149 : vector<16x1xf32> to vector<16x32xf32>
    %151 = arith.subf %141, %150 : vector<16x32xf32>
    %152 = arith.mulf %151, %151 : vector<16x32xf32>
    %cst_72 = arith.constant dense<0.000000e+00> : vector<16xf32>
    %153 = vector.multi_reduction <add>, %152, %cst_72 [1] : vector<16x32xf32> to vector<16xf32>
    %154 = vector.shape_cast %153 : vector<16xf32> to vector<16x1xf32>
    %cst_73 = arith.constant 3.200000e+01 : f32
    %155 = vector.broadcast %cst_73 : f32 to vector<16x1xf32>
    %156 = arith.divf %154, %155 : vector<16x1xf32>
    %157 = vector.broadcast %149 : vector<16x1xf32> to vector<16x32xf32>
    %158 = arith.subf %141, %157 : vector<16x32xf32>
    %cst_74 = arith.constant 9.99999996E-13 : f32
    %159 = vector.broadcast %cst_74 : f32 to vector<16x1xf32>
    %160 = arith.addf %156, %159 : vector<16x1xf32>
    %161 = math.rsqrt %160 : vector<16x1xf32>
    %162 = vector.broadcast %161 : vector<16x1xf32> to vector<16x32xf32>
    %163 = arith.mulf %158, %162 : vector<16x32xf32>
    %164 = vector.broadcast %143 : vector<1x32xf32> to vector<16x32xf32>
    %165 = arith.mulf %163, %164 : vector<16x32xf32>
    %166 = vector.broadcast %145 : vector<1x32xf32> to vector<16x32xf32>
    %167 = arith.addf %165, %166 : vector<16x32xf32>
    %c1 = arith.constant 1 : index
    %c0_75 = arith.constant 0 : index
    %c0_76 = arith.constant 0 : index
    %168 = vector.load %arg3[%c1, %c0_75, %c0_76] : memref<2x32x96xf32, #tpu.memory_space<vmem>>, vector<1x32x96xf32>
    %169 = vector.shape_cast %168 : vector<1x32x96xf32> to vector<32x96xf32>
    %cst_77 = arith.constant dense<0.000000e+00> : vector<16x96xf32>
    %170 = tpu.matmul %167, %169, %cst_77 {dimension_numbers = #tpu.dot_dimension_numbers<[1], [0], [0], [1], [0, 0, 1, 1], [], []>} : vector<16x32xf32>, vector<32x96xf32>, vector<16x96xf32> -> vector<16x96xf32>
    %c1_78 = arith.constant 1 : index
    %c0_79 = arith.constant 0 : index
    %c0_80 = arith.constant 0 : index
    %171 = vector.load %arg4[%c1_78, %c0_79, %c0_80] : memref<2x1x96xf32, #tpu.memory_space<vmem>>, vector<1x1x96xf32>
    %172 = vector.shape_cast %171 : vector<1x1x96xf32> to vector<1x96xf32>
    %173 = vector.broadcast %172 : vector<1x96xf32> to vector<16x96xf32>
    %174 = arith.addf %170, %173 : vector<16x96xf32>
    %175 = vector.extract_strided_slice %174 {offsets = [0, 0], sizes = [16, 32], strides = [1, 1]} : vector<16x96xf32> to vector<16x32xf32>
    %176 = vector.shape_cast %175 : vector<16x32xf32> to vector<2x8x32xf32>
    %177 = vector.extract_strided_slice %174 {offsets = [0, 32], sizes = [16, 32], strides = [1, 1]} : vector<16x96xf32> to vector<16x32xf32>
    %178 = vector.shape_cast %177 : vector<16x32xf32> to vector<2x8x32xf32>
    %179 = vector.extract_strided_slice %174 {offsets = [0, 64], sizes = [16, 32], strides = [1, 1]} : vector<16x96xf32> to vector<16x32xf32>
    %180 = vector.shape_cast %179 : vector<16x32xf32> to vector<2x8x32xf32>
    %c1_81 = arith.constant 1 : index
    %c0_82 = arith.constant 0 : index
    %c0_83 = arith.constant 0 : index
    %181 = vector.load %arg5[%c1_81, %c0_82, %c0_83] : memref<2x32x32xf32, #tpu.memory_space<vmem>>, vector<1x32x32xf32>
    %182 = vector.shape_cast %181 : vector<1x32x32xf32> to vector<32x32xf32>
    %cst_84 = arith.constant 0.000000e+00 : f32
    %183 = vector.broadcast %cst_84 : f32 to vector<16x32xf32>
    %184 = vector.extract_strided_slice %176 {offsets = [0, 0, 0], sizes = [2, 8, 16], strides = [1, 1, 1]} : vector<2x8x32xf32> to vector<2x8x16xf32>
    %185 = vector.extract_strided_slice %178 {offsets = [0, 0, 0], sizes = [2, 8, 16], strides = [1, 1, 1]} : vector<2x8x32xf32> to vector<2x8x16xf32>
    %186 = vector.extract_strided_slice %180 {offsets = [0, 0, 0], sizes = [2, 8, 16], strides = [1, 1, 1]} : vector<2x8x32xf32> to vector<2x8x16xf32>
    "tpu.trace_start"() <{level = 10 : i32, message = "bqd,bkd->bqk"}> : () -> ()
    %cst_85 = arith.constant dense<0.000000e+00> : vector<2x8x8xf32>
    %187 = tpu.matmul %184, %185, %cst_85 {dimension_numbers = #tpu.dot_dimension_numbers<[2], [2], [1], [1], [0, 0, 0, 1, 1, 1], [0], [0]>} : vector<2x8x16xf32>, vector<2x8x16xf32>, vector<2x8x8xf32> -> vector<2x8x8xf32>
    "tpu.trace_stop"() : () -> ()
    %cst_86 = arith.constant 2.500000e-01 : f32
    %188 = vector.broadcast %cst_86 : f32 to vector<2x8x8xf32>
    %189 = arith.mulf %187, %188 : vector<2x8x8xf32>
    %cst_87 = arith.constant dense<0xFF800000> : vector<2x8xf32>
    %190 = vector.multi_reduction <maximumf>, %189, %cst_87 [2] : vector<2x8x8xf32> to vector<2x8xf32>
    %191 = vector.shape_cast %190 : vector<2x8xf32> to vector<2x8x1xf32>
    %192 = vector.broadcast %191 : vector<2x8x1xf32> to vector<2x8x8xf32>
    %193 = arith.subf %189, %192 : vector<2x8x8xf32>
    %194 = math.exp %193 : vector<2x8x8xf32>
    %cst_88 = arith.constant dense<0.000000e+00> : vector<2x8xf32>
    %195 = vector.multi_reduction <add>, %194, %cst_88 [2] : vector<2x8x8xf32> to vector<2x8xf32>
    %196 = vector.shape_cast %195 : vector<2x8xf32> to vector<2x8x1xf32>
    %197 = tpu.reciprocal %196 {approx = true} : vector<2x8x1xf32> -> vector<2x8x1xf32>
    %198 = vector.broadcast %197 : vector<2x8x1xf32> to vector<2x8x8xf32>
    %199 = arith.mulf %194, %198 : vector<2x8x8xf32>
    "tpu.trace_start"() <{level = 10 : i32, message = "bqk,bkd->bqd"}> : () -> ()
    %cst_89 = arith.constant dense<0.000000e+00> : vector<2x8x16xf32>
    %200 = tpu.matmul %199, %186, %cst_89 {dimension_numbers = #tpu.dot_dimension_numbers<[2], [1], [1], [2], [0, 0, 0, 1, 1, 2], [0], [0]>} : vector<2x8x8xf32>, vector<2x8x16xf32>, vector<2x8x16xf32> -> vector<2x8x16xf32>
    "tpu.trace_stop"() : () -> ()
    %201 = vector.shape_cast %200 : vector<2x8x16xf32> to vector<16x16xf32>
    %202 = vector.extract_strided_slice %182 {offsets = [0, 0], sizes = [16, 32], strides = [1, 1]} : vector<32x32xf32> to vector<16x32xf32>
    %cst_90 = arith.constant dense<0.000000e+00> : vector<16x32xf32>
    %203 = tpu.matmul %201, %202, %cst_90 {dimension_numbers = #tpu.dot_dimension_numbers<[1], [0], [0], [1], [0, 0, 1, 1], [], []>} : vector<16x16xf32>, vector<16x32xf32>, vector<16x32xf32> -> vector<16x32xf32>
    %204 = arith.addf %183, %203 : vector<16x32xf32>
    %205 = vector.extract_strided_slice %176 {offsets = [0, 0, 16], sizes = [2, 8, 16], strides = [1, 1, 1]} : vector<2x8x32xf32> to vector<2x8x16xf32>
    %206 = vector.extract_strided_slice %178 {offsets = [0, 0, 16], sizes = [2, 8, 16], strides = [1, 1, 1]} : vector<2x8x32xf32> to vector<2x8x16xf32>
    %207 = vector.extract_strided_slice %180 {offsets = [0, 0, 16], sizes = [2, 8, 16], strides = [1, 1, 1]} : vector<2x8x32xf32> to vector<2x8x16xf32>
    "tpu.trace_start"() <{level = 10 : i32, message = "bqd,bkd->bqk"}> : () -> ()
    %cst_91 = arith.constant dense<0.000000e+00> : vector<2x8x8xf32>
    %208 = tpu.matmul %205, %206, %cst_91 {dimension_numbers = #tpu.dot_dimension_numbers<[2], [2], [1], [1], [0, 0, 0, 1, 1, 1], [0], [0]>} : vector<2x8x16xf32>, vector<2x8x16xf32>, vector<2x8x8xf32> -> vector<2x8x8xf32>
    "tpu.trace_stop"() : () -> ()
    %cst_92 = arith.constant 2.500000e-01 : f32
    %209 = vector.broadcast %cst_92 : f32 to vector<2x8x8xf32>
    %210 = arith.mulf %208, %209 : vector<2x8x8xf32>
    %cst_93 = arith.constant dense<0xFF800000> : vector<2x8xf32>
    %211 = vector.multi_reduction <maximumf>, %210, %cst_93 [2] : vector<2x8x8xf32> to vector<2x8xf32>
    %212 = vector.shape_cast %211 : vector<2x8xf32> to vector<2x8x1xf32>
    %213 = vector.broadcast %212 : vector<2x8x1xf32> to vector<2x8x8xf32>
    %214 = arith.subf %210, %213 : vector<2x8x8xf32>
    %215 = math.exp %214 : vector<2x8x8xf32>
    %cst_94 = arith.constant dense<0.000000e+00> : vector<2x8xf32>
    %216 = vector.multi_reduction <add>, %215, %cst_94 [2] : vector<2x8x8xf32> to vector<2x8xf32>
    %217 = vector.shape_cast %216 : vector<2x8xf32> to vector<2x8x1xf32>
    %218 = tpu.reciprocal %217 {approx = true} : vector<2x8x1xf32> -> vector<2x8x1xf32>
    %219 = vector.broadcast %218 : vector<2x8x1xf32> to vector<2x8x8xf32>
    %220 = arith.mulf %215, %219 : vector<2x8x8xf32>
    "tpu.trace_start"() <{level = 10 : i32, message = "bqk,bkd->bqd"}> : () -> ()
    %cst_95 = arith.constant dense<0.000000e+00> : vector<2x8x16xf32>
    %221 = tpu.matmul %220, %207, %cst_95 {dimension_numbers = #tpu.dot_dimension_numbers<[2], [1], [1], [2], [0, 0, 0, 1, 1, 2], [0], [0]>} : vector<2x8x8xf32>, vector<2x8x16xf32>, vector<2x8x16xf32> -> vector<2x8x16xf32>
    "tpu.trace_stop"() : () -> ()
    %222 = vector.shape_cast %221 : vector<2x8x16xf32> to vector<16x16xf32>
    %223 = vector.extract_strided_slice %182 {offsets = [16, 0], sizes = [16, 32], strides = [1, 1]} : vector<32x32xf32> to vector<16x32xf32>
    %cst_96 = arith.constant dense<0.000000e+00> : vector<16x32xf32>
    %224 = tpu.matmul %222, %223, %cst_96 {dimension_numbers = #tpu.dot_dimension_numbers<[1], [0], [0], [1], [0, 0, 1, 1], [], []>} : vector<16x16xf32>, vector<16x32xf32>, vector<16x32xf32> -> vector<16x32xf32>
    %225 = arith.addf %204, %224 : vector<16x32xf32>
    %c1_97 = arith.constant 1 : index
    %c0_98 = arith.constant 0 : index
    %c0_99 = arith.constant 0 : index
    %226 = vector.load %arg6[%c1_97, %c0_98, %c0_99] : memref<2x1x32xf32, #tpu.memory_space<vmem>>, vector<1x1x32xf32>
    %227 = vector.shape_cast %226 : vector<1x1x32xf32> to vector<1x32xf32>
    %228 = vector.broadcast %227 : vector<1x32xf32> to vector<16x32xf32>
    %229 = arith.addf %225, %228 : vector<16x32xf32>
    %230 = arith.addf %167, %229 : vector<16x32xf32>
    %c1_100 = arith.constant 1 : index
    %c0_101 = arith.constant 0 : index
    %c0_102 = arith.constant 0 : index
    %231 = vector.load %arg7[%c1_100, %c0_101, %c0_102] : memref<2x1x32xf32, #tpu.memory_space<vmem>>, vector<1x1x32xf32>
    %232 = vector.shape_cast %231 : vector<1x1x32xf32> to vector<1x32xf32>
    %c1_103 = arith.constant 1 : index
    %c0_104 = arith.constant 0 : index
    %c0_105 = arith.constant 0 : index
    %233 = vector.load %arg8[%c1_103, %c0_104, %c0_105] : memref<2x1x32xf32, #tpu.memory_space<vmem>>, vector<1x1x32xf32>
    %234 = vector.shape_cast %233 : vector<1x1x32xf32> to vector<1x32xf32>
    %cst_106 = arith.constant dense<0.000000e+00> : vector<16xf32>
    %235 = vector.multi_reduction <add>, %230, %cst_106 [1] : vector<16x32xf32> to vector<16xf32>
    %236 = vector.shape_cast %235 : vector<16xf32> to vector<16x1xf32>
    %cst_107 = arith.constant 3.200000e+01 : f32
    %237 = vector.broadcast %cst_107 : f32 to vector<16x1xf32>
    %238 = arith.divf %236, %237 : vector<16x1xf32>
    %239 = vector.broadcast %238 : vector<16x1xf32> to vector<16x32xf32>
    %240 = arith.subf %230, %239 : vector<16x32xf32>
    %241 = arith.mulf %240, %240 : vector<16x32xf32>
    %cst_108 = arith.constant dense<0.000000e+00> : vector<16xf32>
    %242 = vector.multi_reduction <add>, %241, %cst_108 [1] : vector<16x32xf32> to vector<16xf32>
    %243 = vector.shape_cast %242 : vector<16xf32> to vector<16x1xf32>
    %cst_109 = arith.constant 3.200000e+01 : f32
    %244 = vector.broadcast %cst_109 : f32 to vector<16x1xf32>
    %245 = arith.divf %243, %244 : vector<16x1xf32>
    %246 = vector.broadcast %238 : vector<16x1xf32> to vector<16x32xf32>
    %247 = arith.subf %230, %246 : vector<16x32xf32>
    %cst_110 = arith.constant 9.99999996E-13 : f32
    %248 = vector.broadcast %cst_110 : f32 to vector<16x1xf32>
    %249 = arith.addf %245, %248 : vector<16x1xf32>
    %250 = math.rsqrt %249 : vector<16x1xf32>
    %251 = vector.broadcast %250 : vector<16x1xf32> to vector<16x32xf32>
    %252 = arith.mulf %247, %251 : vector<16x32xf32>
    %253 = vector.broadcast %232 : vector<1x32xf32> to vector<16x32xf32>
    %254 = arith.mulf %252, %253 : vector<16x32xf32>
    %255 = vector.broadcast %234 : vector<1x32xf32> to vector<16x32xf32>
    %256 = arith.addf %254, %255 : vector<16x32xf32>
    %c1_111 = arith.constant 1 : index
    %c0_112 = arith.constant 0 : index
    %c0_113 = arith.constant 0 : index
    %257 = vector.load %arg9[%c1_111, %c0_112, %c0_113] : memref<2x32x64xf32, #tpu.memory_space<vmem>>, vector<1x32x64xf32>
    %258 = vector.shape_cast %257 : vector<1x32x64xf32> to vector<32x64xf32>
    %cst_114 = arith.constant dense<0.000000e+00> : vector<16x64xf32>
    %259 = tpu.matmul %256, %258, %cst_114 {dimension_numbers = #tpu.dot_dimension_numbers<[1], [0], [0], [1], [0, 0, 1, 1], [], []>} : vector<16x32xf32>, vector<32x64xf32>, vector<16x64xf32> -> vector<16x64xf32>
    %c1_115 = arith.constant 1 : index
    %c0_116 = arith.constant 0 : index
    %c0_117 = arith.constant 0 : index
    %260 = vector.load %arg10[%c1_115, %c0_116, %c0_117] : memref<2x1x64xf32, #tpu.memory_space<vmem>>, vector<1x1x64xf32>
    %261 = vector.shape_cast %260 : vector<1x1x64xf32> to vector<1x64xf32>
    %262 = vector.broadcast %261 : vector<1x64xf32> to vector<16x64xf32>
    %263 = arith.addf %259, %262 : vector<16x64xf32>
    %cst_118 = arith.constant 5.000000e-01 : f32
    %264 = vector.broadcast %cst_118 : f32 to vector<16x64xf32>
    %265 = arith.mulf %264, %263 : vector<16x64xf32>
    %cst_119 = arith.constant 4.471500e-02 : f32
    %266 = vector.broadcast %cst_119 : f32 to vector<16x64xf32>
    %267 = arith.mulf %266, %263 : vector<16x64xf32>
    %268 = arith.mulf %267, %263 : vector<16x64xf32>
    %269 = arith.mulf %268, %263 : vector<16x64xf32>
    %270 = arith.addf %263, %269 : vector<16x64xf32>
    %cst_120 = arith.constant 0.797884583 : f32
    %271 = vector.broadcast %cst_120 : f32 to vector<16x64xf32>
    %272 = arith.mulf %271, %270 : vector<16x64xf32>
    %273 = math.tanh %272 : vector<16x64xf32>
    %cst_121 = arith.constant 1.000000e+00 : f32
    %274 = vector.broadcast %cst_121 : f32 to vector<16x64xf32>
    %275 = arith.addf %274, %273 : vector<16x64xf32>
    %276 = arith.mulf %265, %275 : vector<16x64xf32>
    %c1_122 = arith.constant 1 : index
    %c0_123 = arith.constant 0 : index
    %c0_124 = arith.constant 0 : index
    %277 = vector.load %arg11[%c1_122, %c0_123, %c0_124] : memref<2x64x32xf32, #tpu.memory_space<vmem>>, vector<1x64x32xf32>
    %278 = vector.shape_cast %277 : vector<1x64x32xf32> to vector<64x32xf32>
    %cst_125 = arith.constant dense<0.000000e+00> : vector<16x32xf32>
    %279 = tpu.matmul %276, %278, %cst_125 {dimension_numbers = #tpu.dot_dimension_numbers<[1], [0], [0], [1], [0, 0, 1, 1], [], []>} : vector<16x64xf32>, vector<64x32xf32>, vector<16x32xf32> -> vector<16x32xf32>
    %c1_126 = arith.constant 1 : index
    %c0_127 = arith.constant 0 : index
    %c0_128 = arith.constant 0 : index
    %280 = vector.load %arg12[%c1_126, %c0_127, %c0_128] : memref<2x1x32xf32, #tpu.memory_space<vmem>>, vector<1x1x32xf32>
    %281 = vector.shape_cast %280 : vector<1x1x32xf32> to vector<1x32xf32>
    %282 = vector.broadcast %281 : vector<1x32xf32> to vector<16x32xf32>
    %283 = arith.addf %279, %282 : vector<16x32xf32>
    %284 = arith.addf %256, %283 : vector<16x32xf32>
    %c1_129 = arith.constant 1 : index
    %c0_130 = arith.constant 0 : index
    %c0_131 = arith.constant 0 : index
    %285 = vector.load %arg13[%c1_129, %c0_130, %c0_131] : memref<2x1x32xf32, #tpu.memory_space<vmem>>, vector<1x1x32xf32>
    %286 = vector.shape_cast %285 : vector<1x1x32xf32> to vector<1x32xf32>
    %c1_132 = arith.constant 1 : index
    %c0_133 = arith.constant 0 : index
    %c0_134 = arith.constant 0 : index
    %287 = vector.load %arg14[%c1_132, %c0_133, %c0_134] : memref<2x1x32xf32, #tpu.memory_space<vmem>>, vector<1x1x32xf32>
    %288 = vector.shape_cast %287 : vector<1x1x32xf32> to vector<1x32xf32>
    %cst_135 = arith.constant dense<0.000000e+00> : vector<16xf32>
    %289 = vector.multi_reduction <add>, %284, %cst_135 [1] : vector<16x32xf32> to vector<16xf32>
    %290 = vector.shape_cast %289 : vector<16xf32> to vector<16x1xf32>
    %cst_136 = arith.constant 3.200000e+01 : f32
    %291 = vector.broadcast %cst_136 : f32 to vector<16x1xf32>
    %292 = arith.divf %290, %291 : vector<16x1xf32>
    %293 = vector.broadcast %292 : vector<16x1xf32> to vector<16x32xf32>
    %294 = arith.subf %284, %293 : vector<16x32xf32>
    %295 = arith.mulf %294, %294 : vector<16x32xf32>
    %cst_137 = arith.constant dense<0.000000e+00> : vector<16xf32>
    %296 = vector.multi_reduction <add>, %295, %cst_137 [1] : vector<16x32xf32> to vector<16xf32>
    %297 = vector.shape_cast %296 : vector<16xf32> to vector<16x1xf32>
    %cst_138 = arith.constant 3.200000e+01 : f32
    %298 = vector.broadcast %cst_138 : f32 to vector<16x1xf32>
    %299 = arith.divf %297, %298 : vector<16x1xf32>
    %300 = vector.broadcast %292 : vector<16x1xf32> to vector<16x32xf32>
    %301 = arith.subf %284, %300 : vector<16x32xf32>
    %cst_139 = arith.constant 9.99999996E-13 : f32
    %302 = vector.broadcast %cst_139 : f32 to vector<16x1xf32>
    %303 = arith.addf %299, %302 : vector<16x1xf32>
    %304 = math.rsqrt %303 : vector<16x1xf32>
    %305 = vector.broadcast %304 : vector<16x1xf32> to vector<16x32xf32>
    %306 = arith.mulf %301, %305 : vector<16x32xf32>
    %307 = vector.broadcast %286 : vector<1x32xf32> to vector<16x32xf32>
    %308 = arith.mulf %306, %307 : vector<16x32xf32>
    %309 = vector.broadcast %288 : vector<1x32xf32> to vector<16x32xf32>
    %310 = arith.addf %308, %309 : vector<16x32xf32>
    %311 = vector.extract_strided_slice %310 {offsets = [0, 0], sizes = [1, 32], strides = [1, 1]} : vector<16x32xf32> to vector<1x32xf32>
    %312 = vector.extract_strided_slice %310 {offsets = [8, 0], sizes = [1, 32], strides = [1, 1]} : vector<16x32xf32> to vector<1x32xf32>
    %313 = tpu.concatenate %311, %312 in 0 : vector<1x32xf32>, vector<1x32xf32> -> vector<2x32xf32>
    %c0_140 = arith.constant 0 : index
    %c0_141 = arith.constant 0 : index
    %314 = vector.load %arg15[%c0_140, %c0_141] : memref<32x32xf32, #tpu.memory_space<vmem>>, vector<32x32xf32>
    %cst_142 = arith.constant dense<0.000000e+00> : vector<2x32xf32>
    %315 = tpu.matmul %313, %314, %cst_142 {dimension_numbers = #tpu.dot_dimension_numbers<[1], [0], [0], [1], [0, 0, 1, 1], [], []>} : vector<2x32xf32>, vector<32x32xf32>, vector<2x32xf32> -> vector<2x32xf32>
    %c0_143 = arith.constant 0 : index
    %c0_144 = arith.constant 0 : index
    %316 = vector.load %arg16[%c0_143, %c0_144] : memref<1x32xf32, #tpu.memory_space<vmem>>, vector<1x32xf32>
    %317 = vector.broadcast %316 : vector<1x32xf32> to vector<2x32xf32>
    %318 = arith.addf %315, %317 : vector<2x32xf32>
    %319 = math.tanh %318 : vector<2x32xf32>
    %c0_145 = arith.constant 0 : index
    %c0_146 = arith.constant 0 : index
    %320 = vector.load %arg17[%c0_145, %c0_146] : memref<32x3xf32, #tpu.memory_space<vmem>>, vector<32x3xf32>
    %cst_147 = arith.constant dense<0.000000e+00> : vector<2x3xf32>
    %321 = tpu.matmul %319, %320, %cst_147 {dimension_numbers = #tpu.dot_dimension_numbers<[1], [0], [0], [1], [0, 0, 1, 1], [], []>} : vector<2x32xf32>, vector<32x3xf32>, vector<2x3xf32> -> vector<2x3xf32>
    %c0_148 = arith.constant 0 : index
    %c0_149 = arith.constant 0 : index
    %322 = vector.load %arg18[%c0_148, %c0_149] : memref<1x3xf32, #tpu.memory_space<vmem>>, vector<1x3xf32>
    %323 = vector.broadcast %322 : vector<1x3xf32> to vector<2x3xf32>
    %324 = arith.addf %321, %323 : vector<2x3xf32>
    %c0_150 = arith.constant 0 : index
    %c0_151 = arith.constant 0 : index
    %325 = vector.load %arg19[%c0_150, %c0_151] : memref<2x3xf32, #tpu.memory_space<vmem>>, vector<2x3xf32>
    tpu.vector_store %arg19[%c0_150, %c0_151], %324 {strides = array<i32>} : memref<2x3xf32, #tpu.memory_space<vmem>>, vector<2x3xf32>,
    return
  }
}

</mosaic_0001>

<llo_original>
// kernel: bert_sa_forward.1
$region0: #{bert_sa_forward.1}
  #allocation0 [shape = 'u32[]', space=smem, size = 0x4, offset = 0x4, fixed_abs, tag = 'smem constant byte address 0x4 - core index']
  #allocation1 [shape = 'u32[144,128]{1,0:T(1,128)}', space=vmem, size = 0x12000, scoped, tag = 'internal scratch']
  %s0 = inlined_call_operand.vmem [shape: f32[16,32], index: 0, kind: input, shape index: {}]
  %s1 = inlined_call_operand.vmem [shape: f32[1,32], index: 1, kind: input, shape index: {}]
  %s2 = inlined_call_operand.vmem [shape: f32[1,32], index: 2, kind: input, shape index: {}]
  %s3 = inlined_call_operand.vmem [shape: f32[2,32,96], index: 3, kind: input, shape index: {}]
  %s4 = inlined_call_operand.vmem [shape: f32[2,1,96], index: 4, kind: input, shape index: {}]
  %s5 = inlined_call_operand.vmem [shape: f32[2,32,32], index: 5, kind: input, shape index: {}]
  %s6 = inlined_call_operand.vmem [shape: f32[2,1,32], index: 6, kind: input, shape index: {}]
  %s7 = inlined_call_operand.vmem [shape: f32[2,1,32], index: 7, kind: input, shape index: {}]
  %s8 = inlined_call_operand.vmem [shape: f32[2,1,32], index: 8, kind: input, shape index: {}]
  %s9 = inlined_call_operand.vmem [shape: f32[2,32,64], index: 9, kind: input, shape index: {}]
  %s10 = inlined_call_operand.vmem [shape: f32[2,1,64], index: 10, kind: input, shape index: {}]
  %s11 = inlined_call_operand.vmem [shape: f32[2,64,32], index: 11, kind: input, shape index: {}]
  %s12 = inlined_call_operand.vmem [shape: f32[2,1,32], index: 12, kind: input, shape index: {}]
  %s13 = inlined_call_operand.vmem [shape: f32[2,1,32], index: 13, kind: input, shape index: {}]
  %s14 = inlined_call_operand.vmem [shape: f32[2,1,32], index: 14, kind: input, shape index: {}]
  %s15 = inlined_call_operand.vmem [shape: f32[32,32], index: 15, kind: input, shape index: {}]
  %s16 = inlined_call_operand.vmem [shape: f32[1,32], index: 16, kind: input, shape index: {}]
  %s17 = inlined_call_operand.vmem [shape: f32[32,3], index: 17, kind: input, shape index: {}]
  %s18 = inlined_call_operand.vmem [shape: f32[1,3], index: 18, kind: input, shape index: {}]
  %s19 = inlined_call_operand.hbm [shape: f32[2,3], index: 19, kind: output, shape index: {}]
  %s20 = sld [smem:[#allocation0]]
  $region86: #{bert_sa_forward.1} parent=0
    _
  %s22 = ssub.s32 1, %s20
  %s23 = scalar_select 0, %s22, %s20
  $region1: #{bert_sa_forward.1} parent=0
    #allocation2 [shape = 'u8[1024]{0}', space=vmem, size = 0x400, scoped, tag = 'output window, operand 0, single buffered']
    #allocation3 [shape = 's32[1]{0}', space=sflag, size = 0x4, scoped, tag = 'scoped memory for bert_sa_forward.1']
    %24 = vsyncpa [#allocation3], 0
    // Predicated region
    $region2: #{bert_sa_forward.1} parent=1 // pred_check
      _
    $region3: #{bert_sa_forward.1} parent=1 // pred_check_branch
      %26 = sbr.rel (0) target = $region5
    $region4: #{bert_sa_forward.1} parent=1 // pred_region
      _
    $region5: #{bert_sa_forward.1} parent=1 // pred_fallthru
      _
    // Predicated region
    $region6: #{bert_sa_forward.1} parent=1 // pred_check
      _
    $region7: #{bert_sa_forward.1} parent=1 // pred_check_branch
      %28 = sbr.rel (0) target = $region9
    $region8: #{bert_sa_forward.1} parent=1 // pred_region
      _
    $region9: #{bert_sa_forward.1} parent=1 // pred_fallthru
      _
    // Predicated region
    $region10: #{bert_sa_forward.1} parent=1 // pred_check
      _
    $region11: #{bert_sa_forward.1} parent=1 // pred_check_branch
      %30 = sbr.rel (0) target = $region13
    $region12: #{bert_sa_forward.1} parent=1 // pred_region
      _
    $region13: #{bert_sa_forward.1} parent=1 // pred_fallthru
      _
    // Predicated region
    $region14: #{bert_sa_forward.1} parent=1 // pred_check
      _
    $region15: #{bert_sa_forward.1} parent=1 // pred_check_branch
      %32 = sbr.rel (0) target = $region17
    $region16: #{bert_sa_forward.1} parent=1 // pred_region
      _
    $region17: #{bert_sa_forward.1} parent=1 // pred_fallthru
      _
    // Predicated region
    $region18: #{bert_sa_forward.1} parent=1 // pred_check
      _
    $region19: #{bert_sa_forward.1} parent=1 // pred_check_branch
      %34 = sbr.rel (0) target = $region21
    $region20: #{bert_sa_forward.1} parent=1 // pred_region
      _
    $region21: #{bert_sa_forward.1} parent=1 // pred_fallthru
      _
    // Predicated region
    $region22: #{bert_sa_forward.1} parent=1 // pred_check
      _
    $region23: #{bert_sa_forward.1} parent=1 // pred_check_branch
      %36 = sbr.rel (0) target = $region25
    $region24: #{bert_sa_forward.1} parent=1 // pred_region
      _
    $region25: #{bert_sa_forward.1} parent=1 // pred_fallthru
      _
    // Predicated region
    $region26: #{bert_sa_forward.1} parent=1 // pred_check
      _
    $region27: #{bert_sa_forward.1} parent=1 // pred_check_branch
      %38 = sbr.rel (0) target = $region29
    $region28: #{bert_sa_forward.1} parent=1 // pred_region
      _
    $region29: #{bert_sa_forward.1} parent=1 // pred_fallthru
      _
    // Predicated region
    $region30: #{bert_sa_forward.1} parent=1 // pred_check
      _
    $region31: #{bert_sa_forward.1} parent=1 // pred_check_branch
      %40 = sbr.rel (0) target = $region33
    $region32: #{bert_sa_forward.1} parent=1 // pred_region
      _
    $region33: #{bert_sa_forward.1} parent=1 // pred_fallthru
      _
    // Predicated region
    $region34: #{bert_sa_forward.1} parent=1 // pred_check
      _
    $region35: #{bert_sa_forward.1} parent=1 // pred_check_branch
      %42 = sbr.rel (0) target = $region37
    $region36: #{bert_sa_forward.1} parent=1 // pred_region
      _
    $region37: #{bert_sa_forward.1} parent=1 // pred_fallthru
      _
    // Predicated region
    $region38: #{bert_sa_forward.1} parent=1 // pred_check
      _
    $region39: #{bert_sa_forward.1} parent=1 // pred_check_branch
      %44 = sbr.rel (0) target = $region41
    $region40: #{bert_sa_forward.1} parent=1 // pred_region
      _
    $region41: #{bert_sa_forward.1} parent=1 // pred_fallthru
      _
    // Predicated region
    $region42: #{bert_sa_forward.1} parent=1 // pred_check
      _
    $region43: #{bert_sa_forward.1} parent=1 // pred_check_branch
      %46 = sbr.rel (0) target = $region45
    $region44: #{bert_sa_forward.1} parent=1 // pred_region
      _
    $region45: #{bert_sa_forward.1} parent=1 // pred_fallthru
      _
    // Predicated region
    $region46: #{bert_sa_forward.1} parent=1 // pred_check
      _
    $region47: #{bert_sa_forward.1} parent=1 // pred_check_branch
      %48 = sbr.rel (0) target = $region49
    $region48: #{bert_sa_forward.1} parent=1 // pred_region
      _
    $region49: #{bert_sa_forward.1} parent=1 // pred_fallthru
      _
    // Predicated region
    $region50: #{bert_sa_forward.1} parent=1 // pred_check
      _
    $region51: #{bert_sa_forward.1} parent=1 // pred_check_branch
      %50 = sbr.rel (0) target = $region53
    $region52: #{bert_sa_forward.1} parent=1 // pred_region
      _
    $region53: #{bert_sa_forward.1} parent=1 // pred_fallthru
      _
    // Predicated region
    $region54: #{bert_sa_forward.1} parent=1 // pred_check
      _
    $region55: #{bert_sa_forward.1} parent=1 // pred_check_branch
      %52 = sbr.rel (0) target = $region57
    $region56: #{bert_sa_forward.1} parent=1 // pred_region
      _
    $region57: #{bert_sa_forward.1} parent=1 // pred_fallthru
      _
    // Predicated region
    $region58: #{bert_sa_forward.1} parent=1 // pred_check
      _
    $region59: #{bert_sa_forward.1} parent=1 // pred_check_branch
      %54 = sbr.rel (0) target = $region61
    $region60: #{bert_sa_forward.1} parent=1 // pred_region
      _
    $region61: #{bert_sa_forward.1} parent=1 // pred_fallthru
      _
    // Predicated region
    $region62: #{bert_sa_forward.1} parent=1 // pred_check
      _
    $region63: #{bert_sa_forward.1} parent=1 // pred_check_branch
      %56 = sbr.rel (0) target = $region65
    $region64: #{bert_sa_forward.1} parent=1 // pred_region
      _
    $region65: #{bert_sa_forward.1} parent=1 // pred_fallthru
      _
    // Predicated region
    $region66: #{bert_sa_forward.1} parent=1 // pred_check
      _
    $region67: #{bert_sa_forward.1} parent=1 // pred_check_branch
      %58 = sbr.rel (0) target = $region69
    $region68: #{bert_sa_forward.1} parent=1 // pred_region
      _
    $region69: #{bert_sa_forward.1} parent=1 // pred_fallthru
      _
    // Predicated region
    $region70: #{bert_sa_forward.1} parent=1 // pred_check
      _
    $region71: #{bert_sa_forward.1} parent=1 // pred_check_branch
      %60 = sbr.rel (0) target = $region73
    $region72: #{bert_sa_forward.1} parent=1 // pred_region
      _
    $region73: #{bert_sa_forward.1} parent=1 // pred_fallthru
      _
    // Predicated region
    $region74: #{bert_sa_forward.1} parent=1 // pred_check
      _
    $region75: #{bert_sa_forward.1} parent=1 // pred_check_branch
      %62 = sbr.rel (0) target = $region77
    $region76: #{bert_sa_forward.1} parent=1 // pred_region
      _
    $region77: #{bert_sa_forward.1} parent=1 // pred_fallthru
      _
    %v63 = vld [vmem:[%s0] sm:$0xff]
    %v64 = vld [vmem:[%s0 + $0x8] sm:$0xff]
    %v65 = vld [vmem:[%s1] sm:$0x1]
    %v66 = vld [vmem:[%s2] sm:$0x1]
    %vm67 = vcmask 261120
    %v68 = vsel %vm67, %v63, 0.0
    %69 = vadd.xlane.f32.xlu0 %v68
    %v70 = vpop.xlane.xlu0 %69
    %v71 = vsel %vm67, %v64, 0.0
    %72 = vadd.xlane.f32.xlu0 %v71
    %v73 = vpop.xlane.xlu0 %72
    %v74 = vrcp.pop 32.0
    %v75 = vmul.f32 %v70, %v74
    %v76 = vmul.f32 %v73, %v74
    %v77 = vsub.f32 %v63, %v75
    %v78 = vsub.f32 %v64, %v76
    %v79 = vmul.f32 %v77, %v77
    %v80 = vmul.f32 %v78, %v78
    %v81 = vsel %vm67, %v79, 0.0
    %82 = vadd.xlane.f32.xlu0 %v81
    %v83 = vpop.xlane.xlu0 %82
    %v84 = vsel %vm67, %v80, 0.0
    %85 = vadd.xlane.f32.xlu0 %v84
    %v86 = vpop.xlane.xlu0 %85
    %v87 = vmul.f32 %v83, %v74
    %v88 = vmul.f32 %v86, %v74
    %v89 = vadd.f32 %v87, 1e-12
    %v90 = vadd.f32 %v88, 1e-12
    %v91 = vrsqrt.pop %v89
    %v92 = vrsqrt.pop %v90
    %v93 = vmul.f32 %v77, %v91
    %v94 = vmul.f32 %v78, %v92
    %v96 = vlaneseq
    %v97 = vshrl.u32 %v96, 7
    %v98 = vsub.s32 0, %v97
    %v99 = vrot.slane %v65, %v98
    %v101 = vmul.f32 %v93, %v99
    %v102 = vmul.f32 %v94, %v99
    %v104 = vlaneseq
    %v105 = vshrl.u32 %v104, 7
    %v106 = vsub.s32 0, %v105
    %v107 = vrot.slane %v66, %v106
    %v109 = vadd.f32 %v101, %v107
    %v110 = vadd.f32 %v102, %v107
    %v111 = vld [vmem:[%s3] sm:$0xff]
    %v112 = vld [vmem:[%s3 + $0x8] sm:$0xff]
    %v113 = vld [vmem:[%s3 + $0x10] sm:$0xff]
    %v114 = vld [vmem:[%s3 + $0x18] sm:$0xff]
    %v115 = vld [vmem:[%s4] sm:$0x1]
    %v117 = vlaneseq
    %v118 = vshrl.u32 %v117, 7
    %v119 = vsub.s32 0, %v118
    %v120 = vrot.slane %v115, %v119
    %v123 = vsel %vm67, %v109, 0
    %v126 = vsel %vm67, %v110, 0
    %128 = vmatprep.subr.mxu0 0.0
    %129 = vmatpush1.msra.mxu0 %v111
    %130 = vmatprep.subr.mxu0 0.0
    %131 = vmatpush1.msra.mxu0 %v112
    %132 = vmatprep.subr.mxu0 0.0
    %133 = vmatpush1.msra.mxu0 %v113
    %134 = vmatprep.subr.mxu0 0.0
    %135 = vmatpush1.msra.mxu0 %v114
    %136 = vmatprep.subr.mxu0 0.0
    %137 = vmatpush1.msra.mxu0 0.0
    %138 = vmatprep.subr.mxu0 0.0
    %139 = vmatpush1.msra.mxu0 0.0
    %140 = vmatprep.subr.mxu0 0.0
    %141 = vmatpush1.msra.mxu0 0.0
    %142 = vmatprep.subr.mxu0 0.0
    %143 = vmatpush1.msra.mxu0 0.0
    %144 = vmatprep.subr.mxu0 0.0
    %145 = vmatpush1.msra.mxu0 0.0
    %146 = vmatprep.subr.mxu0 0.0
    %147 = vmatpush1.msra.mxu0 0.0
    %148 = vmatprep.subr.mxu0 0.0
    %149 = vmatpush1.msra.mxu0 0.0
    %150 = vmatprep.subr.mxu0 0.0
    %151 = vmatpush1.msra.mxu0 0.0
    %152 = vmatprep.subr.mxu0 0.0
    %153 = vmatpush1.msra.mxu0 0.0
    %154 = vmatprep.subr.mxu0 0.0
    %155 = vmatpush1.msra.mxu0 0.0
    %156 = vmatprep.subr.mxu0 0.0
    %157 = vmatpush1.msra.mxu0 0.0
    %158 = vmatprep.subr.mxu0 0.0
    %159 = vmatpush1.msra.mxu0 0.0
    %160 = vmatprep.subr.mxu0 0.0
    %161 = vmatpush1.msra.mxu0 0.0
    %162 = vmatprep.subr.mxu0 0.0
    %163 = vmatpush1.msra.mxu0 0.0
    %164 = vmatprep.subr.mxu0 0.0
    %165 = vmatpush1.msra.mxu0 0.0
    %166 = vmatprep.subr.mxu0 0.0
    %167 = vmatpush1.msra.mxu0 0.0
    %168 = vmatprep.subr.mxu0 0.0
    %169 = vmatpush1.msra.mxu0 0.0
    %170 = vmatprep.subr.mxu0 0.0
    %171 = vmatpush1.msra.mxu0 0.0
    %172 = vmatprep.subr.mxu0 0.0
    %173 = vmatpush1.msra.mxu0 0.0
    %174 = vmatprep.subr.mxu0 0.0
    %175 = vmatpush1.msra.mxu0 0.0
    %176 = vmatprep.subr.mxu0 0.0
    %177 = vmatpush1.msra.mxu0 0.0
    %178 = vmatprep.subr.mxu0 0.0
    %179 = vmatpush1.msra.mxu0 0.0
    %180 = vmatprep.subr.mxu0 0.0
    %181 = vmatpush1.msra.mxu0 0.0
    %182 = vmatprep.subr.mxu0 0.0
    %183 = vmatpush1.msra.mxu0 0.0
    %184 = vmatprep.subr.mxu0 0.0
    %185 = vmatpush1.msra.mxu0 0.0
    %186 = vmatprep.subr.mxu0 0.0
    %187 = vmatpush1.msra.mxu0 0.0
    %188 = vmatprep.subr.mxu0 0.0
    %189 = vmatpush1.msra.mxu0 0.0
    %190 = vmatprep.subr.mxu0 0.0
    %191 = vmatpush1.msra.mxu0 0.0
    %192 = vmatprep.mubr.f32.mxu0 0.0
    %193 = vmatmul.mubr.f32.gmra.mrb[0].mxu0 %v123
    %v194 = vpop.f32.mrb[0].mxu0
    %v195 = vadd.f32 %v120, %v194
    %v196 = vpop.f32.mrb[0].mxu0
    %197 = vmatprep.mubr.f32.mxu0 0.0
    %198 = vmatmul.mubr.f32.gmra.mrb[0].mxu0 %v126
    %v199 = vpop.f32.mrb[0].mxu0
    %v200 = vadd.f32 %v120, %v199
    %v201 = vpop.f32.mrb[0].mxu0
    %202 = vdwg.mxu0
    %v203 = vld [vmem:[%s5] sm:$0xff]
    %v204 = vld [vmem:[%s5 + $0x8] sm:$0xff]
    %v205 = vld [vmem:[%s5 + $0x10] sm:$0xff]
    %v206 = vld [vmem:[%s5 + $0x18] sm:$0xff]
    %208 = vrot.lane.b32.xlu0 %v195, 96
    %v209 = vpop.permute.xlu0 %208
    %vm210 = vcmask 130048
    %v211 = vsel %vm210, %v195, 0
    %v213 = vsel %vm210, %v209, 0
    %215 = vmatprep.subr.mxu0 0.0
    %216 = vmatpush1.xpose.msra.mxu0 %v213
    %217 = vmatprep.subr.mxu0 0.0
    %218 = vmatpush1.xpose.msra.mxu0 0.0
    %219 = vmatprep.subr.mxu0 0.0
    %220 = vmatpush1.xpose.msra.mxu0 0.0
    %221 = vmatprep.subr.mxu0 0.0
    %222 = vmatpush1.xpose.msra.mxu0 0.0
    %223 = vmatprep.subr.mxu0 0.0
    %224 = vmatpush1.xpose.msra.mxu0 0.0
    %225 = vmatprep.subr.mxu0 0.0
    %226 = vmatpush1.xpose.msra.mxu0 0.0
    %227 = vmatprep.subr.mxu0 0.0
    %228 = vmatpush1.xpose.msra.mxu0 0.0
    %229 = vmatprep.subr.mxu0 0.0
    %230 = vmatpush1.xpose.msra.mxu0 0.0
    %231 = vmatprep.subr.mxu0 0.0
    %232 = vmatpush1.xpose.msra.mxu0 0.0
    %233 = vmatprep.subr.mxu0 0.0
    %234 = vmatpush1.xpose.msra.mxu0 0.0
    %235 = vmatprep.subr.mxu0 0.0
    %236 = vmatpush1.xpose.msra.mxu0 0.0
    %237 = vmatprep.subr.mxu0 0.0
    %238 = vmatpush1.xpose.msra.mxu0 0.0
    %239 = vmatprep.subr.mxu0 0.0
    %240 = vmatpush1.xpose.msra.mxu0 0.0
    %241 = vmatprep.subr.mxu0 0.0
    %242 = vmatpush1.xpose.msra.mxu0 0.0
    %243 = vmatprep.subr.mxu0 0.0
    %244 = vmatpush1.xpose.msra.mxu0 0.0
    %245 = vmatprep.subr.mxu0 0.0
    %246 = vmatpush1.xpose.msra.mxu0 0.0
    %247 = vmatprep.subr.mxu0 0.0
    %248 = vmatpush1.xpose.msra.mxu0 0.0
    %249 = vmatprep.subr.mxu0 0.0
    %250 = vmatpush1.xpose.msra.mxu0 0.0
    %251 = vmatprep.subr.mxu0 0.0
    %252 = vmatpush1.xpose.msra.mxu0 0.0
    %253 = vmatprep.subr.mxu0 0.0
    %254 = vmatpush1.xpose.msra.mxu0 0.0
    %255 = vmatprep.subr.mxu0 0.0
    %256 = vmatpush1.xpose.msra.mxu0 0.0
    %257 = vmatprep.subr.mxu0 0.0
    %258 = vmatpush1.xpose.msra.mxu0 0.0
    %259 = vmatprep.subr.mxu0 0.0
    %260 = vmatpush1.xpose.msra.mxu0 0.0
    %261 = vmatprep.subr.mxu0 0.0
    %262 = vmatpush1.xpose.msra.mxu0 0.0
    %263 = vmatprep.subr.mxu0 0.0
    %264 = vmatpush1.xpose.msra.mxu0 0.0
    %265 = vmatprep.subr.mxu0 0.0
    %266 = vmatpush1.xpose.msra.mxu0 0.0
    %267 = vmatprep.subr.mxu0 0.0
    %268 = vmatpush1.xpose.msra.mxu0 0.0
    %269 = vmatprep.subr.mxu0 0.0
    %270 = vmatpush1.xpose.msra.mxu0 0.0
    %271 = vmatprep.subr.mxu0 0.0
    %272 = vmatpush1.xpose.msra.mxu0 0.0
    %273 = vmatprep.subr.mxu0 0.0
    %274 = vmatpush1.xpose.msra.mxu0 0.0
    %275 = vmatprep.subr.mxu0 0.0
    %276 = vmatpush1.xpose.msra.mxu0 0.0
    %277 = vmatprep.subr.mxu0 0.0
    %278 = vmatpush1.xpose.msra.mxu0 0.0
    %279 = vmatprep.mubr.f32.mxu0 0.0
    %280 = vmatmul.mubr.f32.gmra.mrb[0].mxu0 %v211
    %v281 = vpop.f32.mrb[0].mxu0
    %v282 = vadd.f32 0.0, %v281
    %v283 = vpop.f32.mrb[0].mxu0
    %284 = vdwg.mxu0
    %286 = vrot.lane.b32.xlu0 %v200, 96
    %v287 = vpop.permute.xlu0 %286
    %v288 = vsel %vm210, %v200, 0
    %v290 = vsel %vm210, %v287, 0
    %292 = vmatprep.subr.mxu0 0.0
    %293 = vmatpush1.xpose.msra.mxu0 %v290
    %294 = vmatprep.subr.mxu0 0.0
    %295 = vmatpush1.xpose.msra.mxu0 0.0
    %296 = vmatprep.subr.mxu0 0.0
    %297 = vmatpush1.xpose.msra.mxu0 0.0
    %298 = vmatprep.subr.mxu0 0.0
    %299 = vmatpush1.xpose.msra.mxu0 0.0
    %300 = vmatprep.subr.mxu0 0.0
    %301 = vmatpush1.xpose.msra.mxu0 0.0
    %302 = vmatprep.subr.mxu0 0.0
    %303 = vmatpush1.xpose.msra.mxu0 0.0
    %304 = vmatprep.subr.mxu0 0.0
    %305 = vmatpush1.xpose.msra.mxu0 0.0
    %306 = vmatprep.subr.mxu0 0.0
    %307 = vmatpush1.xpose.msra.mxu0 0.0
    %308 = vmatprep.subr.mxu0 0.0
    %309 = vmatpush1.xpose.msra.mxu0 0.0
    %310 = vmatprep.subr.mxu0 0.0
    %311 = vmatpush1.xpose.msra.mxu0 0.0
    %312 = vmatprep.subr.mxu0 0.0
    %313 = vmatpush1.xpose.msra.mxu0 0.0
    %314 = vmatprep.subr.mxu0 0.0
    %315 = vmatpush1.xpose.msra.mxu0 0.0
    %316 = vmatprep.subr.mxu0 0.0
    %317 = vmatpush1.xpose.msra.mxu0 0.0
    %318 = vmatprep.subr.mxu0 0.0
    %319 = vmatpush1.xpose.msra.mxu0 0.0
    %320 = vmatprep.subr.mxu0 0.0
    %321 = vmatpush1.xpose.msra.mxu0 0.0
    %322 = vmatprep.subr.mxu0 0.0
    %323 = vmatpush1.xpose.msra.mxu0 0.0
    %324 = vmatprep.subr.mxu0 0.0
    %325 = vmatpush1.xpose.msra.mxu0 0.0
    %326 = vmatprep.subr.mxu0 0.0
    %327 = vmatpush1.xpose.msra.mxu0 0.0
    %328 = vmatprep.subr.mxu0 0.0
    %329 = vmatpush1.xpose.msra.mxu0 0.0
    %330 = vmatprep.subr.mxu0 0.0
    %331 = vmatpush1.xpose.msra.mxu0 0.0
    %332 = vmatprep.subr.mxu0 0.0
    %333 = vmatpush1.xpose.msra.mxu0 0.0
    %334 = vmatprep.subr.mxu0 0.0
    %335 = vmatpush1.xpose.msra.mxu0 0.0
    %336 = vmatprep.subr.mxu0 0.0
    %337 = vmatpush1.xpose.msra.mxu0 0.0
    %338 = vmatprep.subr.mxu0 0.0
    %339 = vmatpush1.xpose.msra.mxu0 0.0
    %340 = vmatprep.subr.mxu0 0.0
    %341 = vmatpush1.xpose.msra.mxu0 0.0
    %342 = vmatprep.subr.mxu0 0.0
    %343 = vmatpush1.xpose.msra.mxu0 0.0
    %344 = vmatprep.subr.mxu0 0.0
    %345 = vmatpush1.xpose.msra.mxu0 0.0
    %346 = vmatprep.subr.mxu0 0.0
    %347 = vmatpush1.xpose.msra.mxu0 0.0
    %348 = vmatprep.subr.mxu0 0.0
    %349 = vmatpush1.xpose.msra.mxu0 0.0
    %350 = vmatprep.subr.mxu0 0.0
    %351 = vmatpush1.xpose.msra.mxu0 0.0
    %352 = vmatprep.subr.mxu0 0.0
    %353 = vmatpush1.xpose.msra.mxu0 0.0
    %354 = vmatprep.subr.mxu0 0.0
    %355 = vmatpush1.xpose.msra.mxu0 0.0
    %356 = vmatprep.mubr.f32.mxu0 0.0
    %357 = vmatmul.mubr.f32.gmra.mrb[0].mxu0 %v288
    %v358 = vpop.f32.mrb[0].mxu0
    %v359 = vadd.f32 0.0, %v358
    %v360 = vpop.f32.mrb[0].mxu0
    %361 = vdwg.mxu0
    %v362 = vmul.f32 %v282, 0.25
    %v363 = vmul.f32 %v359, 0.25
    %vm364 = vcmask 64512
    %v365 = vsel %vm364, %v362, -inf
    %366 = vmax.xlane.f32.xlu0 %v365
    %v367 = vpop.xlane.xlu0 %366
    %v368 = vsel %vm364, %v363, -inf
    %369 = vmax.xlane.f32.xlu0 %v368
    %v370 = vpop.xlane.xlu0 %369
    %v371 = vsub.f32 %v362, %v367
    %v372 = vsub.f32 %v363, %v370
    %v373 = vmul.f32 %v371, 1.442695
    %v374 = vpow.pop %v373
    %v375 = vmul.f32 %v372, 1.442695
    %v376 = vpow.pop %v375
    %v377 = vsel %vm364, %v374, 0.0
    %378 = vadd.xlane.f32.xlu0 %v377
    %v379 = vpop.xlane.xlu0 %378
    %v380 = vsel %vm364, %v376, 0.0
    %381 = vadd.xlane.f32.xlu0 %v380
    %v382 = vpop.xlane.xlu0 %381
    %v383 = vrcp.pop %v379
    %v384 = vrcp.pop %v382
    %v385 = vmul.f32 %v374, %v383
    %v386 = vmul.f32 %v376, %v384
    %387 = vrot.lane.b32.xlu0 %v195, 64
    %v388 = vpop.permute.xlu0 %387
    %v391 = vsel %vm364, %v385, 0
    %393 = vmatprep.subr.mxu0 0.0
    %394 = vmatpush1.msra.mxu0 %v388
    %395 = vmatprep.subr.mxu0 0.0
    %396 = vmatpush1.msra.mxu0 0.0
    %397 = vmatprep.subr.mxu0 0.0
    %398 = vmatpush1.msra.mxu0 0.0
    %399 = vmatprep.subr.mxu0 0.0
    %400 = vmatpush1.msra.mxu0 0.0
    %401 = vmatprep.subr.mxu0 0.0
    %402 = vmatpush1.msra.mxu0 0.0
    %403 = vmatprep.subr.mxu0 0.0
    %404 = vmatpush1.msra.mxu0 0.0
    %405 = vmatprep.subr.mxu0 0.0
    %406 = vmatpush1.msra.mxu0 0.0
    %407 = vmatprep.subr.mxu0 0.0
    %408 = vmatpush1.msra.mxu0 0.0
    %409 = vmatprep.subr.mxu0 0.0
    %410 = vmatpush1.msra.mxu0 0.0
    %411 = vmatprep.subr.mxu0 0.0
    %412 = vmatpush1.msra.mxu0 0.0
    %413 = vmatprep.subr.mxu0 0.0
    %414 = vmatpush1.msra.mxu0 0.0
    %415 = vmatprep.subr.mxu0 0.0
    %416 = vmatpush1.msra.mxu0 0.0
    %417 = vmatprep.subr.mxu0 0.0
    %418 = vmatpush1.msra.mxu0 0.0
    %419 = vmatprep.subr.mxu0 0.0
    %420 = vmatpush1.msra.mxu0 0.0
    %421 = vmatprep.subr.mxu0 0.0
    %422 = vmatpush1.msra.mxu0 0.0
    %423 = vmatprep.subr.mxu0 0.0
    %424 = vmatpush1.msra.mxu0 0.0
    %425 = vmatprep.subr.mxu0 0.0
    %426 = vmatpush1.msra.mxu0 0.0
    %427 = vmatprep.subr.mxu0 0.0
    %428 = vmatpush1.msra.mxu0 0.0
    %429 = vmatprep.subr.mxu0 0.0
    %430 = vmatpush1.msra.mxu0 0.0
    %431 = vmatprep.subr.mxu0 0.0
    %432 = vmatpush1.msra.mxu0 0.0
    %433 = vmatprep.subr.mxu0 0.0
    %434 = vmatpush1.msra.mxu0 0.0
    %435 = vmatprep.subr.mxu0 0.0
    %436 = vmatpush1.msra.mxu0 0.0
    %437 = vmatprep.subr.mxu0 0.0
    %438 = vmatpush1.msra.mxu0 0.0
    %439 = vmatprep.subr.mxu0 0.0
    %440 = vmatpush1.msra.mxu0 0.0
    %441 = vmatprep.subr.mxu0 0.0
    %442 = vmatpush1.msra.mxu0 0.0
    %443 = vmatprep.subr.mxu0 0.0
    %444 = vmatpush1.msra.mxu0 0.0
    %445 = vmatprep.subr.mxu0 0.0
    %446 = vmatpush1.msra.mxu0 0.0
    %447 = vmatprep.subr.mxu0 0.0
    %448 = vmatpush1.msra.mxu0 0.0
    %449 = vmatprep.subr.mxu0 0.0
    %450 = vmatpush1.msra.mxu0 0.0
    %451 = vmatprep.subr.mxu0 0.0
    %452 = vmatpush1.msra.mxu0 0.0
    %453 = vmatprep.subr.mxu0 0.0
    %454 = vmatpush1.msra.mxu0 0.0
    %455 = vmatprep.subr.mxu0 0.0
    %456 = vmatpush1.msra.mxu0 0.0
    %457 = vmatprep.mubr.f32.mxu0 0.0
    %458 = vmatmul.mubr.f32.gmra.mrb[0].mxu0 %v391
    %v459 = vpop.f32.mrb[0].mxu0
    %v460 = vadd.f32 0.0, %v459
    %v461 = vpop.f32.mrb[0].mxu0
    %462 = vdwg.mxu0
    %463 = vrot.lane.b32.xlu0 %v200, 64
    %v464 = vpop.permute.xlu0 %463
    %v467 = vsel %vm364, %v386, 0
    %469 = vmatprep.subr.mxu0 0.0
    %470 = vmatpush1.msra.mxu0 %v464
    %471 = vmatprep.subr.mxu0 0.0
    %472 = vmatpush1.msra.mxu0 0.0
    %473 = vmatprep.subr.mxu0 0.0
    %474 = vmatpush1.msra.mxu0 0.0
    %475 = vmatprep.subr.mxu0 0.0
    %476 = vmatpush1.msra.mxu0 0.0
    %477 = vmatprep.subr.mxu0 0.0
    %478 = vmatpush1.msra.mxu0 0.0
    %479 = vmatprep.subr.mxu0 0.0
    %480 = vmatpush1.msra.mxu0 0.0
    %481 = vmatprep.subr.mxu0 0.0
    %482 = vmatpush1.msra.mxu0 0.0
    %483 = vmatprep.subr.mxu0 0.0
    %484 = vmatpush1.msra.mxu0 0.0
    %485 = vmatprep.subr.mxu0 0.0
    %486 = vmatpush1.msra.mxu0 0.0
    %487 = vmatprep.subr.mxu0 0.0
    %488 = vmatpush1.msra.mxu0 0.0
    %489 = vmatprep.subr.mxu0 0.0
    %490 = vmatpush1.msra.mxu0 0.0
    %491 = vmatprep.subr.mxu0 0.0
    %492 = vmatpush1.msra.mxu0 0.0
    %493 = vmatprep.subr.mxu0 0.0
    %494 = vmatpush1.msra.mxu0 0.0
    %495 = vmatprep.subr.mxu0 0.0
    %496 = vmatpush1.msra.mxu0 0.0
    %497 = vmatprep.subr.mxu0 0.0
    %498 = vmatpush1.msra.mxu0 0.0
    %499 = vmatprep.subr.mxu0 0.0
    %500 = vmatpush1.msra.mxu0 0.0
    %501 = vmatprep.subr.mxu0 0.0
    %502 = vmatpush1.msra.mxu0 0.0
    %503 = vmatprep.subr.mxu0 0.0
    %504 = vmatpush1.msra.mxu0 0.0
    %505 = vmatprep.subr.mxu0 0.0
    %506 = vmatpush1.msra.mxu0 0.0
    %507 = vmatprep.subr.mxu0 0.0
    %508 = vmatpush1.msra.mxu0 0.0
    %509 = vmatprep.subr.mxu0 0.0
    %510 = vmatpush1.msra.mxu0 0.0
    %511 = vmatprep.subr.mxu0 0.0
    %512 = vmatpush1.msra.mxu0 0.0
    %513 = vmatprep.subr.mxu0 0.0
    %514 = vmatpush1.msra.mxu0 0.0
    %515 = vmatprep.subr.mxu0 0.0
    %516 = vmatpush1.msra.mxu0 0.0
    %517 = vmatprep.subr.mxu0 0.0
    %518 = vmatpush1.msra.mxu0 0.0
    %519 = vmatprep.subr.mxu0 0.0
    %520 = vmatpush1.msra.mxu0 0.0
    %521 = vmatprep.subr.mxu0 0.0
    %522 = vmatpush1.msra.mxu0 0.0
    %523 = vmatprep.subr.mxu0 0.0
    %524 = vmatpush1.msra.mxu0 0.0
    %525 = vmatprep.subr.mxu0 0.0
    %526 = vmatpush1.msra.mxu0 0.0
    %527 = vmatprep.subr.mxu0 0.0
    %528 = vmatpush1.msra.mxu0 0.0
    %529 = vmatprep.subr.mxu0 0.0
    %530 = vmatpush1.msra.mxu0 0.0
    %531 = vmatprep.subr.mxu0 0.0
    %532 = vmatpush1.msra.mxu0 0.0
    %533 = vmatprep.mubr.f32.mxu0 0.0
    %534 = vmatmul.mubr.f32.gmra.mrb[0].mxu0 %v467
    %v535 = vpop.f32.mrb[0].mxu0
    %v536 = vadd.f32 0.0, %v535
    %v537 = vpop.f32.mrb[0].mxu0
    %538 = vdwg.mxu0
    %539 = vrot.lane.b32.xlu0 %v195, 112
    %v540 = vpop.permute.xlu0 %539
    %541 = vrot.lane.b32.xlu0 %v195, 80
    %v542 = vpop.permute.xlu0 %541
    %v543 = vsel %vm210, %v540, 0
    %v545 = vsel %vm210, %v542, 0
    %547 = vmatprep.subr.mxu0 0.0
    %548 = vmatpush1.xpose.msra.mxu0 %v545
    %549 = vmatprep.subr.mxu0 0.0
    %550 = vmatpush1.xpose.msra.mxu0 0.0
    %551 = vmatprep.subr.mxu0 0.0
    %552 = vmatpush1.xpose.msra.mxu0 0.0
    %553 = vmatprep.subr.mxu0 0.0
    %554 = vmatpush1.xpose.msra.mxu0 0.0
    %555 = vmatprep.subr.mxu0 0.0
    %556 = vmatpush1.xpose.msra.mxu0 0.0
    %557 = vmatprep.subr.mxu0 0.0
    %558 = vmatpush1.xpose.msra.mxu0 0.0
    %559 = vmatprep.subr.mxu0 0.0
    %560 = vmatpush1.xpose.msra.mxu0 0.0
    %561 = vmatprep.subr.mxu0 0.0
    %562 = vmatpush1.xpose.msra.mxu0 0.0
    %563 = vmatprep.subr.mxu0 0.0
    %564 = vmatpush1.xpose.msra.mxu0 0.0
    %565 = vmatprep.subr.mxu0 0.0
    %566 = vmatpush1.xpose.msra.mxu0 0.0
    %567 = vmatprep.subr.mxu0 0.0
    %568 = vmatpush1.xpose.msra.mxu0 0.0
    %569 = vmatprep.subr.mxu0 0.0
    %570 = vmatpush1.xpose.msra.mxu0 0.0
    %571 = vmatprep.subr.mxu0 0.0
    %572 = vmatpush1.xpose.msra.mxu0 0.0
    %573 = vmatprep.subr.mxu0 0.0
    %574 = vmatpush1.xpose.msra.mxu0 0.0
    %575 = vmatprep.subr.mxu0 0.0
    %576 = vmatpush1.xpose.msra.mxu0 0.0
    %577 = vmatprep.subr.mxu0 0.0
    %578 = vmatpush1.xpose.msra.mxu0 0.0
    %579 = vmatprep.subr.mxu0 0.0
    %580 = vmatpush1.xpose.msra.mxu0 0.0
    %581 = vmatprep.subr.mxu0 0.0
    %582 = vmatpush1.xpose.msra.mxu0 0.0
    %583 = vmatprep.subr.mxu0 0.0
    %584 = vmatpush1.xpose.msra.mxu0 0.0
    %585 = vmatprep.subr.mxu0 0.0
    %586 = vmatpush1.xpose.msra.mxu0 0.0
    %587 = vmatprep.subr.mxu0 0.0
    %588 = vmatpush1.xpose.msra.mxu0 0.0
    %589 = vmatprep.subr.mxu0 0.0
    %590 = vmatpush1.xpose.msra.mxu0 0.0
    %591 = vmatprep.subr.mxu0 0.0
    %592 = vmatpush1.xpose.msra.mxu0 0.0
    %593 = vmatprep.subr.mxu0 0.0
    %594 = vmatpush1.xpose.msra.mxu0 0.0
    %595 = vmatprep.subr.mxu0 0.0
    %596 = vmatpush1.xpose.msra.mxu0 0.0
    %597 = vmatprep.subr.mxu0 0.0
    %598 = vmatpush1.xpose.msra.mxu0 0.0
    %599 = vmatprep.subr.mxu0 0.0
    %600 = vmatpush1.xpose.msra.mxu0 0.0
    %601 = vmatprep.subr.mxu0 0.0
    %602 = vmatpush1.xpose.msra.mxu0 0.0
    %603 = vmatprep.subr.mxu0 0.0
    %604 = vmatpush1.xpose.msra.mxu0 0.0
    %605 = vmatprep.subr.mxu0 0.0
    %606 = vmatpush1.xpose.msra.mxu0 0.0
    %607 = vmatprep.subr.mxu0 0.0
    %608 = vmatpush1.xpose.msra.mxu0 0.0
    %609 = vmatprep.subr.mxu0 0.0
    %610 = vmatpush1.xpose.msra.mxu0 0.0
    %611 = vmatprep.mubr.f32.mxu0 0.0
    %612 = vmatmul.mubr.f32.gmra.mrb[0].mxu0 %v543
    %v613 = vpop.f32.mrb[0].mxu0
    %v614 = vadd.f32 0.0, %v613
    %v615 = vpop.f32.mrb[0].mxu0
    %616 = vdwg.mxu0
    %617 = vrot.lane.b32.xlu0 %v200, 112
    %v618 = vpop.permute.xlu0 %617
    %619 = vrot.lane.b32.xlu0 %v200, 80
    %v620 = vpop.permute.xlu0 %619
    %v621 = vsel %vm210, %v618, 0
    %v623 = vsel %vm210, %v620, 0
    %625 = vmatprep.subr.mxu0 0.0
    %626 = vmatpush1.xpose.msra.mxu0 %v623
    %627 = vmatprep.subr.mxu0 0.0
    %628 = vmatpush1.xpose.msra.mxu0 0.0
    %629 = vmatprep.subr.mxu0 0.0
    %630 = vmatpush1.xpose.msra.mxu0 0.0
    %631 = vmatprep.subr.mxu0 0.0
    %632 = vmatpush1.xpose.msra.mxu0 0.0
    %633 = vmatprep.subr.mxu0 0.0
    %634 = vmatpush1.xpose.msra.mxu0 0.0
    %635 = vmatprep.subr.mxu0 0.0
    %636 = vmatpush1.xpose.msra.mxu0 0.0
    %637 = vmatprep.subr.mxu0 0.0
    %638 = vmatpush1.xpose.msra.mxu0 0.0
    %639 = vmatprep.subr.mxu0 0.0
    %640 = vmatpush1.xpose.msra.mxu0 0.0
    %641 = vmatprep.subr.mxu0 0.0
    %642 = vmatpush1.xpose.msra.mxu0 0.0
    %643 = vmatprep.subr.mxu0 0.0
    %644 = vmatpush1.xpose.msra.mxu0 0.0
    %645 = vmatprep.subr.mxu0 0.0
    %646 = vmatpush1.xpose.msra.mxu0 0.0
    %647 = vmatprep.subr.mxu0 0.0
    %648 = vmatpush1.xpose.msra.mxu0 0.0
    %649 = vmatprep.subr.mxu0 0.0
    %650 = vmatpush1.xpose.msra.mxu0 0.0
    %651 = vmatprep.subr.mxu0 0.0
    %652 = vmatpush1.xpose.msra.mxu0 0.0
    %653 = vmatprep.subr.mxu0 0.0
    %654 = vmatpush1.xpose.msra.mxu0 0.0
    %655 = vmatprep.subr.mxu0 0.0
    %656 = vmatpush1.xpose.msra.mxu0 0.0
    %657 = vmatprep.subr.mxu0 0.0
    %658 = vmatpush1.xpose.msra.mxu0 0.0
    %659 = vmatprep.subr.mxu0 0.0
    %660 = vmatpush1.xpose.msra.mxu0 0.0
    %661 = vmatprep.subr.mxu0 0.0
    %662 = vmatpush1.xpose.msra.mxu0 0.0
    %663 = vmatprep.subr.mxu0 0.0
    %664 = vmatpush1.xpose.msra.mxu0 0.0
    %665 = vmatprep.subr.mxu0 0.0
    %666 = vmatpush1.xpose.msra.mxu0 0.0
    %667 = vmatprep.subr.mxu0 0.0
    %668 = vmatpush1.xpose.msra.mxu0 0.0
    %669 = vmatprep.subr.mxu0 0.0
    %670 = vmatpush1.xpose.msra.mxu0 0.0
    %671 = vmatprep.subr.mxu0 0.0
    %672 = vmatpush1.xpose.msra.mxu0 0.0
    %673 = vmatprep.subr.mxu0 0.0
    %674 = vmatpush1.xpose.msra.mxu0 0.0
    %675 = vmatprep.subr.mxu0 0.0
    %676 = vmatpush1.xpose.msra.mxu0 0.0
    %677 = vmatprep.subr.mxu0 0.0
    %678 = vmatpush1.xpose.msra.mxu0 0.0
    %679 = vmatprep.subr.mxu0 0.0
    %680 = vmatpush1.xpose.msra.mxu0 0.0
    %681 = vmatprep.subr.mxu0 0.0
    %682 = vmatpush1.xpose.msra.mxu0 0.0
    %683 = vmatprep.subr.mxu0 0.0
    %684 = vmatpush1.xpose.msra.mxu0 0.0
    %685 = vmatprep.subr.mxu0 0.0
    %686 = vmatpush1.xpose.msra.mxu0 0.0
    %687 = vmatprep.subr.mxu0 0.0
    %688 = vmatpush1.xpose.msra.mxu0 0.0
    %689 = vmatprep.mubr.f32.mxu0 0.0
    %690 = vmatmul.mubr.f32.gmra.mrb[0].mxu0 %v621
    %v691 = vpop.f32.mrb[0].mxu0
    %v692 = vadd.f32 0.0, %v691
    %v693 = vpop.f32.mrb[0].mxu0
    %694 = vdwg.mxu0
    %v695 = vmul.f32 %v614, 0.25
    %v696 = vmul.f32 %v692, 0.25
    %v697 = vsel %vm364, %v695, -inf
    %698 = vmax.xlane.f32.xlu0 %v697
    %v699 = vpop.xlane.xlu0 %698
    %v700 = vsel %vm364, %v696, -inf
    %701 = vmax.xlane.f32.xlu0 %v700
    %v702 = vpop.xlane.xlu0 %701
    %v703 = vsub.f32 %v695, %v699
    %v704 = vsub.f32 %v696, %v702
    %v705 = vmul.f32 %v703, 1.442695
    %v706 = vpow.pop %v705
    %v707 = vmul.f32 %v704, 1.442695
    %v708 = vpow.pop %v707
    %v709 = vsel %vm364, %v706, 0.0
    %710 = vadd.xlane.f32.xlu0 %v709
    %v711 = vpop.xlane.xlu0 %710
    %v712 = vsel %vm364, %v708, 0.0
    %713 = vadd.xlane.f32.xlu0 %v712
    %v714 = vpop.xlane.xlu0 %713
    %v715 = vrcp.pop %v711
    %v716 = vrcp.pop %v714
    %v717 = vmul.f32 %v706, %v715
    %v718 = vmul.f32 %v708, %v716
    %719 = vrot.lane.b32.xlu0 %v195, 48
    %v720 = vpop.permute.xlu0 %719
    %v723 = vsel %vm364, %v717, 0
    %725 = vmatprep.subr.mxu0 0.0
    %726 = vmatpush1.msra.mxu0 %v720
    %727 = vmatprep.subr.mxu0 0.0
    %728 = vmatpush1.msra.mxu0 0.0
    %729 = vmatprep.subr.mxu0 0.0
    %730 = vmatpush1.msra.mxu0 0.0
    %731 = vmatprep.subr.mxu0 0.0
    %732 = vmatpush1.msra.mxu0 0.0
    %733 = vmatprep.subr.mxu0 0.0
    %734 = vmatpush1.msra.mxu0 0.0
    %735 = vmatprep.subr.mxu0 0.0
    %736 = vmatpush1.msra.mxu0 0.0
    %737 = vmatprep.subr.mxu0 0.0
    %738 = vmatpush1.msra.mxu0 0.0
    %739 = vmatprep.subr.mxu0 0.0
    %740 = vmatpush1.msra.mxu0 0.0
    %741 = vmatprep.subr.mxu0 0.0
    %742 = vmatpush1.msra.mxu0 0.0
    %743 = vmatprep.subr.mxu0 0.0
    %744 = vmatpush1.msra.mxu0 0.0
    %745 = vmatprep.subr.mxu0 0.0
    %746 = vmatpush1.msra.mxu0 0.0
    %747 = vmatprep.subr.mxu0 0.0
    %748 = vmatpush1.msra.mxu0 0.0
    %749 = vmatprep.subr.mxu0 0.0
    %750 = vmatpush1.msra.mxu0 0.0
    %751 = vmatprep.subr.mxu0 0.0
    %752 = vmatpush1.msra.mxu0 0.0
    %753 = vmatprep.subr.mxu0 0.0
    %754 = vmatpush1.msra.mxu0 0.0
    %755 = vmatprep.subr.mxu0 0.0
    %756 = vmatpush1.msra.mxu0 0.0
    %757 = vmatprep.subr.mxu0 0.0
    %758 = vmatpush1.msra.mxu0 0.0
    %759 = vmatprep.subr.mxu0 0.0
    %760 = vmatpush1.msra.mxu0 0.0
    %761 = vmatprep.subr.mxu0 0.0
    %762 = vmatpush1.msra.mxu0 0.0
    %763 = vmatprep.subr.mxu0 0.0
    %764 = vmatpush1.msra.mxu0 0.0
    %765 = vmatprep.subr.mxu0 0.0
    %766 = vmatpush1.msra.mxu0 0.0
    %767 = vmatprep.subr.mxu0 0.0
    %768 = vmatpush1.msra.mxu0 0.0
    %769 = vmatprep.subr.mxu0 0.0
    %770 = vmatpush1.msra.mxu0 0.0
    %771 = vmatprep.subr.mxu0 0.0
    %772 = vmatpush1.msra.mxu0 0.0
    %773 = vmatprep.subr.mxu0 0.0
    %774 = vmatpush1.msra.mxu0 0.0
    %775 = vmatprep.subr.mxu0 0.0
    %776 = vmatpush1.msra.mxu0 0.0
    %777 = vmatprep.subr.mxu0 0.0
    %778 = vmatpush1.msra.mxu0 0.0
    %779 = vmatprep.subr.mxu0 0.0
    %780 = vmatpush1.msra.mxu0 0.0
    %781 = vmatprep.subr.mxu0 0.0
    %782 = vmatpush1.msra.mxu0 0.0
    %783 = vmatprep.subr.mxu0 0.0
    %784 = vmatpush1.msra.mxu0 0.0
    %785 = vmatprep.subr.mxu0 0.0
    %786 = vmatpush1.msra.mxu0 0.0
    %787 = vmatprep.subr.mxu0 0.0
    %788 = vmatpush1.msra.mxu0 0.0
    %789 = vmatprep.mubr.f32.mxu0 0.0
    %790 = vmatmul.mubr.f32.gmra.mrb[0].mxu0 %v723
    %v791 = vpop.f32.mrb[0].mxu0
    %v792 = vadd.f32 0.0, %v791
    %v793 = vpop.f32.mrb[0].mxu0
    %794 = vdwg.mxu0
    %795 = vrot.lane.b32.xlu0 %v200, 48
    %v796 = vpop.permute.xlu0 %795
    %v799 = vsel %vm364, %v718, 0
    %801 = vmatprep.subr.mxu0 0.0
    %802 = vmatpush1.msra.mxu0 %v796
    %803 = vmatprep.subr.mxu0 0.0
    %804 = vmatpush1.msra.mxu0 0.0
    %805 = vmatprep.subr.mxu0 0.0
    %806 = vmatpush1.msra.mxu0 0.0
    %807 = vmatprep.subr.mxu0 0.0
    %808 = vmatpush1.msra.mxu0 0.0
    %809 = vmatprep.subr.mxu0 0.0
    %810 = vmatpush1.msra.mxu0 0.0
    %811 = vmatprep.subr.mxu0 0.0
    %812 = vmatpush1.msra.mxu0 0.0
    %813 = vmatprep.subr.mxu0 0.0
    %814 = vmatpush1.msra.mxu0 0.0
    %815 = vmatprep.subr.mxu0 0.0
    %816 = vmatpush1.msra.mxu0 0.0
    %817 = vmatprep.subr.mxu0 0.0
    %818 = vmatpush1.msra.mxu0 0.0
    %819 = vmatprep.subr.mxu0 0.0
    %820 = vmatpush1.msra.mxu0 0.0
    %821 = vmatprep.subr.mxu0 0.0
    %822 = vmatpush1.msra.mxu0 0.0
    %823 = vmatprep.subr.mxu0 0.0
    %824 = vmatpush1.msra.mxu0 0.0
    %825 = vmatprep.subr.mxu0 0.0
    %826 = vmatpush1.msra.mxu0 0.0
    %827 = vmatprep.subr.mxu0 0.0
    %828 = vmatpush1.msra.mxu0 0.0
    %829 = vmatprep.subr.mxu0 0.0
    %830 = vmatpush1.msra.mxu0 0.0
    %831 = vmatprep.subr.mxu0 0.0
    %832 = vmatpush1.msra.mxu0 0.0
    %833 = vmatprep.subr.mxu0 0.0
    %834 = vmatpush1.msra.mxu0 0.0
    %835 = vmatprep.subr.mxu0 0.0
    %836 = vmatpush1.msra.mxu0 0.0
    %837 = vmatprep.subr.mxu0 0.0
    %838 = vmatpush1.msra.mxu0 0.0
    %839 = vmatprep.subr.mxu0 0.0
    %840 = vmatpush1.msra.mxu0 0.0
    %841 = vmatprep.subr.mxu0 0.0
    %842 = vmatpush1.msra.mxu0 0.0
    %843 = vmatprep.subr.mxu0 0.0
    %844 = vmatpush1.msra.mxu0 0.0
    %845 = vmatprep.subr.mxu0 0.0
    %846 = vmatpush1.msra.mxu0 0.0
    %847 = vmatprep.subr.mxu0 0.0
    %848 = vmatpush1.msra.mxu0 0.0
    %849 = vmatprep.subr.mxu0 0.0
    %850 = vmatpush1.msra.mxu0 0.0
    %851 = vmatprep.subr.mxu0 0.0
    %852 = vmatpush1.msra.mxu0 0.0
    %853 = vmatprep.subr.mxu0 0.0
    %854 = vmatpush1.msra.mxu0 0.0
    %855 = vmatprep.subr.mxu0 0.0
    %856 = vmatpush1.msra.mxu0 0.0
    %857 = vmatprep.subr.mxu0 0.0
    %858 = vmatpush1.msra.mxu0 0.0
    %859 = vmatprep.subr.mxu0 0.0
    %860 = vmatpush1.msra.mxu0 0.0
    %861 = vmatprep.subr.mxu0 0.0
    %862 = vmatpush1.msra.mxu0 0.0
    %863 = vmatprep.subr.mxu0 0.0
    %864 = vmatpush1.msra.mxu0 0.0
    %865 = vmatprep.mubr.f32.mxu0 0.0
    %866 = vmatmul.mubr.f32.gmra.mrb[0].mxu0 %v799
    %v867 = vpop.f32.mrb[0].mxu0
    %v868 = vadd.f32 0.0, %v867
    %v869 = vpop.f32.mrb[0].mxu0
    %870 = vdwg.mxu0
    %v872 = vsel %vm210, %v792, 0
    %v875 = vsel %vm210, %v868, 0
    %877 = vmatprep.subr.mxu0 0.0
    %878 = vmatpush1.msra.mxu0 %v205
    %879 = vmatprep.subr.mxu0 0.0
    %880 = vmatpush1.msra.mxu0 %v206
    %881 = vmatprep.subr.mxu0 0.0
    %882 = vmatpush1.msra.mxu0 0.0
    %883 = vmatprep.subr.mxu0 0.0
    %884 = vmatpush1.msra.mxu0 0.0
    %885 = vmatprep.subr.mxu0 0.0
    %886 = vmatpush1.msra.mxu0 0.0
    %887 = vmatprep.subr.mxu0 0.0
    %888 = vmatpush1.msra.mxu0 0.0
    %889 = vmatprep.subr.mxu0 0.0
    %890 = vmatpush1.msra.mxu0 0.0
    %891 = vmatprep.subr.mxu0 0.0
    %892 = vmatpush1.msra.mxu0 0.0
    %893 = vmatprep.subr.mxu0 0.0
    %894 = vmatpush1.msra.mxu0 0.0
    %895 = vmatprep.subr.mxu0 0.0
    %896 = vmatpush1.msra.mxu0 0.0
    %897 = vmatprep.subr.mxu0 0.0
    %898 = vmatpush1.msra.mxu0 0.0
    %899 = vmatprep.subr.mxu0 0.0
    %900 = vmatpush1.msra.mxu0 0.0
    %901 = vmatprep.subr.mxu0 0.0
    %902 = vmatpush1.msra.mxu0 0.0
    %903 = vmatprep.subr.mxu0 0.0
    %904 = vmatpush1.msra.mxu0 0.0
    %905 = vmatprep.subr.mxu0 0.0
    %906 = vmatpush1.msra.mxu0 0.0
    %907 = vmatprep.subr.mxu0 0.0
    %908 = vmatpush1.msra.mxu0 0.0
    %909 = vmatprep.subr.mxu0 0.0
    %910 = vmatpush1.msra.mxu0 0.0
    %911 = vmatprep.subr.mxu0 0.0
    %912 = vmatpush1.msra.mxu0 0.0
    %913 = vmatprep.subr.mxu0 0.0
    %914 = vmatpush1.msra.mxu0 0.0
    %915 = vmatprep.subr.mxu0 0.0
    %916 = vmatpush1.msra.mxu0 0.0
    %917 = vmatprep.subr.mxu0 0.0
    %918 = vmatpush1.msra.mxu0 0.0
    %919 = vmatprep.subr.mxu0 0.0
    %920 = vmatpush1.msra.mxu0 0.0
    %921 = vmatprep.subr.mxu0 0.0
    %922 = vmatpush1.msra.mxu0 0.0
    %923 = vmatprep.subr.mxu0 0.0
    %924 = vmatpush1.msra.mxu0 0.0
    %925 = vmatprep.subr.mxu0 0.0
    %926 = vmatpush1.msra.mxu0 0.0
    %927 = vmatprep.subr.mxu0 0.0
    %928 = vmatpush1.msra.mxu0 0.0
    %929 = vmatprep.subr.mxu0 0.0
    %930 = vmatpush1.msra.mxu0 0.0
    %931 = vmatprep.subr.mxu0 0.0
    %932 = vmatpush1.msra.mxu0 0.0
    %933 = vmatprep.subr.mxu0 0.0
    %934 = vmatpush1.msra.mxu0 0.0
    %935 = vmatprep.subr.mxu0 0.0
    %936 = vmatpush1.msra.mxu0 0.0
    %937 = vmatprep.subr.mxu0 0.0
    %938 = vmatpush1.msra.mxu0 0.0
    %939 = vmatprep.subr.mxu0 0.0
    %940 = vmatpush1.msra.mxu0 0.0
    %941 = vmatprep.mubr.f32.mxu0 0.0
    %942 = vmatmul.mubr.f32.gmra.mrb[0].mxu0 %v872
    %v943 = vpop.f32.mrb[0].mxu0
    %v944 = vadd.f32 0.0, %v943
    %v945 = vpop.f32.mrb[0].mxu0
    %946 = vmatprep.mubr.f32.mxu0 0.0
    %947 = vmatmul.mubr.f32.gmra.mrb[0].mxu0 %v875
    %v948 = vpop.f32.mrb[0].mxu0
    %v949 = vadd.f32 0.0, %v948
    %v950 = vpop.f32.mrb[0].mxu0
    %951 = vdwg.mxu0
    %v953 = vsel %vm210, %v460, 0
    %v956 = vsel %vm210, %v536, 0
    %958 = vmatprep.subr.mxu0 0.0
    %959 = vmatpush1.msra.mxu0 %v203
    %960 = vmatprep.subr.mxu0 0.0
    %961 = vmatpush1.msra.mxu0 %v204
    %962 = vmatprep.subr.mxu0 0.0
    %963 = vmatpush1.msra.mxu0 0.0
    %964 = vmatprep.subr.mxu0 0.0
    %965 = vmatpush1.msra.mxu0 0.0
    %966 = vmatprep.subr.mxu0 0.0
    %967 = vmatpush1.msra.mxu0 0.0
    %968 = vmatprep.subr.mxu0 0.0
    %969 = vmatpush1.msra.mxu0 0.0
    %970 = vmatprep.subr.mxu0 0.0
    %971 = vmatpush1.msra.mxu0 0.0
    %972 = vmatprep.subr.mxu0 0.0
    %973 = vmatpush1.msra.mxu0 0.0
    %974 = vmatprep.subr.mxu0 0.0
    %975 = vmatpush1.msra.mxu0 0.0
    %976 = vmatprep.subr.mxu0 0.0
    %977 = vmatpush1.msra.mxu0 0.0
    %978 = vmatprep.subr.mxu0 0.0
    %979 = vmatpush1.msra.mxu0 0.0
    %980 = vmatprep.subr.mxu0 0.0
    %981 = vmatpush1.msra.mxu0 0.0
    %982 = vmatprep.subr.mxu0 0.0
    %983 = vmatpush1.msra.mxu0 0.0
    %984 = vmatprep.subr.mxu0 0.0
    %985 = vmatpush1.msra.mxu0 0.0
    %986 = vmatprep.subr.mxu0 0.0
    %987 = vmatpush1.msra.mxu0 0.0
    %988 = vmatprep.subr.mxu0 0.0
    %989 = vmatpush1.msra.mxu0 0.0
    %990 = vmatprep.subr.mxu0 0.0
    %991 = vmatpush1.msra.mxu0 0.0
    %992 = vmatprep.subr.mxu0 0.0
    %993 = vmatpush1.msra.mxu0 0.0
    %994 = vmatprep.subr.mxu0 0.0
    %995 = vmatpush1.msra.mxu0 0.0
    %996 = vmatprep.subr.mxu0 0.0
    %997 = vmatpush1.msra.mxu0 0.0
    %998 = vmatprep.subr.mxu0 0.0
    %999 = vmatpush1.msra.mxu0 0.0
    %1000 = vmatprep.subr.mxu0 0.0
    %1001 = vmatpush1.msra.mxu0 0.0
    %1002 = vmatprep.subr.mxu0 0.0
    %1003 = vmatpush1.msra.mxu0 0.0
    %1004 = vmatprep.subr.mxu0 0.0
    %1005 = vmatpush1.msra.mxu0 0.0
    %1006 = vmatprep.subr.mxu0 0.0
    %1007 = vmatpush1.msra.mxu0 0.0
    %1008 = vmatprep.subr.mxu0 0.0
    %1009 = vmatpush1.msra.mxu0 0.0
    %1010 = vmatprep.subr.mxu0 0.0
    %1011 = vmatpush1.msra.mxu0 0.0
    %1012 = vmatprep.subr.mxu0 0.0
    %1013 = vmatpush1.msra.mxu0 0.0
    %1014 = vmatprep.subr.mxu0 0.0
    %1015 = vmatpush1.msra.mxu0 0.0
    %1016 = vmatprep.subr.mxu0 0.0
    %1017 = vmatpush1.msra.mxu0 0.0
    %1018 = vmatprep.subr.mxu0 0.0
    %1019 = vmatpush1.msra.mxu0 0.0
    %1020 = vmatprep.subr.mxu0 0.0
    %1021 = vmatpush1.msra.mxu0 0.0
    %1022 = vmatprep.mubr.f32.mxu0 0.0
    %1023 = vmatmul.mubr.f32.gmra.mrb[0].mxu0 %v953
    %v1024 = vpop.f32.mrb[0].mxu0
    %v1025 = vadd.f32 %v944, %v1024
    %v1026 = vpop.f32.mrb[0].mxu0
    %1027 = vmatprep.mubr.f32.mxu0 0.0
    %1028 = vmatmul.mubr.f32.gmra.mrb[0].mxu0 %v956
    %v1029 = vpop.f32.mrb[0].mxu0
    %v1030 = vadd.f32 %v949, %v1029
    %v1031 = vpop.f32.mrb[0].mxu0
    %1032 = vdwg.mxu0
    %v1033 = vld [vmem:[%s6] sm:$0x1]
    %v1035 = vlaneseq
    %v1036 = vshrl.u32 %v1035, 7
    %v1037 = vsub.s32 0, %v1036
    %v1038 = vrot.slane %v1033, %v1037
    %v1040 = vadd.f32 %v1025, %v1038
    %v1041 = vadd.f32 %v1030, %v1038
    %v1042 = vadd.f32 %v109, %v1040
    %v1043 = vadd.f32 %v110, %v1041
    %v1044 = vld [vmem:[%s7] sm:$0x1]
    %v1045 = vld [vmem:[%s8] sm:$0x1]
    %v1046 = vsel %vm67, %v1042, 0.0
    %1047 = vadd.xlane.f32.xlu0 %v1046
    %v1048 = vpop.xlane.xlu0 %1047
    %v1049 = vsel %vm67, %v1043, 0.0
    %1050 = vadd.xlane.f32.xlu0 %v1049
    %v1051 = vpop.xlane.xlu0 %1050
    %v1052 = vmul.f32 %v1048, %v74
    %v1053 = vmul.f32 %v1051, %v74
    %v1054 = vsub.f32 %v1042, %v1052
    %v1055 = vsub.f32 %v1043, %v1053
    %v1056 = vmul.f32 %v1054, %v1054
    %v1057 = vmul.f32 %v1055, %v1055
    %v1058 = vsel %vm67, %v1056, 0.0
    %1059 = vadd.xlane.f32.xlu0 %v1058
    %v1060 = vpop.xlane.xlu0 %1059
    %v1061 = vsel %vm67, %v1057, 0.0
    %1062 = vadd.xlane.f32.xlu0 %v1061
    %v1063 = vpop.xlane.xlu0 %1062
    %v1064 = vmul.f32 %v1060, %v74
    %v1065 = vmul.f32 %v1063, %v74
    %v1066 = vadd.f32 %v1064, 1e-12
    %v1067 = vadd.f32 %v1065, 1e-12
    %v1068 = vrsqrt.pop %v1066
    %v1069 = vrsqrt.pop %v1067
    %v1070 = vmul.f32 %v1054, %v1068
    %v1071 = vmul.f32 %v1055, %v1069
    %v1073 = vlaneseq
    %v1074 = vshrl.u32 %v1073, 7
    %v1075 = vsub.s32 0, %v1074
    %v1076 = vrot.slane %v1044, %v1075
    %v1078 = vmul.f32 %v1070, %v1076
    %v1079 = vmul.f32 %v1071, %v1076
    %v1081 = vlaneseq
    %v1082 = vshrl.u32 %v1081, 7
    %v1083 = vsub.s32 0, %v1082
    %v1084 = vrot.slane %v1045, %v1083
    %v1086 = vadd.f32 %v1078, %v1084
    %v1087 = vadd.f32 %v1079, %v1084
    %v1088 = vld [vmem:[%s9] sm:$0xff]
    %v1089 = vld [vmem:[%s9 + $0x8] sm:$0xff]
    %v1090 = vld [vmem:[%s9 + $0x10] sm:$0xff]
    %v1091 = vld [vmem:[%s9 + $0x18] sm:$0xff]
    %v1092 = vld [vmem:[%s10] sm:$0x1]
    %v1094 = vlaneseq
    %v1095 = vshrl.u32 %v1094, 7
    %v1096 = vsub.s32 0, %v1095
    %v1097 = vrot.slane %v1092, %v1096
    %v1100 = vsel %vm67, %v1086, 0
    %v1103 = vsel %vm67, %v1087, 0
    %1105 = vmatprep.subr.mxu0 0.0
    %1106 = vmatpush1.msra.mxu0 %v1088
    %1107 = vmatprep.subr.mxu0 0.0
    %1108 = vmatpush1.msra.mxu0 %v1089
    %1109 = vmatprep.subr.mxu0 0.0
    %1110 = vmatpush1.msra.mxu0 %v1090
    %1111 = vmatprep.subr.mxu0 0.0
    %1112 = vmatpush1.msra.mxu0 %v1091
    %1113 = vmatprep.subr.mxu0 0.0
    %1114 = vmatpush1.msra.mxu0 0.0
    %1115 = vmatprep.subr.mxu0 0.0
    %1116 = vmatpush1.msra.mxu0 0.0
    %1117 = vmatprep.subr.mxu0 0.0
    %1118 = vmatpush1.msra.mxu0 0.0
    %1119 = vmatprep.subr.mxu0 0.0
    %1120 = vmatpush1.msra.mxu0 0.0
    %1121 = vmatprep.subr.mxu0 0.0
    %1122 = vmatpush1.msra.mxu0 0.0
    %1123 = vmatprep.subr.mxu0 0.0
    %1124 = vmatpush1.msra.mxu0 0.0
    %1125 = vmatprep.subr.mxu0 0.0
    %1126 = vmatpush1.msra.mxu0 0.0
    %1127 = vmatprep.subr.mxu0 0.0
    %1128 = vmatpush1.msra.mxu0 0.0
    %1129 = vmatprep.subr.mxu0 0.0
    %1130 = vmatpush1.msra.mxu0 0.0
    %1131 = vmatprep.subr.mxu0 0.0
    %1132 = vmatpush1.msra.mxu0 0.0
    %1133 = vmatprep.subr.mxu0 0.0
    %1134 = vmatpush1.msra.mxu0 0.0
    %1135 = vmatprep.subr.mxu0 0.0
    %1136 = vmatpush1.msra.mxu0 0.0
    %1137 = vmatprep.subr.mxu0 0.0
    %1138 = vmatpush1.msra.mxu0 0.0
    %1139 = vmatprep.subr.mxu0 0.0
    %1140 = vmatpush1.msra.mxu0 0.0
    %1141 = vmatprep.subr.mxu0 0.0
    %1142 = vmatpush1.msra.mxu0 0.0
    %1143 = vmatprep.subr.mxu0 0.0
    %1144 = vmatpush1.msra.mxu0 0.0
    %1145 = vmatprep.subr.mxu0 0.0
    %1146 = vmatpush1.msra.mxu0 0.0
    %1147 = vmatprep.subr.mxu0 0.0
    %1148 = vmatpush1.msra.mxu0 0.0
    %1149 = vmatprep.subr.mxu0 0.0
    %1150 = vmatpush1.msra.mxu0 0.0
    %1151 = vmatprep.subr.mxu0 0.0
    %1152 = vmatpush1.msra.mxu0 0.0
    %1153 = vmatprep.subr.mxu0 0.0
    %1154 = vmatpush1.msra.mxu0 0.0
    %1155 = vmatprep.subr.mxu0 0.0
    %1156 = vmatpush1.msra.mxu0 0.0
    %1157 = vmatprep.subr.mxu0 0.0
    %1158 = vmatpush1.msra.mxu0 0.0
    %1159 = vmatprep.subr.mxu0 0.0
    %1160 = vmatpush1.msra.mxu0 0.0
    %1161 = vmatprep.subr.mxu0 0.0
    %1162 = vmatpush1.msra.mxu0 0.0
    %1163 = vmatprep.subr.mxu0 0.0
    %1164 = vmatpush1.msra.mxu0 0.0
    %1165 = vmatprep.subr.mxu0 0.0
    %1166 = vmatpush1.msra.mxu0 0.0
    %1167 = vmatprep.subr.mxu0 0.0
    %1168 = vmatpush1.msra.mxu0 0.0
    %1169 = vmatprep.mubr.f32.mxu0 0.0
    %1170 = vmatmul.mubr.f32.gmra.mrb[0].mxu0 %v1100
    %v1171 = vpop.f32.mrb[0].mxu0
    %v1172 = vadd.f32 %v1097, %v1171
    %v1173 = vpop.f32.mrb[0].mxu0
    %1174 = vmatprep.mubr.f32.mxu0 0.0
    %1175 = vmatmul.mubr.f32.gmra.mrb[0].mxu0 %v1103
    %v1176 = vpop.f32.mrb[0].mxu0
    %v1177 = vadd.f32 %v1097, %v1176
    %v1178 = vpop.f32.mrb[0].mxu0
    %1179 = vdwg.mxu0
    %v1180 = vmul.f32 %v1172, 0.5
    %v1181 = vmul.f32 %v1177, 0.5
    %v1182 = vmul.f32 %v1172, 0.044715
    %v1183 = vmul.f32 %v1177, 0.044715
    %v1184 = vmul.f32 %v1182, %v1172
    %v1185 = vmul.f32 %v1183, %v1177
    %v1186 = vmul.f32 %v1184, %v1172
    %v1187 = vmul.f32 %v1185, %v1177
    %v1188 = vadd.f32 %v1172, %v1186
    %v1189 = vadd.f32 %v1177, %v1187
    %v1190 = vmul.f32 %v1188, 0.7978846
    %v1191 = vmul.f32 %v1189, 0.7978846
    %v1192 = vtanh.pop %v1190
    %v1193 = vtanh.pop %v1191
    %v1194 = vadd.f32 %v1192, 1.0
    %v1195 = vadd.f32 %v1193, 1.0
    %v1196 = vmul.f32 %v1180, %v1194
    %v1197 = vmul.f32 %v1181, %v1195
    %v1198 = vld [vmem:[%s11] sm:$0xff]
    %v1199 = vld [vmem:[%s11 + $0x8] sm:$0xff]
    %v1200 = vld [vmem:[%s11 + $0x10] sm:$0xff]
    %v1201 = vld [vmem:[%s11 + $0x18] sm:$0xff]
    %v1202 = vld [vmem:[%s11 + $0x20] sm:$0xff]
    %v1203 = vld [vmem:[%s11 + $0x28] sm:$0xff]
    %v1204 = vld [vmem:[%s11 + $0x30] sm:$0xff]
    %v1205 = vld [vmem:[%s11 + $0x38] sm:$0xff]
    %v1206 = vld [vmem:[%s12] sm:$0x1]
    %v1208 = vlaneseq
    %v1209 = vshrl.u32 %v1208, 7
    %v1210 = vsub.s32 0, %v1209
    %v1211 = vrot.slane %v1206, %v1210
    %vm1213 = vcmask 523264
    %v1215 = vsel %vm1213, %v1196, 0
    %v1218 = vsel %vm1213, %v1197, 0
    %1220 = vmatprep.subr.mxu0 0.0
    %1221 = vmatpush1.msra.mxu0 %v1198
    %1222 = vmatprep.subr.mxu0 0.0
    %1223 = vmatpush1.msra.mxu0 %v1199
    %1224 = vmatprep.subr.mxu0 0.0
    %1225 = vmatpush1.msra.mxu0 %v1200
    %1226 = vmatprep.subr.mxu0 0.0
    %1227 = vmatpush1.msra.mxu0 %v1201
    %1228 = vmatprep.subr.mxu0 0.0
    %1229 = vmatpush1.msra.mxu0 %v1202
    %1230 = vmatprep.subr.mxu0 0.0
    %1231 = vmatpush1.msra.mxu0 %v1203
    %1232 = vmatprep.subr.mxu0 0.0
    %1233 = vmatpush1.msra.mxu0 %v1204
    %1234 = vmatprep.subr.mxu0 0.0
    %1235 = vmatpush1.msra.mxu0 %v1205
    %1236 = vmatprep.subr.mxu0 0.0
    %1237 = vmatpush1.msra.mxu0 0.0
    %1238 = vmatprep.subr.mxu0 0.0
    %1239 = vmatpush1.msra.mxu0 0.0
    %1240 = vmatprep.subr.mxu0 0.0
    %1241 = vmatpush1.msra.mxu0 0.0
    %1242 = vmatprep.subr.mxu0 0.0
    %1243 = vmatpush1.msra.mxu0 0.0
    %1244 = vmatprep.subr.mxu0 0.0
    %1245 = vmatpush1.msra.mxu0 0.0
    %1246 = vmatprep.subr.mxu0 0.0
    %1247 = vmatpush1.msra.mxu0 0.0
    %1248 = vmatprep.subr.mxu0 0.0
    %1249 = vmatpush1.msra.mxu0 0.0
    %1250 = vmatprep.subr.mxu0 0.0
    %1251 = vmatpush1.msra.mxu0 0.0
    %1252 = vmatprep.subr.mxu0 0.0
    %1253 = vmatpush1.msra.mxu0 0.0
    %1254 = vmatprep.subr.mxu0 0.0
    %1255 = vmatpush1.msra.mxu0 0.0
    %1256 = vmatprep.subr.mxu0 0.0
    %1257 = vmatpush1.msra.mxu0 0.0
    %1258 = vmatprep.subr.mxu0 0.0
    %1259 = vmatpush1.msra.mxu0 0.0
    %1260 = vmatprep.subr.mxu0 0.0
    %1261 = vmatpush1.msra.mxu0 0.0
    %1262 = vmatprep.subr.mxu0 0.0
    %1263 = vmatpush1.msra.mxu0 0.0
    %1264 = vmatprep.subr.mxu0 0.0
    %1265 = vmatpush1.msra.mxu0 0.0
    %1266 = vmatprep.subr.mxu0 0.0
    %1267 = vmatpush1.msra.mxu0 0.0
    %1268 = vmatprep.subr.mxu0 0.0
    %1269 = vmatpush1.msra.mxu0 0.0
    %1270 = vmatprep.subr.mxu0 0.0
    %1271 = vmatpush1.msra.mxu0 0.0
    %1272 = vmatprep.subr.mxu0 0.0
    %1273 = vmatpush1.msra.mxu0 0.0
    %1274 = vmatprep.subr.mxu0 0.0
    %1275 = vmatpush1.msra.mxu0 0.0
    %1276 = vmatprep.subr.mxu0 0.0
    %1277 = vmatpush1.msra.mxu0 0.0
    %1278 = vmatprep.subr.mxu0 0.0
    %1279 = vmatpush1.msra.mxu0 0.0
    %1280 = vmatprep.subr.mxu0 0.0
    %1281 = vmatpush1.msra.mxu0 0.0
    %1282 = vmatprep.subr.mxu0 0.0
    %1283 = vmatpush1.msra.mxu0 0.0
    %1284 = vmatprep.mubr.f32.mxu0 0.0
    %1285 = vmatmul.mubr.f32.gmra.mrb[0].mxu0 %v1215
    %v1286 = vpop.f32.mrb[0].mxu0
    %v1287 = vadd.f32 %v1211, %v1286
    %v1288 = vpop.f32.mrb[0].mxu0
    %1289 = vmatprep.mubr.f32.mxu0 0.0
    %1290 = vmatmul.mubr.f32.gmra.mrb[0].mxu0 %v1218
    %v1291 = vpop.f32.mrb[0].mxu0
    %v1292 = vadd.f32 %v1211, %v1291
    %v1293 = vpop.f32.mrb[0].mxu0
    %1294 = vdwg.mxu0
    %v1295 = vadd.f32 %v1086, %v1287
    %v1296 = vadd.f32 %v1087, %v1292
    %v1297 = vld [vmem:[%s13] sm:$0x1]
    %v1298 = vld [vmem:[%s14] sm:$0x1]
    %v1299 = vsel %vm67, %v1295, 0.0
    %1300 = vadd.xlane.f32.xlu0 %v1299
    %v1301 = vpop.xlane.xlu0 %1300
    %v1302 = vsel %vm67, %v1296, 0.0
    %1303 = vadd.xlane.f32.xlu0 %v1302
    %v1304 = vpop.xlane.xlu0 %1303
    %v1305 = vmul.f32 %v1301, %v74
    %v1306 = vmul.f32 %v1304, %v74
    %v1307 = vsub.f32 %v1295, %v1305
    %v1308 = vsub.f32 %v1296, %v1306
    %v1309 = vmul.f32 %v1307, %v1307
    %v1310 = vmul.f32 %v1308, %v1308
    %v1311 = vsel %vm67, %v1309, 0.0
    %1312 = vadd.xlane.f32.xlu0 %v1311
    %v1313 = vpop.xlane.xlu0 %1312
    %v1314 = vsel %vm67, %v1310, 0.0
    %1315 = vadd.xlane.f32.xlu0 %v1314
    %v1316 = vpop.xlane.xlu0 %1315
    %v1317 = vmul.f32 %v1313, %v74
    %v1318 = vmul.f32 %v1316, %v74
    %v1319 = vadd.f32 %v1317, 1e-12
    %v1320 = vadd.f32 %v1318, 1e-12
    %v1321 = vrsqrt.pop %v1319
    %v1322 = vrsqrt.pop %v1320
    %v1323 = vmul.f32 %v1307, %v1321
    %v1324 = vmul.f32 %v1308, %v1322
    %v1326 = vlaneseq
    %v1327 = vshrl.u32 %v1326, 7
    %v1328 = vsub.s32 0, %v1327
    %v1329 = vrot.slane %v1297, %v1328
    %v1331 = vmul.f32 %v1323, %v1329
    %v1332 = vmul.f32 %v1324, %v1329
    %v1334 = vlaneseq
    %v1335 = vshrl.u32 %v1334, 7
    %v1336 = vsub.s32 0, %v1335
    %v1337 = vrot.slane %v1298, %v1336
    %v1339 = vadd.f32 %v1331, %v1337
    %v1340 = vadd.f32 %v1332, %v1337
    %s1341 = scalar_lea.vmem %s3, 32
    %v1342 = vld [vmem:[%s1341] sm:$0xff]
    %v1343 = vld [vmem:[%s1341 + $0x8] sm:$0xff]
    %v1344 = vld [vmem:[%s1341 + $0x10] sm:$0xff]
    %v1345 = vld [vmem:[%s1341 + $0x18] sm:$0xff]
    %s1346 = scalar_lea.vmem %s4, 1
    %v1347 = vld [vmem:[%s1346] sm:$0x1]
    %v1349 = vlaneseq
    %v1350 = vshrl.u32 %v1349, 7
    %v1351 = vsub.s32 0, %v1350
    %v1352 = vrot.slane %v1347, %v1351
    %v1355 = vsel %vm67, %v1339, 0
    %v1358 = vsel %vm67, %v1340, 0
    %1360 = vmatprep.subr.mxu0 0.0
    %1361 = vmatpush1.msra.mxu0 %v1342
    %1362 = vmatprep.subr.mxu0 0.0
    %1363 = vmatpush1.msra.mxu0 %v1343
    %1364 = vmatprep.subr.mxu0 0.0
    %1365 = vmatpush1.msra.mxu0 %v1344
    %1366 = vmatprep.subr.mxu0 0.0
    %1367 = vmatpush1.msra.mxu0 %v1345
    %1368 = vmatprep.subr.mxu0 0.0
    %1369 = vmatpush1.msra.mxu0 0.0
    %1370 = vmatprep.subr.mxu0 0.0
    %1371 = vmatpush1.msra.mxu0 0.0
    %1372 = vmatprep.subr.mxu0 0.0
    %1373 = vmatpush1.msra.mxu0 0.0
    %1374 = vmatprep.subr.mxu0 0.0
    %1375 = vmatpush1.msra.mxu0 0.0
    %1376 = vmatprep.subr.mxu0 0.0
    %1377 = vmatpush1.msra.mxu0 0.0
    %1378 = vmatprep.subr.mxu0 0.0
    %1379 = vmatpush1.msra.mxu0 0.0
    %1380 = vmatprep.subr.mxu0 0.0
    %1381 = vmatpush1.msra.mxu0 0.0
    %1382 = vmatprep.subr.mxu0 0.0
    %1383 = vmatpush1.msra.mxu0 0.0
    %1384 = vmatprep.subr.mxu0 0.0
    %1385 = vmatpush1.msra.mxu0 0.0
    %1386 = vmatprep.subr.mxu0 0.0
    %1387 = vmatpush1.msra.mxu0 0.0
    %1388 = vmatprep.subr.mxu0 0.0
    %1389 = vmatpush1.msra.mxu0 0.0
    %1390 = vmatprep.subr.mxu0 0.0
    %1391 = vmatpush1.msra.mxu0 0.0
    %1392 = vmatprep.subr.mxu0 0.0
    %1393 = vmatpush1.msra.mxu0 0.0
    %1394 = vmatprep.subr.mxu0 0.0
    %1395 = vmatpush1.msra.mxu0 0.0
    %1396 = vmatprep.subr.mxu0 0.0
    %1397 = vmatpush1.msra.mxu0 0.0
    %1398 = vmatprep.subr.mxu0 0.0
    %1399 = vmatpush1.msra.mxu0 0.0
    %1400 = vmatprep.subr.mxu0 0.0
    %1401 = vmatpush1.msra.mxu0 0.0
    %1402 = vmatprep.subr.mxu0 0.0
    %1403 = vmatpush1.msra.mxu0 0.0
    %1404 = vmatprep.subr.mxu0 0.0
    %1405 = vmatpush1.msra.mxu0 0.0
    %1406 = vmatprep.subr.mxu0 0.0
    %1407 = vmatpush1.msra.mxu0 0.0
    %1408 = vmatprep.subr.mxu0 0.0
    %1409 = vmatpush1.msra.mxu0 0.0
    %1410 = vmatprep.subr.mxu0 0.0
    %1411 = vmatpush1.msra.mxu0 0.0
    %1412 = vmatprep.subr.mxu0 0.0
    %1413 = vmatpush1.msra.mxu0 0.0
    %1414 = vmatprep.subr.mxu0 0.0
    %1415 = vmatpush1.msra.mxu0 0.0
    %1416 = vmatprep.subr.mxu0 0.0
    %1417 = vmatpush1.msra.mxu0 0.0
    %1418 = vmatprep.subr.mxu0 0.0
    %1419 = vmatpush1.msra.mxu0 0.0
    %1420 = vmatprep.subr.mxu0 0.0
    %1421 = vmatpush1.msra.mxu0 0.0
    %1422 = vmatprep.subr.mxu0 0.0
    %1423 = vmatpush1.msra.mxu0 0.0
    %1424 = vmatprep.mubr.f32.mxu0 0.0
    %1425 = vmatmul.mubr.f32.gmra.mrb[0].mxu0 %v1355
    %v1426 = vpop.f32.mrb[0].mxu0
    %v1427 = vadd.f32 %v1352, %v1426
    %v1428 = vpop.f32.mrb[0].mxu0
    %1429 = vmatprep.mubr.f32.mxu0 0.0
    %1430 = vmatmul.mubr.f32.gmra.mrb[0].mxu0 %v1358
    %v1431 = vpop.f32.mrb[0].mxu0
    %v1432 = vadd.f32 %v1352, %v1431
    %v1433 = vpop.f32.mrb[0].mxu0
    %1434 = vdwg.mxu0
    %s1435 = scalar_lea.vmem %s5, 32
    %v1436 = vld [vmem:[%s1435] sm:$0xff]
    %v1437 = vld [vmem:[%s1435 + $0x8] sm:$0xff]
    %v1438 = vld [vmem:[%s1435 + $0x10] sm:$0xff]
    %v1439 = vld [vmem:[%s1435 + $0x18] sm:$0xff]
    %1441 = vrot.lane.b32.xlu0 %v1427, 96
    %v1442 = vpop.permute.xlu0 %1441
    %v1443 = vsel %vm210, %v1427, 0
    %v1445 = vsel %vm210, %v1442, 0
    %1447 = vmatprep.subr.mxu0 0.0
    %1448 = vmatpush1.xpose.msra.mxu0 %v1445
    %1449 = vmatprep.subr.mxu0 0.0
    %1450 = vmatpush1.xpose.msra.mxu0 0.0
    %1451 = vmatprep.subr.mxu0 0.0
    %1452 = vmatpush1.xpose.msra.mxu0 0.0
    %1453 = vmatprep.subr.mxu0 0.0
    %1454 = vmatpush1.xpose.msra.mxu0 0.0
    %1455 = vmatprep.subr.mxu0 0.0
    %1456 = vmatpush1.xpose.msra.mxu0 0.0
    %1457 = vmatprep.subr.mxu0 0.0
    %1458 = vmatpush1.xpose.msra.mxu0 0.0
    %1459 = vmatprep.subr.mxu0 0.0
    %1460 = vmatpush1.xpose.msra.mxu0 0.0
    %1461 = vmatprep.subr.mxu0 0.0
    %1462 = vmatpush1.xpose.msra.mxu0 0.0
    %1463 = vmatprep.subr.mxu0 0.0
    %1464 = vmatpush1.xpose.msra.mxu0 0.0
    %1465 = vmatprep.subr.mxu0 0.0
    %1466 = vmatpush1.xpose.msra.mxu0 0.0
    %1467 = vmatprep.subr.mxu0 0.0
    %1468 = vmatpush1.xpose.msra.mxu0 0.0
    %1469 = vmatprep.subr.mxu0 0.0
    %1470 = vmatpush1.xpose.msra.mxu0 0.0
    %1471 = vmatprep.subr.mxu0 0.0
    %1472 = vmatpush1.xpose.msra.mxu0 0.0
    %1473 = vmatprep.subr.mxu0 0.0
    %1474 = vmatpush1.xpose.msra.mxu0 0.0
    %1475 = vmatprep.subr.mxu0 0.0
    %1476 = vmatpush1.xpose.msra.mxu0 0.0
    %1477 = vmatprep.subr.mxu0 0.0
    %1478 = vmatpush1.xpose.msra.mxu0 0.0
    %1479 = vmatprep.subr.mxu0 0.0
    %1480 = vmatpush1.xpose.msra.mxu0 0.0
    %1481 = vmatprep.subr.mxu0 0.0
    %1482 = vmatpush1.xpose.msra.mxu0 0.0
    %1483 = vmatprep.subr.mxu0 0.0
    %1484 = vmatpush1.xpose.msra.mxu0 0.0
    %1485 = vmatprep.subr.mxu0 0.0
    %1486 = vmatpush1.xpose.msra.mxu0 0.0
    %1487 = vmatprep.subr.mxu0 0.0
    %1488 = vmatpush1.xpose.msra.mxu0 0.0
    %1489 = vmatprep.subr.mxu0 0.0
    %1490 = vmatpush1.xpose.msra.mxu0 0.0
    %1491 = vmatprep.subr.mxu0 0.0
    %1492 = vmatpush1.xpose.msra.mxu0 0.0
    %1493 = vmatprep.subr.mxu0 0.0
    %1494 = vmatpush1.xpose.msra.mxu0 0.0
    %1495 = vmatprep.subr.mxu0 0.0
    %1496 = vmatpush1.xpose.msra.mxu0 0.0
    %1497 = vmatprep.subr.mxu0 0.0
    %1498 = vmatpush1.xpose.msra.mxu0 0.0
    %1499 = vmatprep.subr.mxu0 0.0
    %1500 = vmatpush1.xpose.msra.mxu0 0.0
    %1501 = vmatprep.subr.mxu0 0.0
    %1502 = vmatpush1.xpose.msra.mxu0 0.0
    %1503 = vmatprep.subr.mxu0 0.0
    %1504 = vmatpush1.xpose.msra.mxu0 0.0
    %1505 = vmatprep.subr.mxu0 0.0
    %1506 = vmatpush1.xpose.msra.mxu0 0.0
    %1507 = vmatprep.subr.mxu0 0.0
    %1508 = vmatpush1.xpose.msra.mxu0 0.0
    %1509 = vmatprep.subr.mxu0 0.0
    %1510 = vmatpush1.xpose.msra.mxu0 0.0
    %1511 = vmatprep.mubr.f32.mxu0 0.0
    %1512 = vmatmul.mubr.f32.gmra.mrb[0].mxu0 %v1443
    %v1513 = vpop.f32.mrb[0].mxu0
    %v1514 = vadd.f32 0.0, %v1513
    %v1515 = vpop.f32.mrb[0].mxu0
    %1516 = vdwg.mxu0
    %1518 = vrot.lane.b32.xlu0 %v1432, 96
    %v1519 = vpop.permute.xlu0 %1518
    %v1520 = vsel %vm210, %v1432, 0
    %v1522 = vsel %vm210, %v1519, 0
    %1524 = vmatprep.subr.mxu0 0.0
    %1525 = vmatpush1.xpose.msra.mxu0 %v1522
    %1526 = vmatprep.subr.mxu0 0.0
    %1527 = vmatpush1.xpose.msra.mxu0 0.0
    %1528 = vmatprep.subr.mxu0 0.0
    %1529 = vmatpush1.xpose.msra.mxu0 0.0
    %1530 = vmatprep.subr.mxu0 0.0
    %1531 = vmatpush1.xpose.msra.mxu0 0.0
    %1532 = vmatprep.subr.mxu0 0.0
    %1533 = vmatpush1.xpose.msra.mxu0 0.0
    %1534 = vmatprep.subr.mxu0 0.0
    %1535 = vmatpush1.xpose.msra.mxu0 0.0
    %1536 = vmatprep.subr.mxu0 0.0
    %1537 = vmatpush1.xpose.msra.mxu0 0.0
    %1538 = vmatprep.subr.mxu0 0.0
    %1539 = vmatpush1.xpose.msra.mxu0 0.0
    %1540 = vmatprep.subr.mxu0 0.0
    %1541 = vmatpush1.xpose.msra.mxu0 0.0
    %1542 = vmatprep.subr.mxu0 0.0
    %1543 = vmatpush1.xpose.msra.mxu0 0.0
    %1544 = vmatprep.subr.mxu0 0.0
    %1545 = vmatpush1.xpose.msra.mxu0 0.0
    %1546 = vmatprep.subr.mxu0 0.0
    %1547 = vmatpush1.xpose.msra.mxu0 0.0
    %1548 = vmatprep.subr.mxu0 0.0
    %1549 = vmatpush1.xpose.msra.mxu0 0.0
    %1550 = vmatprep.subr.mxu0 0.0
    %1551 = vmatpush1.xpose.msra.mxu0 0.0
    %1552 = vmatprep.subr.mxu0 0.0
    %1553 = vmatpush1.xpose.msra.mxu0 0.0
    %1554 = vmatprep.subr.mxu0 0.0
    %1555 = vmatpush1.xpose.msra.mxu0 0.0
    %1556 = vmatprep.subr.mxu0 0.0
    %1557 = vmatpush1.xpose.msra.mxu0 0.0
    %1558 = vmatprep.subr.mxu0 0.0
    %1559 = vmatpush1.xpose.msra.mxu0 0.0
    %1560 = vmatprep.subr.mxu0 0.0
    %1561 = vmatpush1.xpose.msra.mxu0 0.0
    %1562 = vmatprep.subr.mxu0 0.0
    %1563 = vmatpush1.xpose.msra.mxu0 0.0
    %1564 = vmatprep.subr.mxu0 0.0
    %1565 = vmatpush1.xpose.msra.mxu0 0.0
    %1566 = vmatprep.subr.mxu0 0.0
    %1567 = vmatpush1.xpose.msra.mxu0 0.0
    %1568 = vmatprep.subr.mxu0 0.0
    %1569 = vmatpush1.xpose.msra.mxu0 0.0
    %1570 = vmatprep.subr.mxu0 0.0
    %1571 = vmatpush1.xpose.msra.mxu0 0.0
    %1572 = vmatprep.subr.mxu0 0.0
    %1573 = vmatpush1.xpose.msra.mxu0 0.0
    %1574 = vmatprep.subr.mxu0 0.0
    %1575 = vmatpush1.xpose.msra.mxu0 0.0
    %1576 = vmatprep.subr.mxu0 0.0
    %1577 = vmatpush1.xpose.msra.mxu0 0.0
    %1578 = vmatprep.subr.mxu0 0.0
    %1579 = vmatpush1.xpose.msra.mxu0 0.0
    %1580 = vmatprep.subr.mxu0 0.0
    %1581 = vmatpush1.xpose.msra.mxu0 0.0
    %1582 = vmatprep.subr.mxu0 0.0
    %1583 = vmatpush1.xpose.msra.mxu0 0.0
    %1584 = vmatprep.subr.mxu0 0.0
    %1585 = vmatpush1.xpose.msra.mxu0 0.0
    %1586 = vmatprep.subr.mxu0 0.0
    %1587 = vmatpush1.xpose.msra.mxu0 0.0
    %1588 = vmatprep.mubr.f32.mxu0 0.0
    %1589 = vmatmul.mubr.f32.gmra.mrb[0].mxu0 %v1520
    %v1590 = vpop.f32.mrb[0].mxu0
    %v1591 = vadd.f32 0.0, %v1590
    %v1592 = vpop.f32.mrb[0].mxu0
    %1593 = vdwg.mxu0
    %v1594 = vmul.f32 %v1514, 0.25
    %v1595 = vmul.f32 %v1591, 0.25
    %v1596 = vsel %vm364, %v1594, -inf
    %1597 = vmax.xlane.f32.xlu0 %v1596
    %v1598 = vpop.xlane.xlu0 %1597
    %v1599 = vsel %vm364, %v1595, -inf
    %1600 = vmax.xlane.f32.xlu0 %v1599
    %v1601 = vpop.xlane.xlu0 %1600
    %v1602 = vsub.f32 %v1594, %v1598
    %v1603 = vsub.f32 %v1595, %v1601
    %v1604 = vmul.f32 %v1602, 1.442695
    %v1605 = vpow.pop %v1604
    %v1606 = vmul.f32 %v1603, 1.442695
    %v1607 = vpow.pop %v1606
    %v1608 = vsel %vm364, %v1605, 0.0
    %1609 = vadd.xlane.f32.xlu0 %v1608
    %v1610 = vpop.xlane.xlu0 %1609
    %v1611 = vsel %vm364, %v1607, 0.0
    %1612 = vadd.xlane.f32.xlu0 %v1611
    %v1613 = vpop.xlane.xlu0 %1612
    %v1614 = vrcp.pop %v1610
    %v1615 = vrcp.pop %v1613
    %v1616 = vmul.f32 %v1605, %v1614
    %v1617 = vmul.f32 %v1607, %v1615
    %1618 = vrot.lane.b32.xlu0 %v1427, 64
    %v1619 = vpop.permute.xlu0 %1618
    %v1622 = vsel %vm364, %v1616, 0
    %1624 = vmatprep.subr.mxu0 0.0
    %1625 = vmatpush1.msra.mxu0 %v1619
    %1626 = vmatprep.subr.mxu0 0.0
    %1627 = vmatpush1.msra.mxu0 0.0
    %1628 = vmatprep.subr.mxu0 0.0
    %1629 = vmatpush1.msra.mxu0 0.0
    %1630 = vmatprep.subr.mxu0 0.0
    %1631 = vmatpush1.msra.mxu0 0.0
    %1632 = vmatprep.subr.mxu0 0.0
    %1633 = vmatpush1.msra.mxu0 0.0
    %1634 = vmatprep.subr.mxu0 0.0
    %1635 = vmatpush1.msra.mxu0 0.0
    %1636 = vmatprep.subr.mxu0 0.0
    %1637 = vmatpush1.msra.mxu0 0.0
    %1638 = vmatprep.subr.mxu0 0.0
    %1639 = vmatpush1.msra.mxu0 0.0
    %1640 = vmatprep.subr.mxu0 0.0
    %1641 = vmatpush1.msra.mxu0 0.0
    %1642 = vmatprep.subr.mxu0 0.0
    %1643 = vmatpush1.msra.mxu0 0.0
    %1644 = vmatprep.subr.mxu0 0.0
    %1645 = vmatpush1.msra.mxu0 0.0
    %1646 = vmatprep.subr.mxu0 0.0
    %1647 = vmatpush1.msra.mxu0 0.0
    %1648 = vmatprep.subr.mxu0 0.0
    %1649 = vmatpush1.msra.mxu0 0.0
    %1650 = vmatprep.subr.mxu0 0.0
    %1651 = vmatpush1.msra.mxu0 0.0
    %1652 = vmatprep.subr.mxu0 0.0
    %1653 = vmatpush1.msra.mxu0 0.0
    %1654 = vmatprep.subr.mxu0 0.0
    %1655 = vmatpush1.msra.mxu0 0.0
    %1656 = vmatprep.subr.mxu0 0.0
    %1657 = vmatpush1.msra.mxu0 0.0
    %1658 = vmatprep.subr.mxu0 0.0
    %1659 = vmatpush1.msra.mxu0 0.0
    %1660 = vmatprep.subr.mxu0 0.0
    %1661 = vmatpush1.msra.mxu0 0.0
    %1662 = vmatprep.subr.mxu0 0.0
    %1663 = vmatpush1.msra.mxu0 0.0
    %1664 = vmatprep.subr.mxu0 0.0
    %1665 = vmatpush1.msra.mxu0 0.0
    %1666 = vmatprep.subr.mxu0 0.0
    %1667 = vmatpush1.msra.mxu0 0.0
    %1668 = vmatprep.subr.mxu0 0.0
    %1669 = vmatpush1.msra.mxu0 0.0
    %1670 = vmatprep.subr.mxu0 0.0
    %1671 = vmatpush1.msra.mxu0 0.0
    %1672 = vmatprep.subr.mxu0 0.0
    %1673 = vmatpush1.msra.mxu0 0.0
    %1674 = vmatprep.subr.mxu0 0.0
    %1675 = vmatpush1.msra.mxu0 0.0
    %1676 = vmatprep.subr.mxu0 0.0
    %1677 = vmatpush1.msra.mxu0 0.0
    %1678 = vmatprep.subr.mxu0 0.0
    %1679 = vmatpush1.msra.mxu0 0.0
    %1680 = vmatprep.subr.mxu0 0.0
    %1681 = vmatpush1.msra.mxu0 0.0
    %1682 = vmatprep.subr.mxu0 0.0
    %1683 = vmatpush1.msra.mxu0 0.0
    %1684 = vmatprep.subr.mxu0 0.0
    %1685 = vmatpush1.msra.mxu0 0.0
    %1686 = vmatprep.subr.mxu0 0.0
    %1687 = vmatpush1.msra.mxu0 0.0
    %1688 = vmatprep.mubr.f32.mxu0 0.0
    %1689 = vmatmul.mubr.f32.gmra.mrb[0].mxu0 %v1622
    %v1690 = vpop.f32.mrb[0].mxu0
    %v1691 = vadd.f32 0.0, %v1690
    %v1692 = vpop.f32.mrb[0].mxu0
    %1693 = vdwg.mxu0
    %1694 = vrot.lane.b32.xlu0 %v1432, 64
    %v1695 = vpop.permute.xlu0 %1694
    %v1698 = vsel %vm364, %v1617, 0
    %1700 = vmatprep.subr.mxu0 0.0
    %1701 = vmatpush1.msra.mxu0 %v1695
    %1702 = vmatprep.subr.mxu0 0.0
    %1703 = vmatpush1.msra.mxu0 0.0
    %1704 = vmatprep.subr.mxu0 0.0
    %1705 = vmatpush1.msra.mxu0 0.0
    %1706 = vmatprep.subr.mxu0 0.0
    %1707 = vmatpush1.msra.mxu0 0.0
    %1708 = vmatprep.subr.mxu0 0.0
    %1709 = vmatpush1.msra.mxu0 0.0
    %1710 = vmatprep.subr.mxu0 0.0
    %1711 = vmatpush1.msra.mxu0 0.0
    %1712 = vmatprep.subr.mxu0 0.0
    %1713 = vmatpush1.msra.mxu0 0.0
    %1714 = vmatprep.subr.mxu0 0.0
    %1715 = vmatpush1.msra.mxu0 0.0
    %1716 = vmatprep.subr.mxu0 0.0
    %1717 = vmatpush1.msra.mxu0 0.0
    %1718 = vmatprep.subr.mxu0 0.0
    %1719 = vmatpush1.msra.mxu0 0.0
    %1720 = vmatprep.subr.mxu0 0.0
    %1721 = vmatpush1.msra.mxu0 0.0
    %1722 = vmatprep.subr.mxu0 0.0
    %1723 = vmatpush1.msra.mxu0 0.0
    %1724 = vmatprep.subr.mxu0 0.0
    %1725 = vmatpush1.msra.mxu0 0.0
    %1726 = vmatprep.subr.mxu0 0.0
    %1727 = vmatpush1.msra.mxu0 0.0
    %1728 = vmatprep.subr.mxu0 0.0
    %1729 = vmatpush1.msra.mxu0 0.0
    %1730 = vmatprep.subr.mxu0 0.0
    %1731 = vmatpush1.msra.mxu0 0.0
    %1732 = vmatprep.subr.mxu0 0.0
    %1733 = vmatpush1.msra.mxu0 0.0
    %1734 = vmatprep.subr.mxu0 0.0
    %1735 = vmatpush1.msra.mxu0 0.0
    %1736 = vmatprep.subr.mxu0 0.0
    %1737 = vmatpush1.msra.mxu0 0.0
    %1738 = vmatprep.subr.mxu0 0.0
    %1739 = vmatpush1.msra.mxu0 0.0
    %1740 = vmatprep.subr.mxu0 0.0
    %1741 = vmatpush1.msra.mxu0 0.0
    %1742 = vmatprep.subr.mxu0 0.0
    %1743 = vmatpush1.msra.mxu0 0.0
    %1744 = vmatprep.subr.mxu0 0.0
    %1745 = vmatpush1.msra.mxu0 0.0
    %1746 = vmatprep.subr.mxu0 0.0
    %1747 = vmatpush1.msra.mxu0 0.0
    %1748 = vmatprep.subr.mxu0 0.0
    %1749 = vmatpush1.msra.mxu0 0.0
    %1750 = vmatprep.subr.mxu0 0.0
    %1751 = vmatpush1.msra.mxu0 0.0
    %1752 = vmatprep.subr.mxu0 0.0
    %1753 = vmatpush1.msra.mxu0 0.0
    %1754 = vmatprep.subr.mxu0 0.0
    %1755 = vmatpush1.msra.mxu0 0.0
    %1756 = vmatprep.subr.mxu0 0.0
    %1757 = vmatpush1.msra.mxu0 0.0
    %1758 = vmatprep.subr.mxu0 0.0
    %1759 = vmatpush1.msra.mxu0 0.0
    %1760 = vmatprep.subr.mxu0 0.0
    %1761 = vmatpush1.msra.mxu0 0.0
    %1762 = vmatprep.subr.mxu0 0.0
    %1763 = vmatpush1.msra.mxu0 0.0
    %1764 = vmatprep.mubr.f32.mxu0 0.0
    %1765 = vmatmul.mubr.f32.gmra.mrb[0].mxu0 %v1698
    %v1766 = vpop.f32.mrb[0].mxu0
    %v1767 = vadd.f32 0.0, %v1766
    %v1768 = vpop.f32.mrb[0].mxu0
    %1769 = vdwg.mxu0
    %1770 = vrot.lane.b32.xlu0 %v1427, 112
    %v1771 = vpop.permute.xlu0 %1770
    %1772 = vrot.lane.b32.xlu0 %v1427, 80
    %v1773 = vpop.permute.xlu0 %1772
    %v1774 = vsel %vm210, %v1771, 0
    %v1776 = vsel %vm210, %v1773, 0
    %1778 = vmatprep.subr.mxu0 0.0
    %1779 = vmatpush1.xpose.msra.mxu0 %v1776
    %1780 = vmatprep.subr.mxu0 0.0
    %1781 = vmatpush1.xpose.msra.mxu0 0.0
    %1782 = vmatprep.subr.mxu0 0.0
    %1783 = vmatpush1.xpose.msra.mxu0 0.0
    %1784 = vmatprep.subr.mxu0 0.0
    %1785 = vmatpush1.xpose.msra.mxu0 0.0
    %1786 = vmatprep.subr.mxu0 0.0
    %1787 = vmatpush1.xpose.msra.mxu0 0.0
    %1788 = vmatprep.subr.mxu0 0.0
    %1789 = vmatpush1.xpose.msra.mxu0 0.0
    %1790 = vmatprep.subr.mxu0 0.0
    %1791 = vmatpush1.xpose.msra.mxu0 0.0
    %1792 = vmatprep.subr.mxu0 0.0
    %1793 = vmatpush1.xpose.msra.mxu0 0.0
    %1794 = vmatprep.subr.mxu0 0.0
    %1795 = vmatpush1.xpose.msra.mxu0 0.0
    %1796 = vmatprep.subr.mxu0 0.0
    %1797 = vmatpush1.xpose.msra.mxu0 0.0
    %1798 = vmatprep.subr.mxu0 0.0
    %1799 = vmatpush1.xpose.msra.mxu0 0.0
    %1800 = vmatprep.subr.mxu0 0.0
    %1801 = vmatpush1.xpose.msra.mxu0 0.0
    %1802 = vmatprep.subr.mxu0 0.0
    %1803 = vmatpush1.xpose.msra.mxu0 0.0
    %1804 = vmatprep.subr.mxu0 0.0
    %1805 = vmatpush1.xpose.msra.mxu0 0.0
    %1806 = vmatprep.subr.mxu0 0.0
    %1807 = vmatpush1.xpose.msra.mxu0 0.0
    %1808 = vmatprep.subr.mxu0 0.0
    %1809 = vmatpush1.xpose.msra.mxu0 0.0
    %1810 = vmatprep.subr.mxu0 0.0
    %1811 = vmatpush1.xpose.msra.mxu0 0.0
    %1812 = vmatprep.subr.mxu0 0.0
    %1813 = vmatpush1.xpose.msra.mxu0 0.0
    %1814 = vmatprep.subr.mxu0 0.0
    %1815 = vmatpush1.xpose.msra.mxu0 0.0
    %1816 = vmatprep.subr.mxu0 0.0
    %1817 = vmatpush1.xpose.msra.mxu0 0.0
    %1818 = vmatprep.subr.mxu0 0.0
    %1819 = vmatpush1.xpose.msra.mxu0 0.0
    %1820 = vmatprep.subr.mxu0 0.0
    %1821 = vmatpush1.xpose.msra.mxu0 0.0
    %1822 = vmatprep.subr.mxu0 0.0
    %1823 = vmatpush1.xpose.msra.mxu0 0.0
    %1824 = vmatprep.subr.mxu0 0.0
    %1825 = vmatpush1.xpose.msra.mxu0 0.0
    %1826 = vmatprep.subr.mxu0 0.0
    %1827 = vmatpush1.xpose.msra.mxu0 0.0
    %1828 = vmatprep.subr.mxu0 0.0
    %1829 = vmatpush1.xpose.msra.mxu0 0.0
    %1830 = vmatprep.subr.mxu0 0.0
    %1831 = vmatpush1.xpose.msra.mxu0 0.0
    %1832 = vmatprep.subr.mxu0 0.0
    %1833 = vmatpush1.xpose.msra.mxu0 0.0
    %1834 = vmatprep.subr.mxu0 0.0
    %1835 = vmatpush1.xpose.msra.mxu0 0.0
    %1836 = vmatprep.subr.mxu0 0.0
    %1837 = vmatpush1.xpose.msra.mxu0 0.0
    %1838 = vmatprep.subr.mxu0 0.0
    %1839 = vmatpush1.xpose.msra.mxu0 0.0
    %1840 = vmatprep.subr.mxu0 0.0
    %1841 = vmatpush1.xpose.msra.mxu0 0.0
    %1842 = vmatprep.mubr.f32.mxu0 0.0
    %1843 = vmatmul.mubr.f32.gmra.mrb[0].mxu0 %v1774
    %v1844 = vpop.f32.mrb[0].mxu0
    %v1845 = vadd.f32 0.0, %v1844
    %v1846 = vpop.f32.mrb[0].mxu0
    %1847 = vdwg.mxu0
    %1848 = vrot.lane.b32.xlu0 %v1432, 112
    %v1849 = vpop.permute.xlu0 %1848
    %1850 = vrot.lane.b32.xlu0 %v1432, 80
    %v1851 = vpop.permute.xlu0 %1850
    %v1852 = vsel %vm210, %v1849, 0
    %v1854 = vsel %vm210, %v1851, 0
    %1856 = vmatprep.subr.mxu0 0.0
    %1857 = vmatpush1.xpose.msra.mxu0 %v1854
    %1858 = vmatprep.subr.mxu0 0.0
    %1859 = vmatpush1.xpose.msra.mxu0 0.0
    %1860 = vmatprep.subr.mxu0 0.0
    %1861 = vmatpush1.xpose.msra.mxu0 0.0
    %1862 = vmatprep.subr.mxu0 0.0
    %1863 = vmatpush1.xpose.msra.mxu0 0.0
    %1864 = vmatprep.subr.mxu0 0.0
    %1865 = vmatpush1.xpose.msra.mxu0 0.0
    %1866 = vmatprep.subr.mxu0 0.0
    %1867 = vmatpush1.xpose.msra.mxu0 0.0
    %1868 = vmatprep.subr.mxu0 0.0
    %1869 = vmatpush1.xpose.msra.mxu0 0.0
    %1870 = vmatprep.subr.mxu0 0.0
    %1871 = vmatpush1.xpose.msra.mxu0 0.0
    %1872 = vmatprep.subr.mxu0 0.0
    %1873 = vmatpush1.xpose.msra.mxu0 0.0
    %1874 = vmatprep.subr.mxu0 0.0
    %1875 = vmatpush1.xpose.msra.mxu0 0.0
    %1876 = vmatprep.subr.mxu0 0.0
    %1877 = vmatpush1.xpose.msra.mxu0 0.0
    %1878 = vmatprep.subr.mxu0 0.0
    %1879 = vmatpush1.xpose.msra.mxu0 0.0
    %1880 = vmatprep.subr.mxu0 0.0
    %1881 = vmatpush1.xpose.msra.mxu0 0.0
    %1882 = vmatprep.subr.mxu0 0.0
    %1883 = vmatpush1.xpose.msra.mxu0 0.0
    %1884 = vmatprep.subr.mxu0 0.0
    %1885 = vmatpush1.xpose.msra.mxu0 0.0
    %1886 = vmatprep.subr.mxu0 0.0
    %1887 = vmatpush1.xpose.msra.mxu0 0.0
    %1888 = vmatprep.subr.mxu0 0.0
    %1889 = vmatpush1.xpose.msra.mxu0 0.0
    %1890 = vmatprep.subr.mxu0 0.0
    %1891 = vmatpush1.xpose.msra.mxu0 0.0
    %1892 = vmatprep.subr.mxu0 0.0
    %1893 = vmatpush1.xpose.msra.mxu0 0.0
    %1894 = vmatprep.subr.mxu0 0.0
    %1895 = vmatpush1.xpose.msra.mxu0 0.0
    %1896 = vmatprep.subr.mxu0 0.0
    %1897 = vmatpush1.xpose.msra.mxu0 0.0
    %1898 = vmatprep.subr.mxu0 0.0
    %1899 = vmatpush1.xpose.msra.mxu0 0.0
    %1900 = vmatprep.subr.mxu0 0.0
    %1901 = vmatpush1.xpose.msra.mxu0 0.0
    %1902 = vmatprep.subr.mxu0 0.0
    %1903 = vmatpush1.xpose.msra.mxu0 0.0
    %1904 = vmatprep.subr.mxu0 0.0
    %1905 = vmatpush1.xpose.msra.mxu0 0.0
    %1906 = vmatprep.subr.mxu0 0.0
    %1907 = vmatpush1.xpose.msra.mxu0 0.0
    %1908 = vmatprep.subr.mxu0 0.0
    %1909 = vmatpush1.xpose.msra.mxu0 0.0
    %1910 = vmatprep.subr.mxu0 0.0
    %1911 = vmatpush1.xpose.msra.mxu0 0.0
    %1912 = vmatprep.subr.mxu0 0.0
    %1913 = vmatpush1.xpose.msra.mxu0 0.0
    %1914 = vmatprep.subr.mxu0 0.0
    %1915 = vmatpush1.xpose.msra.mxu0 0.0
    %1916 = vmatprep.subr.mxu0 0.0
    %1917 = vmatpush1.xpose.msra.mxu0 0.0
    %1918 = vmatprep.subr.mxu0 0.0
    %1919 = vmatpush1.xpose.msra.mxu0 0.0
    %1920 = vmatprep.mubr.f32.mxu0 0.0
    %1921 = vmatmul.mubr.f32.gmra.mrb[0].mxu0 %v1852
    %v1922 = vpop.f32.mrb[0].mxu0
    %v1923 = vadd.f32 0.0, %v1922
    %v1924 = vpop.f32.mrb[0].mxu0
    %1925 = vdwg.mxu0
    %v1926 = vmul.f32 %v1845, 0.25
    %v1927 = vmul.f32 %v1923, 0.25
    %v1928 = vsel %vm364, %v1926, -inf
    %1929 = vmax.xlane.f32.xlu0 %v1928
    %v1930 = vpop.xlane.xlu0 %1929
    %v1931 = vsel %vm364, %v1927, -inf
    %1932 = vmax.xlane.f32.xlu0 %v1931
    %v1933 = vpop.xlane.xlu0 %1932
    %v1934 = vsub.f32 %v1926, %v1930
    %v1935 = vsub.f32 %v1927, %v1933
    %v1936 = vmul.f32 %v1934, 1.442695
    %v1937 = vpow.pop %v1936
    %v1938 = vmul.f32 %v1935, 1.442695
    %v1939 = vpow.pop %v1938
    %v1940 = vsel %vm364, %v1937, 0.0
    %1941 = vadd.xlane.f32.xlu0 %v1940
    %v1942 = vpop.xlane.xlu0 %1941
    %v1943 = vsel %vm364, %v1939, 0.0
    %1944 = vadd.xlane.f32.xlu0 %v1943
    %v1945 = vpop.xlane.xlu0 %1944
    %v1946 = vrcp.pop %v1942
    %v1947 = vrcp.pop %v1945
    %v1948 = vmul.f32 %v1937, %v1946
    %v1949 = vmul.f32 %v1939, %v1947
    %1950 = vrot.lane.b32.xlu0 %v1427, 48
    %v1951 = vpop.permute.xlu0 %1950
    %v1954 = vsel %vm364, %v1948, 0
    %1956 = vmatprep.subr.mxu0 0.0
    %1957 = vmatpush1.msra.mxu0 %v1951
    %1958 = vmatprep.subr.mxu0 0.0
    %1959 = vmatpush1.msra.mxu0 0.0
    %1960 = vmatprep.subr.mxu0 0.0
    %1961 = vmatpush1.msra.mxu0 0.0
    %1962 = vmatprep.subr.mxu0 0.0
    %1963 = vmatpush1.msra.mxu0 0.0
    %1964 = vmatprep.subr.mxu0 0.0
    %1965 = vmatpush1.msra.mxu0 0.0
    %1966 = vmatprep.subr.mxu0 0.0
    %1967 = vmatpush1.msra.mxu0 0.0
    %1968 = vmatprep.subr.mxu0 0.0
    %1969 = vmatpush1.msra.mxu0 0.0
    %1970 = vmatprep.subr.mxu0 0.0
    %1971 = vmatpush1.msra.mxu0 0.0
    %1972 = vmatprep.subr.mxu0 0.0
    %1973 = vmatpush1.msra.mxu0 0.0
    %1974 = vmatprep.subr.mxu0 0.0
    %1975 = vmatpush1.msra.mxu0 0.0
    %1976 = vmatprep.subr.mxu0 0.0
    %1977 = vmatpush1.msra.mxu0 0.0
    %1978 = vmatprep.subr.mxu0 0.0
    %1979 = vmatpush1.msra.mxu0 0.0
    %1980 = vmatprep.subr.mxu0 0.0
    %1981 = vmatpush1.msra.mxu0 0.0
    %1982 = vmatprep.subr.mxu0 0.0
    %1983 = vmatpush1.msra.mxu0 0.0
    %1984 = vmatprep.subr.mxu0 0.0
    %1985 = vmatpush1.msra.mxu0 0.0
    %1986 = vmatprep.subr.mxu0 0.0
    %1987 = vmatpush1.msra.mxu0 0.0
    %1988 = vmatprep.subr.mxu0 0.0
    %1989 = vmatpush1.msra.mxu0 0.0
    %1990 = vmatprep.subr.mxu0 0.0
    %1991 = vmatpush1.msra.mxu0 0.0
    %1992 = vmatprep.subr.mxu0 0.0
    %1993 = vmatpush1.msra.mxu0 0.0
    %1994 = vmatprep.subr.mxu0 0.0
    %1995 = vmatpush1.msra.mxu0 0.0
    %1996 = vmatprep.subr.mxu0 0.0
    %1997 = vmatpush1.msra.mxu0 0.0
    %1998 = vmatprep.subr.mxu0 0.0
    %1999 = vmatpush1.msra.mxu0 0.0
    %2000 = vmatprep.subr.mxu0 0.0
    %2001 = vmatpush1.msra.mxu0 0.0
    %2002 = vmatprep.subr.mxu0 0.0
    %2003 = vmatpush1.msra.mxu0 0.0
    %2004 = vmatprep.subr.mxu0 0.0
    %2005 = vmatpush1.msra.mxu0 0.0
    %2006 = vmatprep.subr.mxu0 0.0
    %2007 = vmatpush1.msra.mxu0 0.0
    %2008 = vmatprep.subr.mxu0 0.0
    %2009 = vmatpush1.msra.mxu0 0.0
    %2010 = vmatprep.subr.mxu0 0.0
    %2011 = vmatpush1.msra.mxu0 0.0
    %2012 = vmatprep.subr.mxu0 0.0
    %2013 = vmatpush1.msra.mxu0 0.0
    %2014 = vmatprep.subr.mxu0 0.0
    %2015 = vmatpush1.msra.mxu0 0.0
    %2016 = vmatprep.subr.mxu0 0.0
    %2017 = vmatpush1.msra.mxu0 0.0
    %2018 = vmatprep.subr.mxu0 0.0
    %2019 = vmatpush1.msra.mxu0 0.0
    %2020 = vmatprep.mubr.f32.mxu0 0.0
    %2021 = vmatmul.mubr.f32.gmra.mrb[0].mxu0 %v1954
    %v2022 = vpop.f32.mrb[0].mxu0
    %v2023 = vadd.f32 0.0, %v2022
    %v2024 = vpop.f32.mrb[0].mxu0
    %2025 = vdwg.mxu0
    %2026 = vrot.lane.b32.xlu0 %v1432, 48
    %v2027 = vpop.permute.xlu0 %2026
    %v2030 = vsel %vm364, %v1949, 0
    %2032 = vmatprep.subr.mxu0 0.0
    %2033 = vmatpush1.msra.mxu0 %v2027
    %2034 = vmatprep.subr.mxu0 0.0
    %2035 = vmatpush1.msra.mxu0 0.0
    %2036 = vmatprep.subr.mxu0 0.0
    %2037 = vmatpush1.msra.mxu0 0.0
    %2038 = vmatprep.subr.mxu0 0.0
    %2039 = vmatpush1.msra.mxu0 0.0
    %2040 = vmatprep.subr.mxu0 0.0
    %2041 = vmatpush1.msra.mxu0 0.0
    %2042 = vmatprep.subr.mxu0 0.0
    %2043 = vmatpush1.msra.mxu0 0.0
    %2044 = vmatprep.subr.mxu0 0.0
    %2045 = vmatpush1.msra.mxu0 0.0
    %2046 = vmatprep.subr.mxu0 0.0
    %2047 = vmatpush1.msra.mxu0 0.0
    %2048 = vmatprep.subr.mxu0 0.0
    %2049 = vmatpush1.msra.mxu0 0.0
    %2050 = vmatprep.subr.mxu0 0.0
    %2051 = vmatpush1.msra.mxu0 0.0
    %2052 = vmatprep.subr.mxu0 0.0
    %2053 = vmatpush1.msra.mxu0 0.0
    %2054 = vmatprep.subr.mxu0 0.0
    %2055 = vmatpush1.msra.mxu0 0.0
    %2056 = vmatprep.subr.mxu0 0.0
    %2057 = vmatpush1.msra.mxu0 0.0
    %2058 = vmatprep.subr.mxu0 0.0
    %2059 = vmatpush1.msra.mxu0 0.0
    %2060 = vmatprep.subr.mxu0 0.0
    %2061 = vmatpush1.msra.mxu0 0.0
    %2062 = vmatprep.subr.mxu0 0.0
    %2063 = vmatpush1.msra.mxu0 0.0
    %2064 = vmatprep.subr.mxu0 0.0
    %2065 = vmatpush1.msra.mxu0 0.0
    %2066 = vmatprep.subr.mxu0 0.0
    %2067 = vmatpush1.msra.mxu0 0.0
    %2068 = vmatprep.subr.mxu0 0.0
    %2069 = vmatpush1.msra.mxu0 0.0
    %2070 = vmatprep.subr.mxu0 0.0
    %2071 = vmatpush1.msra.mxu0 0.0
    %2072 = vmatprep.subr.mxu0 0.0
    %2073 = vmatpush1.msra.mxu0 0.0
    %2074 = vmatprep.subr.mxu0 0.0
    %2075 = vmatpush1.msra.mxu0 0.0
    %2076 = vmatprep.subr.mxu0 0.0
    %2077 = vmatpush1.msra.mxu0 0.0
    %2078 = vmatprep.subr.mxu0 0.0
    %2079 = vmatpush1.msra.mxu0 0.0
    %2080 = vmatprep.subr.mxu0 0.0
    %2081 = vmatpush1.msra.mxu0 0.0
    %2082 = vmatprep.subr.mxu0 0.0
    %2083 = vmatpush1.msra.mxu0 0.0
    %2084 = vmatprep.subr.mxu0 0.0
    %2085 = vmatpush1.msra.mxu0 0.0
    %2086 = vmatprep.subr.mxu0 0.0
    %2087 = vmatpush1.msra.mxu0 0.0
    %2088 = vmatprep.subr.mxu0 0.0
    %2089 = vmatpush1.msra.mxu0 0.0
    %2090 = vmatprep.subr.mxu0 0.0
    %2091 = vmatpush1.msra.mxu0 0.0
    %2092 = vmatprep.subr.mxu0 0.0
    %2093 = vmatpush1.msra.mxu0 0.0
    %2094 = vmatprep.subr.mxu0 0.0
    %2095 = vmatpush1.msra.mxu0 0.0
    %2096 = vmatprep.mubr.f32.mxu0 0.0
    %2097 = vmatmul.mubr.f32.gmra.mrb[0].mxu0 %v2030
    %v2098 = vpop.f32.mrb[0].mxu0
    %v2099 = vadd.f32 0.0, %v2098
    %v2100 = vpop.f32.mrb[0].mxu0
    %2101 = vdwg.mxu0
    %v2103 = vsel %vm210, %v2023, 0
    %v2106 = vsel %vm210, %v2099, 0
    %2108 = vmatprep.subr.mxu0 0.0
    %2109 = vmatpush1.msra.mxu0 %v1438
    %2110 = vmatprep.subr.mxu0 0.0
    %2111 = vmatpush1.msra.mxu0 %v1439
    %2112 = vmatprep.subr.mxu0 0.0
    %2113 = vmatpush1.msra.mxu0 0.0
    %2114 = vmatprep.subr.mxu0 0.0
    %2115 = vmatpush1.msra.mxu0 0.0
    %2116 = vmatprep.subr.mxu0 0.0
    %2117 = vmatpush1.msra.mxu0 0.0
    %2118 = vmatprep.subr.mxu0 0.0
    %2119 = vmatpush1.msra.mxu0 0.0
    %2120 = vmatprep.subr.mxu0 0.0
    %2121 = vmatpush1.msra.mxu0 0.0
    %2122 = vmatprep.subr.mxu0 0.0
    %2123 = vmatpush1.msra.mxu0 0.0
    %2124 = vmatprep.subr.mxu0 0.0
    %2125 = vmatpush1.msra.mxu0 0.0
    %2126 = vmatprep.subr.mxu0 0.0
    %2127 = vmatpush1.msra.mxu0 0.0
    %2128 = vmatprep.subr.mxu0 0.0
    %2129 = vmatpush1.msra.mxu0 0.0
    %2130 = vmatprep.subr.mxu0 0.0
    %2131 = vmatpush1.msra.mxu0 0.0
    %2132 = vmatprep.subr.mxu0 0.0
    %2133 = vmatpush1.msra.mxu0 0.0
    %2134 = vmatprep.subr.mxu0 0.0
    %2135 = vmatpush1.msra.mxu0 0.0
    %2136 = vmatprep.subr.mxu0 0.0
    %2137 = vmatpush1.msra.mxu0 0.0
    %2138 = vmatprep.subr.mxu0 0.0
    %2139 = vmatpush1.msra.mxu0 0.0
    %2140 = vmatprep.subr.mxu0 0.0
    %2141 = vmatpush1.msra.mxu0 0.0
    %2142 = vmatprep.subr.mxu0 0.0
    %2143 = vmatpush1.msra.mxu0 0.0
    %2144 = vmatprep.subr.mxu0 0.0
    %2145 = vmatpush1.msra.mxu0 0.0
    %2146 = vmatprep.subr.mxu0 0.0
    %2147 = vmatpush1.msra.mxu0 0.0
    %2148 = vmatprep.subr.mxu0 0.0
    %2149 = vmatpush1.msra.mxu0 0.0
    %2150 = vmatprep.subr.mxu0 0.0
    %2151 = vmatpush1.msra.mxu0 0.0
    %2152 = vmatprep.subr.mxu0 0.0
    %2153 = vmatpush1.msra.mxu0 0.0
    %2154 = vmatprep.subr.mxu0 0.0
    %2155 = vmatpush1.msra.mxu0 0.0
    %2156 = vmatprep.subr.mxu0 0.0
    %2157 = vmatpush1.msra.mxu0 0.0
    %2158 = vmatprep.subr.mxu0 0.0
    %2159 = vmatpush1.msra.mxu0 0.0
    %2160 = vmatprep.subr.mxu0 0.0
    %2161 = vmatpush1.msra.mxu0 0.0
    %2162 = vmatprep.subr.mxu0 0.0
    %2163 = vmatpush1.msra.mxu0 0.0
    %2164 = vmatprep.subr.mxu0 0.0
    %2165 = vmatpush1.msra.mxu0 0.0
    %2166 = vmatprep.subr.mxu0 0.0
    %2167 = vmatpush1.msra.mxu0 0.0
    %2168 = vmatprep.subr.mxu0 0.0
    %2169 = vmatpush1.msra.mxu0 0.0
    %2170 = vmatprep.subr.mxu0 0.0
    %2171 = vmatpush1.msra.mxu0 0.0
    %2172 = vmatprep.mubr.f32.mxu0 0.0
    %2173 = vmatmul.mubr.f32.gmra.mrb[0].mxu0 %v2103
    %v2174 = vpop.f32.mrb[0].mxu0
    %v2175 = vadd.f32 0.0, %v2174
    %v2176 = vpop.f32.mrb[0].mxu0
    %2177 = vmatprep.mubr.f32.mxu0 0.0
    %2178 = vmatmul.mubr.f32.gmra.mrb[0].mxu0 %v2106
    %v2179 = vpop.f32.mrb[0].mxu0
    %v2180 = vadd.f32 0.0, %v2179
    %v2181 = vpop.f32.mrb[0].mxu0
    %2182 = vdwg.mxu0
    %v2184 = vsel %vm210, %v1691, 0
    %v2187 = vsel %vm210, %v1767, 0
    %2189 = vmatprep.subr.mxu0 0.0
    %2190 = vmatpush1.msra.mxu0 %v1436
    %2191 = vmatprep.subr.mxu0 0.0
    %2192 = vmatpush1.msra.mxu0 %v1437
    %2193 = vmatprep.subr.mxu0 0.0
    %2194 = vmatpush1.msra.mxu0 0.0
    %2195 = vmatprep.subr.mxu0 0.0
    %2196 = vmatpush1.msra.mxu0 0.0
    %2197 = vmatprep.subr.mxu0 0.0
    %2198 = vmatpush1.msra.mxu0 0.0
    %2199 = vmatprep.subr.mxu0 0.0
    %2200 = vmatpush1.msra.mxu0 0.0
    %2201 = vmatprep.subr.mxu0 0.0
    %2202 = vmatpush1.msra.mxu0 0.0
    %2203 = vmatprep.subr.mxu0 0.0
    %2204 = vmatpush1.msra.mxu0 0.0
    %2205 = vmatprep.subr.mxu0 0.0
    %2206 = vmatpush1.msra.mxu0 0.0
    %2207 = vmatprep.subr.mxu0 0.0
    %2208 = vmatpush1.msra.mxu0 0.0
    %2209 = vmatprep.subr.mxu0 0.0
    %2210 = vmatpush1.msra.mxu0 0.0
    %2211 = vmatprep.subr.mxu0 0.0
    %2212 = vmatpush1.msra.mxu0 0.0
    %2213 = vmatprep.subr.mxu0 0.0
    %2214 = vmatpush1.msra.mxu0 0.0
    %2215 = vmatprep.subr.mxu0 0.0
    %2216 = vmatpush1.msra.mxu0 0.0
    %2217 = vmatprep.subr.mxu0 0.0
    %2218 = vmatpush1.msra.mxu0 0.0
    %2219 = vmatprep.subr.mxu0 0.0
    %2220 = vmatpush1.msra.mxu0 0.0
    %2221 = vmatprep.subr.mxu0 0.0
    %2222 = vmatpush1.msra.mxu0 0.0
    %2223 = vmatprep.subr.mxu0 0.0
    %2224 = vmatpush1.msra.mxu0 0.0
    %2225 = vmatprep.subr.mxu0 0.0
    %2226 = vmatpush1.msra.mxu0 0.0
    %2227 = vmatprep.subr.mxu0 0.0
    %2228 = vmatpush1.msra.mxu0 0.0
    %2229 = vmatprep.subr.mxu0 0.0
    %2230 = vmatpush1.msra.mxu0 0.0
    %2231 = vmatprep.subr.mxu0 0.0
    %2232 = vmatpush1.msra.mxu0 0.0
    %2233 = vmatprep.subr.mxu0 0.0
    %2234 = vmatpush1.msra.mxu0 0.0
    %2235 = vmatprep.subr.mxu0 0.0
    %2236 = vmatpush1.msra.mxu0 0.0
    %2237 = vmatprep.subr.mxu0 0.0
    %2238 = vmatpush1.msra.mxu0 0.0
    %2239 = vmatprep.subr.mxu0 0.0
    %2240 = vmatpush1.msra.mxu0 0.0
    %2241 = vmatprep.subr.mxu0 0.0
    %2242 = vmatpush1.msra.mxu0 0.0
    %2243 = vmatprep.subr.mxu0 0.0
    %2244 = vmatpush1.msra.mxu0 0.0
    %2245 = vmatprep.subr.mxu0 0.0
    %2246 = vmatpush1.msra.mxu0 0.0
    %2247 = vmatprep.subr.mxu0 0.0
    %2248 = vmatpush1.msra.mxu0 0.0
    %2249 = vmatprep.subr.mxu0 0.0
    %2250 = vmatpush1.msra.mxu0 0.0
    %2251 = vmatprep.subr.mxu0 0.0
    %2252 = vmatpush1.msra.mxu0 0.0
    %2253 = vmatprep.mubr.f32.mxu0 0.0
    %2254 = vmatmul.mubr.f32.gmra.mrb[0].mxu0 %v2184
    %v2255 = vpop.f32.mrb[0].mxu0
    %v2256 = vadd.f32 %v2175, %v2255
    %v2257 = vpop.f32.mrb[0].mxu0
    %2258 = vmatprep.mubr.f32.mxu0 0.0
    %2259 = vmatmul.mubr.f32.gmra.mrb[0].mxu0 %v2187
    %v2260 = vpop.f32.mrb[0].mxu0
    %v2261 = vadd.f32 %v2180, %v2260
    %v2262 = vpop.f32.mrb[0].mxu0
    %2263 = vdwg.mxu0
    %s2264 = scalar_lea.vmem %s6, 1
    %v2265 = vld [vmem:[%s2264] sm:$0x1]
    %v2267 = vlaneseq
    %v2268 = vshrl.u32 %v2267, 7
    %v2269 = vsub.s32 0, %v2268
    %v2270 = vrot.slane %v2265, %v2269
    %v2272 = vadd.f32 %v2256, %v2270
    %v2273 = vadd.f32 %v2261, %v2270
    %v2274 = vadd.f32 %v1339, %v2272
    %v2275 = vadd.f32 %v1340, %v2273
    %s2276 = scalar_lea.vmem %s7, 1
    %v2277 = vld [vmem:[%s2276] sm:$0x1]
    %s2278 = scalar_lea.vmem %s8, 1
    %v2279 = vld [vmem:[%s2278] sm:$0x1]
    %v2280 = vsel %vm67, %v2274, 0.0
    %2281 = vadd.xlane.f32.xlu0 %v2280
    %v2282 = vpop.xlane.xlu0 %2281
    %v2283 = vsel %vm67, %v2275, 0.0
    %2284 = vadd.xlane.f32.xlu0 %v2283
    %v2285 = vpop.xlane.xlu0 %2284
    %v2286 = vmul.f32 %v2282, %v74
    %v2287 = vmul.f32 %v2285, %v74
    %v2288 = vsub.f32 %v2274, %v2286
    %v2289 = vsub.f32 %v2275, %v2287
    %v2290 = vmul.f32 %v2288, %v2288
    %v2291 = vmul.f32 %v2289, %v2289
    %v2292 = vsel %vm67, %v2290, 0.0
    %2293 = vadd.xlane.f32.xlu0 %v2292
    %v2294 = vpop.xlane.xlu0 %2293
    %v2295 = vsel %vm67, %v2291, 0.0
    %2296 = vadd.xlane.f32.xlu0 %v2295
    %v2297 = vpop.xlane.xlu0 %2296
    %v2298 = vmul.f32 %v2294, %v74
    %v2299 = vmul.f32 %v2297, %v74
    %v2300 = vadd.f32 %v2298, 1e-12
    %v2301 = vadd.f32 %v2299, 1e-12
    %v2302 = vrsqrt.pop %v2300
    %v2303 = vrsqrt.pop %v2301
    %v2304 = vmul.f32 %v2288, %v2302
    %v2305 = vmul.f32 %v2289, %v2303
    %v2307 = vlaneseq
    %v2308 = vshrl.u32 %v2307, 7
    %v2309 = vsub.s32 0, %v2308
    %v2310 = vrot.slane %v2277, %v2309
    %v2312 = vmul.f32 %v2304, %v2310
    %v2313 = vmul.f32 %v2305, %v2310
    %v2315 = vlaneseq
    %v2316 = vshrl.u32 %v2315, 7
    %v2317 = vsub.s32 0, %v2316
    %v2318 = vrot.slane %v2279, %v2317
    %v2320 = vadd.f32 %v2312, %v2318
    %v2321 = vadd.f32 %v2313, %v2318
    %s2322 = scalar_lea.vmem %s9, 32
    %v2323 = vld [vmem:[%s2322] sm:$0xff]
    %v2324 = vld [vmem:[%s2322 + $0x8] sm:$0xff]
    %v2325 = vld [vmem:[%s2322 + $0x10] sm:$0xff]
    %v2326 = vld [vmem:[%s2322 + $0x18] sm:$0xff]
    %s2327 = scalar_lea.vmem %s10, 1
    %v2328 = vld [vmem:[%s2327] sm:$0x1]
    %v2330 = vlaneseq
    %v2331 = vshrl.u32 %v2330, 7
    %v2332 = vsub.s32 0, %v2331
    %v2333 = vrot.slane %v2328, %v2332
    %v2336 = vsel %vm67, %v2320, 0
    %v2339 = vsel %vm67, %v2321, 0
    %2341 = vmatprep.subr.mxu0 0.0
    %2342 = vmatpush1.msra.mxu0 %v2323
    %2343 = vmatprep.subr.mxu0 0.0
    %2344 = vmatpush1.msra.mxu0 %v2324
    %2345 = vmatprep.subr.mxu0 0.0
    %2346 = vmatpush1.msra.mxu0 %v2325
    %2347 = vmatprep.subr.mxu0 0.0
    %2348 = vmatpush1.msra.mxu0 %v2326
    %2349 = vmatprep.subr.mxu0 0.0
    %2350 = vmatpush1.msra.mxu0 0.0
    %2351 = vmatprep.subr.mxu0 0.0
    %2352 = vmatpush1.msra.mxu0 0.0
    %2353 = vmatprep.subr.mxu0 0.0
    %2354 = vmatpush1.msra.mxu0 0.0
    %2355 = vmatprep.subr.mxu0 0.0
    %2356 = vmatpush1.msra.mxu0 0.0
    %2357 = vmatprep.subr.mxu0 0.0
    %2358 = vmatpush1.msra.mxu0 0.0
    %2359 = vmatprep.subr.mxu0 0.0
    %2360 = vmatpush1.msra.mxu0 0.0
    %2361 = vmatprep.subr.mxu0 0.0
    %2362 = vmatpush1.msra.mxu0 0.0
    %2363 = vmatprep.subr.mxu0 0.0
    %2364 = vmatpush1.msra.mxu0 0.0
    %2365 = vmatprep.subr.mxu0 0.0
    %2366 = vmatpush1.msra.mxu0 0.0
    %2367 = vmatprep.subr.mxu0 0.0
    %2368 = vmatpush1.msra.mxu0 0.0
    %2369 = vmatprep.subr.mxu0 0.0
    %2370 = vmatpush1.msra.mxu0 0.0
    %2371 = vmatprep.subr.mxu0 0.0
    %2372 = vmatpush1.msra.mxu0 0.0
    %2373 = vmatprep.subr.mxu0 0.0
    %2374 = vmatpush1.msra.mxu0 0.0
    %2375 = vmatprep.subr.mxu0 0.0
    %2376 = vmatpush1.msra.mxu0 0.0
    %2377 = vmatprep.subr.mxu0 0.0
    %2378 = vmatpush1.msra.mxu0 0.0
    %2379 = vmatprep.subr.mxu0 0.0
    %2380 = vmatpush1.msra.mxu0 0.0
    %2381 = vmatprep.subr.mxu0 0.0
    %2382 = vmatpush1.msra.mxu0 0.0
    %2383 = vmatprep.subr.mxu0 0.0
    %2384 = vmatpush1.msra.mxu0 0.0
    %2385 = vmatprep.subr.mxu0 0.0
    %2386 = vmatpush1.msra.mxu0 0.0
    %2387 = vmatprep.subr.mxu0 0.0
    %2388 = vmatpush1.msra.mxu0 0.0
    %2389 = vmatprep.subr.mxu0 0.0
    %2390 = vmatpush1.msra.mxu0 0.0
    %2391 = vmatprep.subr.mxu0 0.0
    %2392 = vmatpush1.msra.mxu0 0.0
    %2393 = vmatprep.subr.mxu0 0.0
    %2394 = vmatpush1.msra.mxu0 0.0
    %2395 = vmatprep.subr.mxu0 0.0
    %2396 = vmatpush1.msra.mxu0 0.0
    %2397 = vmatprep.subr.mxu0 0.0
    %2398 = vmatpush1.msra.mxu0 0.0
    %2399 = vmatprep.subr.mxu0 0.0
    %2400 = vmatpush1.msra.mxu0 0.0
    %2401 = vmatprep.subr.mxu0 0.0
    %2402 = vmatpush1.msra.mxu0 0.0
    %2403 = vmatprep.subr.mxu0 0.0
    %2404 = vmatpush1.msra.mxu0 0.0
    %2405 = vmatprep.mubr.f32.mxu0 0.0
    %2406 = vmatmul.mubr.f32.gmra.mrb[0].mxu0 %v2336
    %v2407 = vpop.f32.mrb[0].mxu0
    %v2408 = vadd.f32 %v2333, %v2407
    %v2409 = vpop.f32.mrb[0].mxu0
    %2410 = vmatprep.mubr.f32.mxu0 0.0
    %2411 = vmatmul.mubr.f32.gmra.mrb[0].mxu0 %v2339
    %v2412 = vpop.f32.mrb[0].mxu0
    %v2413 = vadd.f32 %v2333, %v2412
    %v2414 = vpop.f32.mrb[0].mxu0
    %2415 = vdwg.mxu0
    %v2416 = vmul.f32 %v2408, 0.5
    %v2417 = vmul.f32 %v2413, 0.5
    %v2418 = vmul.f32 %v2408, 0.044715
    %v2419 = vmul.f32 %v2413, 0.044715
    %v2420 = vmul.f32 %v2418, %v2408
    %v2421 = vmul.f32 %v2419, %v2413
    %v2422 = vmul.f32 %v2420, %v2408
    %v2423 = vmul.f32 %v2421, %v2413
    %v2424 = vadd.f32 %v2408, %v2422
    %v2425 = vadd.f32 %v2413, %v2423
    %v2426 = vmul.f32 %v2424, 0.7978846
    %v2427 = vmul.f32 %v2425, 0.7978846
    %v2428 = vtanh.pop %v2426
    %v2429 = vtanh.pop %v2427
    %v2430 = vadd.f32 %v2428, 1.0
    %v2431 = vadd.f32 %v2429, 1.0
    %v2432 = vmul.f32 %v2416, %v2430
    %v2433 = vmul.f32 %v2417, %v2431
    %s2434 = scalar_lea.vmem %s11, 64
    %v2435 = vld [vmem:[%s2434] sm:$0xff]
    %v2436 = vld [vmem:[%s2434 + $0x8] sm:$0xff]
    %v2437 = vld [vmem:[%s2434 + $0x10] sm:$0xff]
    %v2438 = vld [vmem:[%s2434 + $0x18] sm:$0xff]
    %v2439 = vld [vmem:[%s2434 + $0x20] sm:$0xff]
    %v2440 = vld [vmem:[%s2434 + $0x28] sm:$0xff]
    %v2441 = vld [vmem:[%s2434 + $0x30] sm:$0xff]
    %v2442 = vld [vmem:[%s2434 + $0x38] sm:$0xff]
    %s2443 = scalar_lea.vmem %s12, 1
    %v2444 = vld [vmem:[%s2443] sm:$0x1]
    %v2446 = vlaneseq
    %v2447 = vshrl.u32 %v2446, 7
    %v2448 = vsub.s32 0, %v2447
    %v2449 = vrot.slane %v2444, %v2448
    %v2452 = vsel %vm1213, %v2432, 0
    %v2455 = vsel %vm1213, %v2433, 0
    %2457 = vmatprep.subr.mxu0 0.0
    %2458 = vmatpush1.msra.mxu0 %v2435
    %2459 = vmatprep.subr.mxu0 0.0
    %2460 = vmatpush1.msra.mxu0 %v2436
    %2461 = vmatprep.subr.mxu0 0.0
    %2462 = vmatpush1.msra.mxu0 %v2437
    %2463 = vmatprep.subr.mxu0 0.0
    %2464 = vmatpush1.msra.mxu0 %v2438
    %2465 = vmatprep.subr.mxu0 0.0
    %2466 = vmatpush1.msra.mxu0 %v2439
    %2467 = vmatprep.subr.mxu0 0.0
    %2468 = vmatpush1.msra.mxu0 %v2440
    %2469 = vmatprep.subr.mxu0 0.0
    %2470 = vmatpush1.msra.mxu0 %v2441
    %2471 = vmatprep.subr.mxu0 0.0
    %2472 = vmatpush1.msra.mxu0 %v2442
    %2473 = vmatprep.subr.mxu0 0.0
    %2474 = vmatpush1.msra.mxu0 0.0
    %2475 = vmatprep.subr.mxu0 0.0
    %2476 = vmatpush1.msra.mxu0 0.0
    %2477 = vmatprep.subr.mxu0 0.0
    %2478 = vmatpush1.msra.mxu0 0.0
    %2479 = vmatprep.subr.mxu0 0.0
    %2480 = vmatpush1.msra.mxu0 0.0
    %2481 = vmatprep.subr.mxu0 0.0
    %2482 = vmatpush1.msra.mxu0 0.0
    %2483 = vmatprep.subr.mxu0 0.0
    %2484 = vmatpush1.msra.mxu0 0.0
    %2485 = vmatprep.subr.mxu0 0.0
    %2486 = vmatpush1.msra.mxu0 0.0
    %2487 = vmatprep.subr.mxu0 0.0
    %2488 = vmatpush1.msra.mxu0 0.0
    %2489 = vmatprep.subr.mxu0 0.0
    %2490 = vmatpush1.msra.mxu0 0.0
    %2491 = vmatprep.subr.mxu0 0.0
    %2492 = vmatpush1.msra.mxu0 0.0
    %2493 = vmatprep.subr.mxu0 0.0
    %2494 = vmatpush1.msra.mxu0 0.0
    %2495 = vmatprep.subr.mxu0 0.0
    %2496 = vmatpush1.msra.mxu0 0.0
    %2497 = vmatprep.subr.mxu0 0.0
    %2498 = vmatpush1.msra.mxu0 0.0
    %2499 = vmatprep.subr.mxu0 0.0
    %2500 = vmatpush1.msra.mxu0 0.0
    %2501 = vmatprep.subr.mxu0 0.0
    %2502 = vmatpush1.msra.mxu0 0.0
    %2503 = vmatprep.subr.mxu0 0.0
    %2504 = vmatpush1.msra.mxu0 0.0
    %2505 = vmatprep.subr.mxu0 0.0
    %2506 = vmatpush1.msra.mxu0 0.0
    %2507 = vmatprep.subr.mxu0 0.0
    %2508 = vmatpush1.msra.mxu0 0.0
    %2509 = vmatprep.subr.mxu0 0.0
    %2510 = vmatpush1.msra.mxu0 0.0
    %2511 = vmatprep.subr.mxu0 0.0
    %2512 = vmatpush1.msra.mxu0 0.0
    %2513 = vmatprep.subr.mxu0 0.0
    %2514 = vmatpush1.msra.mxu0 0.0
    %2515 = vmatprep.subr.mxu0 0.0
    %2516 = vmatpush1.msra.mxu0 0.0
    %2517 = vmatprep.subr.mxu0 0.0
    %2518 = vmatpush1.msra.mxu0 0.0
    %2519 = vmatprep.subr.mxu0 0.0
    %2520 = vmatpush1.msra.mxu0 0.0
    %2521 = vmatprep.mubr.f32.mxu0 0.0
    %2522 = vmatmul.mubr.f32.gmra.mrb[0].mxu0 %v2452
    %v2523 = vpop.f32.mrb[0].mxu0
    %v2524 = vadd.f32 %v2449, %v2523
    %v2525 = vpop.f32.mrb[0].mxu0
    %2526 = vmatprep.mubr.f32.mxu0 0.0
    %2527 = vmatmul.mubr.f32.gmra.mrb[0].mxu0 %v2455
    %v2528 = vpop.f32.mrb[0].mxu0
    %v2529 = vadd.f32 %v2449, %v2528
    %v2530 = vpop.f32.mrb[0].mxu0
    %2531 = vdwg.mxu0
    %v2532 = vadd.f32 %v2320, %v2524
    %v2533 = vadd.f32 %v2321, %v2529
    %s2534 = scalar_lea.vmem %s13, 1
    %v2535 = vld [vmem:[%s2534] sm:$0x1]
    %s2536 = scalar_lea.vmem %s14, 1
    %v2537 = vld [vmem:[%s2536] sm:$0x1]
    %v2538 = vsel %vm67, %v2532, 0.0
    %2539 = vadd.xlane.f32.xlu0 %v2538
    %v2540 = vpop.xlane.xlu0 %2539
    %v2541 = vsel %vm67, %v2533, 0.0
    %2542 = vadd.xlane.f32.xlu0 %v2541
    %v2543 = vpop.xlane.xlu0 %2542
    %v2544 = vmul.f32 %v2540, %v74
    %v2545 = vmul.f32 %v2543, %v74
    %v2546 = vsub.f32 %v2532, %v2544
    %v2547 = vsub.f32 %v2533, %v2545
    %v2548 = vmul.f32 %v2546, %v2546
    %v2549 = vmul.f32 %v2547, %v2547
    %v2550 = vsel %vm67, %v2548, 0.0
    %2551 = vadd.xlane.f32.xlu0 %v2550
    %v2552 = vpop.xlane.xlu0 %2551
    %v2553 = vsel %vm67, %v2549, 0.0
    %2554 = vadd.xlane.f32.xlu0 %v2553
    %v2555 = vpop.xlane.xlu0 %2554
    %v2556 = vmul.f32 %v2552, %v74
    %v2557 = vmul.f32 %v2555, %v74
    %v2558 = vadd.f32 %v2556, 1e-12
    %v2559 = vadd.f32 %v2557, 1e-12
    %v2560 = vrsqrt.pop %v2558
    %v2561 = vrsqrt.pop %v2559
    %v2562 = vmul.f32 %v2546, %v2560
    %v2563 = vmul.f32 %v2547, %v2561
    %v2565 = vlaneseq
    %v2566 = vshrl.u32 %v2565, 7
    %v2567 = vsub.s32 0, %v2566
    %v2568 = vrot.slane %v2535, %v2567
    %v2570 = vmul.f32 %v2562, %v2568
    %v2571 = vmul.f32 %v2563, %v2568
    %v2573 = vlaneseq
    %v2574 = vshrl.u32 %v2573, 7
    %v2575 = vsub.s32 0, %v2574
    %v2576 = vrot.slane %v2537, %v2575
    %v2578 = vadd.f32 %v2570, %v2576
    %v2579 = vadd.f32 %v2571, %v2576
    %v2581 = vrot.slane %v2579, 7
    %vm2583 = vcmask 1040384
    %v2584 = vsel %vm2583, %v2578, %v2581
    %v2585 = vld [vmem:[%s15] sm:$0xff]
    %v2586 = vld [vmem:[%s15 + $0x8] sm:$0xff]
    %v2587 = vld [vmem:[%s15 + $0x10] sm:$0xff]
    %v2588 = vld [vmem:[%s15 + $0x18] sm:$0xff]
    %v2589 = vld [vmem:[%s16] sm:$0x1]
    %v2591 = vlaneseq
    %v2592 = vshrl.u32 %v2591, 7
    %v2593 = vsub.s32 0, %v2592
    %v2594 = vrot.slane %v2589, %v2593
    %v2597 = vsel %vm67, %v2584, 0
    %2599 = vmatprep.subr.mxu0 0.0
    %2600 = vmatpush1.msra.mxu0 %v2585
    %2601 = vmatprep.subr.mxu0 0.0
    %2602 = vmatpush1.msra.mxu0 %v2586
    %2603 = vmatprep.subr.mxu0 0.0
    %2604 = vmatpush1.msra.mxu0 %v2587
    %2605 = vmatprep.subr.mxu0 0.0
    %2606 = vmatpush1.msra.mxu0 %v2588
    %2607 = vmatprep.subr.mxu0 0.0
    %2608 = vmatpush1.msra.mxu0 0.0
    %2609 = vmatprep.subr.mxu0 0.0
    %2610 = vmatpush1.msra.mxu0 0.0
    %2611 = vmatprep.subr.mxu0 0.0
    %2612 = vmatpush1.msra.mxu0 0.0
    %2613 = vmatprep.subr.mxu0 0.0
    %2614 = vmatpush1.msra.mxu0 0.0
    %2615 = vmatprep.subr.mxu0 0.0
    %2616 = vmatpush1.msra.mxu0 0.0
    %2617 = vmatprep.subr.mxu0 0.0
    %2618 = vmatpush1.msra.mxu0 0.0
    %2619 = vmatprep.subr.mxu0 0.0
    %2620 = vmatpush1.msra.mxu0 0.0
    %2621 = vmatprep.subr.mxu0 0.0
    %2622 = vmatpush1.msra.mxu0 0.0
    %2623 = vmatprep.subr.mxu0 0.0
    %2624 = vmatpush1.msra.mxu0 0.0
    %2625 = vmatprep.subr.mxu0 0.0
    %2626 = vmatpush1.msra.mxu0 0.0
    %2627 = vmatprep.subr.mxu0 0.0
    %2628 = vmatpush1.msra.mxu0 0.0
    %2629 = vmatprep.subr.mxu0 0.0
    %2630 = vmatpush1.msra.mxu0 0.0
    %2631 = vmatprep.subr.mxu0 0.0
    %2632 = vmatpush1.msra.mxu0 0.0
    %2633 = vmatprep.subr.mxu0 0.0
    %2634 = vmatpush1.msra.mxu0 0.0
    %2635 = vmatprep.subr.mxu0 0.0
    %2636 = vmatpush1.msra.mxu0 0.0
    %2637 = vmatprep.subr.mxu0 0.0
    %2638 = vmatpush1.msra.mxu0 0.0
    %2639 = vmatprep.subr.mxu0 0.0
    %2640 = vmatpush1.msra.mxu0 0.0
    %2641 = vmatprep.subr.mxu0 0.0
    %2642 = vmatpush1.msra.mxu0 0.0
    %2643 = vmatprep.subr.mxu0 0.0
    %2644 = vmatpush1.msra.mxu0 0.0
    %2645 = vmatprep.subr.mxu0 0.0
    %2646 = vmatpush1.msra.mxu0 0.0
    %2647 = vmatprep.subr.mxu0 0.0
    %2648 = vmatpush1.msra.mxu0 0.0
    %2649 = vmatprep.subr.mxu0 0.0
    %2650 = vmatpush1.msra.mxu0 0.0
    %2651 = vmatprep.subr.mxu0 0.0
    %2652 = vmatpush1.msra.mxu0 0.0
    %2653 = vmatprep.subr.mxu0 0.0
    %2654 = vmatpush1.msra.mxu0 0.0
    %2655 = vmatprep.subr.mxu0 0.0
    %2656 = vmatpush1.msra.mxu0 0.0
    %2657 = vmatprep.subr.mxu0 0.0
    %2658 = vmatpush1.msra.mxu0 0.0
    %2659 = vmatprep.subr.mxu0 0.0
    %2660 = vmatpush1.msra.mxu0 0.0
    %2661 = vmatprep.subr.mxu0 0.0
    %2662 = vmatpush1.msra.mxu0 0.0
    %2663 = vmatprep.mubr.f32.mxu0 0.0
    %2664 = vmatmul.mubr.f32.gmra.mrb[0].mxu0 %v2597
    %v2665 = vpop.f32.mrb[0].mxu0
    %v2666 = vadd.f32 %v2594, %v2665
    %v2667 = vpop.f32.mrb[0].mxu0
    %2668 = vdwg.mxu0
    %v2669 = vtanh.pop %v2666
    %v2670 = vld [vmem:[%s17] sm:$0xff]
    %v2671 = vld [vmem:[%s17 + $0x8] sm:$0xff]
    %v2672 = vld [vmem:[%s17 + $0x10] sm:$0xff]
    %v2673 = vld [vmem:[%s17 + $0x18] sm:$0xff]
    %v2674 = vld [vmem:[%s18] sm:$0x1]
    %v2676 = vlaneseq
    %v2677 = vshrl.u32 %v2676, 7
    %v2678 = vsub.s32 0, %v2677
    %v2679 = vrot.slane %v2674, %v2678
    %v2682 = vsel %vm67, %v2669, 0
    %2684 = vmatprep.subr.mxu0 0.0
    %2685 = vmatpush1.msra.mxu0 %v2670
    %2686 = vmatprep.subr.mxu0 0.0
    %2687 = vmatpush1.msra.mxu0 %v2671
    %2688 = vmatprep.subr.mxu0 0.0
    %2689 = vmatpush1.msra.mxu0 %v2672
    %2690 = vmatprep.subr.mxu0 0.0
    %2691 = vmatpush1.msra.mxu0 %v2673
    %2692 = vmatprep.subr.mxu0 0.0
    %2693 = vmatpush1.msra.mxu0 0.0
    %2694 = vmatprep.subr.mxu0 0.0
    %2695 = vmatpush1.msra.mxu0 0.0
    %2696 = vmatprep.subr.mxu0 0.0
    %2697 = vmatpush1.msra.mxu0 0.0
    %2698 = vmatprep.subr.mxu0 0.0
    %2699 = vmatpush1.msra.mxu0 0.0
    %2700 = vmatprep.subr.mxu0 0.0
    %2701 = vmatpush1.msra.mxu0 0.0
    %2702 = vmatprep.subr.mxu0 0.0
    %2703 = vmatpush1.msra.mxu0 0.0
    %2704 = vmatprep.subr.mxu0 0.0
    %2705 = vmatpush1.msra.mxu0 0.0
    %2706 = vmatprep.subr.mxu0 0.0
    %2707 = vmatpush1.msra.mxu0 0.0
    %2708 = vmatprep.subr.mxu0 0.0
    %2709 = vmatpush1.msra.mxu0 0.0
    %2710 = vmatprep.subr.mxu0 0.0
    %2711 = vmatpush1.msra.mxu0 0.0
    %2712 = vmatprep.subr.mxu0 0.0
    %2713 = vmatpush1.msra.mxu0 0.0
    %2714 = vmatprep.subr.mxu0 0.0
    %2715 = vmatpush1.msra.mxu0 0.0
    %2716 = vmatprep.subr.mxu0 0.0
    %2717 = vmatpush1.msra.mxu0 0.0
    %2718 = vmatprep.subr.mxu0 0.0
    %2719 = vmatpush1.msra.mxu0 0.0
    %2720 = vmatprep.subr.mxu0 0.0
    %2721 = vmatpush1.msra.mxu0 0.0
    %2722 = vmatprep.subr.mxu0 0.0
    %2723 = vmatpush1.msra.mxu0 0.0
    %2724 = vmatprep.subr.mxu0 0.0
    %2725 = vmatpush1.msra.mxu0 0.0
    %2726 = vmatprep.subr.mxu0 0.0
    %2727 = vmatpush1.msra.mxu0 0.0
    %2728 = vmatprep.subr.mxu0 0.0
    %2729 = vmatpush1.msra.mxu0 0.0
    %2730 = vmatprep.subr.mxu0 0.0
    %2731 = vmatpush1.msra.mxu0 0.0
    %2732 = vmatprep.subr.mxu0 0.0
    %2733 = vmatpush1.msra.mxu0 0.0
    %2734 = vmatprep.subr.mxu0 0.0
    %2735 = vmatpush1.msra.mxu0 0.0
    %2736 = vmatprep.subr.mxu0 0.0
    %2737 = vmatpush1.msra.mxu0 0.0
    %2738 = vmatprep.subr.mxu0 0.0
    %2739 = vmatpush1.msra.mxu0 0.0
    %2740 = vmatprep.subr.mxu0 0.0
    %2741 = vmatpush1.msra.mxu0 0.0
    %2742 = vmatprep.subr.mxu0 0.0
    %2743 = vmatpush1.msra.mxu0 0.0
    %2744 = vmatprep.subr.mxu0 0.0
    %2745 = vmatpush1.msra.mxu0 0.0
    %2746 = vmatprep.subr.mxu0 0.0
    %2747 = vmatpush1.msra.mxu0 0.0
    %2748 = vmatprep.mubr.f32.mxu0 0.0
    %2749 = vmatmul.mubr.f32.gmra.mrb[0].mxu0 %v2682
    %v2750 = vpop.f32.mrb[0].mxu0
    %v2751 = vadd.f32 %v2679, %v2750
    %v2752 = vpop.f32.mrb[0].mxu0
    %2753 = vdwg.mxu0
    %vm2754 = vcmask 17408
    %2755 = vst.msk [vmem:[#allocation2] sm:$0x3] %vm2754, %v2751
    // Predicated region
    $region78: #{bert_sa_forward.1} parent=1 // pred_check
      _
    $region79: #{bert_sa_forward.1} parent=1 // pred_check_branch
      %2757 = sbr.rel (0) target = $region81
    $region80: #{bert_sa_forward.1} parent=1 // pred_region
      %s2759 = ssub.s32 32, 32
      %2760 = vsyncadd [#allocation3], %s2759
      %s2762 = sshll.u32 [#allocation2], 4
      %s2763 = int_to_ptr.vmem [resolvable:$true] %s2762
      %2765 = dma.vmem_to_hbm [thread:$0]  %s2763, 32, %s19, [#allocation3]
    $region81: #{bert_sa_forward.1} parent=1 // pred_fallthru
      _
    // Predicated region
    $region82: #{bert_sa_forward.1} parent=1 // pred_check
      _
    $region83: #{bert_sa_forward.1} parent=1 // pred_check_branch
      %2767 = sbr.rel (0) target = $region85
    $region84: #{bert_sa_forward.1} parent=1 // pred_region
      %2768 = dma.done [#allocation3], 32
    $region85: #{bert_sa_forward.1} parent=1 // pred_fallthru
      _
    %2769 = vsyncpa [#allocation3], 1

</llo_original>
